<compile_context>
chip_gen: v7x
topology: tpu7x:2x2x1
jax: 0.10.0
libtpu: 0.0.40
codegen_flags: <defaults>
</compile_context>

<pallas_src>
import math
import jax
import jax.numpy as jnp
from jax import lax
from jax.experimental import pallas as pl
from jax.experimental.pallas import tpu as pltpu

# ---- small, module-consistent hyperparameters ----
VOCAB    = 64
D_MODEL  = 32
N_HEADS  = 4
N_LAYERS = 2
D_FF     = 64
BATCH    = 2
SEQ      = 8
HEAD_DIM = D_MODEL // N_HEADS
EPS      = 1e-5
PAD      = 128          # lane-dense padding width


# ----------------------------------------------------------------------------
# Fused Pallas kernel: all layers + vocab head in one invocation
# ----------------------------------------------------------------------------
def gpt_kernel(x_ref,            # (B*S, D)            activations
               attn_w_ref,       # (L, D, 4D)          [in_wT(scaled Q) | out_wT]
               ffn_w1_ref,       # (L, D, D_FF)
               ffn_w2_ref,       # (L, D_FF, D)
               vec_ref,          # (L, 8, 128)         biases + LN params (padded rows)
               head_w_ref,       # (D, 128)            vocab proj, lanes [0:VOCAB]
               head_b_ref,       # (1, 128)
               o_ref,            # (B*S, 128)          lane-dense logits (padded)
               ctx_ref):         # VMEM scratch (B, S, D)
    x = x_ref[...]                                     # (B*S, D) float32

    # --- causal additive mask, computed ONCE and reused by all layers ---
    row = lax.broadcasted_iota(jnp.int32, (SEQ, SEQ), 0)
    col = lax.broadcasted_iota(jnp.int32, (SEQ, SEQ), 1)
    neg = jnp.where(col > row, -jnp.inf, 0.0)[None, :, :]   # (1, S, S)

    def layernorm(z, g, b):
        mu = jnp.mean(z, axis=-1, keepdims=True)
        var = jnp.mean((z - mu) * (z - mu), axis=-1, keepdims=True)
        return (z - mu) * lax.rsqrt(var + EPS) * g + b

    for li in range(N_LAYERS):                         # static unroll (2 layers)
        aw = attn_w_ref[li]                            # (D, 4D) = (32, 128)
        in_wT  = aw[:, :3 * D_MODEL]                   # (32, 96)  (Q cols pre-scaled)
        out_wT = aw[:, 3 * D_MODEL:]                   # (32, 32)

        vec = vec_ref[li]                              # (8, 128)
        in_b  = vec[0:1, :3 * D_MODEL]                 # (1, 96)   (Q part pre-scaled)
        out_b = vec[1:2, :D_MODEL]
        b1    = vec[2:3, :D_FF]
        b2    = vec[3:4, :D_MODEL]
        ln1_g = vec[4:5, :D_MODEL]
        ln1_b = vec[5:6, :D_MODEL]
        ln2_g = vec[6:7, :D_MODEL]
        ln2_b = vec[7:8, :D_MODEL]

        # --- QKV projection over the flattened (B*S) rows: one MXU matmul ---
        qkv = jnp.dot(x, in_wT, preferred_element_type=jnp.float32) + in_b   # (16, 96)
        q = qkv[:, 0 * D_MODEL:1 * D_MODEL].reshape(BATCH, SEQ, D_MODEL)
        k = qkv[:, 1 * D_MODEL:2 * D_MODEL].reshape(BATCH, SEQ, D_MODEL)
        v = qkv[:, 2 * D_MODEL:3 * D_MODEL].reshape(BATCH, SEQ, D_MODEL)

        # --- attention: batched over B per head (scale folded into Q weights) ---
        for h in range(N_HEADS):                       # static unroll over heads
            sl = slice(h * HEAD_DIM, (h + 1) * HEAD_DIM)
            qh, kh, vh = q[:, :, sl], k[:, :, sl], v[:, :, sl]      # (B, S, HD)
            s = jnp.einsum("bqd,bkd->bqk", qh, kh,
                           preferred_element_type=jnp.float32) + neg           # (B, S, S)
            m = jnp.max(s, axis=-1, keepdims=True)
            p = jnp.exp(s - m)
            denom = jnp.sum(p, axis=-1, keepdims=True)
            p = p * pl.reciprocal(denom, approx=True)
            ctx_ref[:, :, sl] = jnp.einsum("bqk,bkd->bqd", p, vh,
                                           preferred_element_type=jnp.float32)

        ctx = ctx_ref[...].reshape(BATCH * SEQ, D_MODEL)            # (16, 32)
        attn = jnp.dot(ctx, out_wT, preferred_element_type=jnp.float32) + out_b

        # residual + LayerNorm 1 (dropout == identity in eval mode)
        h1 = layernorm(x + attn, ln1_g, ln1_b)

        # feed-forward
        ff = jnp.dot(h1, ffn_w1_ref[li], preferred_element_type=jnp.float32) + b1
        ff = jnp.maximum(ff, 0.0)
        ff = jnp.dot(ff, ffn_w2_ref[li], preferred_element_type=jnp.float32) + b2

        # residual + LayerNorm 2
        x = layernorm(h1 + ff, ln2_g, ln2_b)

    # --- final vocab projection, lane-dense (padded to 128 lanes) ---
    o_ref[...] = (jnp.dot(x, head_w_ref[...], preferred_element_type=jnp.float32)
                  + head_b_ref[...])


# ----------------------------------------------------------------------------
# Wrapper
# ----------------------------------------------------------------------------
def gpt_forward(tokens, params, packed):
    B, S = tokens.shape
    x = params["emb"][tokens]                          # embedding gather (glue)
    x = x + params["pe"][None, :S, :]                  # positional encoding (glue)
    x2d = x.reshape(B * S, D_MODEL).astype(jnp.float32)

    logits_pad = pl.pallas_call(
        gpt_kernel,
        out_shape=jax.ShapeDtypeStruct((B * S, PAD), jnp.float32),
        grid=(1,),
        in_specs=[
            pl.BlockSpec((B * S, D_MODEL),                lambda i: (0, 0)),
            pl.BlockSpec((N_LAYERS, D_MODEL, 4 * D_MODEL), lambda i: (0, 0, 0)),
            pl.BlockSpec((N_LAYERS, D_MODEL, D_FF),        lambda i: (0, 0, 0)),
            pl.BlockSpec((N_LAYERS, D_FF, D_MODEL),        lambda i: (0, 0, 0)),
            pl.BlockSpec((N_LAYERS, 8, PAD),               lambda i: (0, 0, 0)),
            pl.BlockSpec((D_MODEL, PAD),                   lambda i: (0, 0)),
            pl.BlockSpec((1, PAD),                         lambda i: (0, 0)),
        ],
        out_specs=pl.BlockSpec((B * S, PAD), lambda i: (0, 0)),
        scratch_shapes=[pltpu.VMEM((BATCH, SEQ, D_MODEL), jnp.float32)],
        compiler_params=pltpu.CompilerParams(dimension_semantics=("arbitrary",)),
    )(x2d, packed["attn_w"], packed["ffn_w1"], packed["ffn_w2"],
      packed["vecs"], packed["head_w"], packed["head_b"])

    return logits_pad[:, :VOCAB].reshape(B, S, VOCAB)


# ----------------------------------------------------------------------------
# One-time parameter packing (scale folding, lane-dense slabs)
# ----------------------------------------------------------------------------
def pack_params(params):
    scale = 1.0 / math.sqrt(HEAD_DIM)

    def pad_vec(v):
        v = v.reshape(-1)
        return jnp.pad(v, (0, PAD - v.shape[0]))

    attn_w, ffn_w1, ffn_w2, vecs = [], [], [], []
    for lp in params["layers"]:
        in_wT = lp["in_wT"].at[:, :D_MODEL].multiply(scale)    # fold 1/sqrt(hd) into Q
        in_b  = lp["in_b"][0].at[:D_MODEL].multiply(scale)
        attn_w.append(jnp.concatenate([in_wT, lp["out_wT"]], axis=1))   # (32, 128)
        ffn_w1.append(lp["w1T"])
        ffn_w2.append(lp["w2T"])
        vecs.append(jnp.stack([
            pad_vec(in_b), pad_vec(lp["out_b"][0]),
            pad_vec(lp["b1"][0]), pad_vec(lp["b2"][0]),
            pad_vec(lp["ln1_g"][0]), pad_vec(lp["ln1_b"][0]),
            pad_vec(lp["ln2_g"][0]), pad_vec(lp["ln2_b"][0])], axis=0))  # (8, 128)

    head_w = jnp.pad(params["out_wT"], ((0, 0), (0, PAD - VOCAB)))       # (32, 128)
    head_b = jnp.pad(params["out_b"][0], (0, PAD - VOCAB)).reshape(1, PAD)
    return {
        "attn_w": jnp.stack(attn_w),   # (L, 32, 128)
        "ffn_w1": jnp.stack(ffn_w1),   # (L, 32, 64)
        "ffn_w2": jnp.stack(ffn_w2),   # (L, 64, 32)
        "vecs":   jnp.stack(vecs),     # (L, 8, 128)
        "head_w": head_w,
        "head_b": head_b,
    }


# ----------------------------------------------------------------------------
# Pure-JAX reference (raw, unpacked parameters) for correctness check
# ----------------------------------------------------------------------------
def ref_block(x, p):
    B, S, D = x.shape
    qkv = x @ p["in_wT"] + p["in_b"][0]
    q, k, v = jnp.split(qkv, 3, axis=-1)

    def heads(t):
        return t.reshape(B, S, N_HEADS, HEAD_DIM).transpose(0, 2, 1, 3)

    qh, kh, vh = heads(q), heads(k), heads(v)
    s = jnp.einsum("bhsd,bhtd->bhst", qh, kh) / math.sqrt(HEAD_DIM)
    mask = jnp.triu(jnp.ones((S, S), bool), 1)
    s = jnp.where(mask, -jnp.inf, s)
    att = jax.nn.softmax(s, axis=-1)
    ctx = jnp.einsum("bhst,bhtd->bhsd", att, vh).transpose(0, 2, 1, 3).reshape(B, S, D)
    attn = ctx @ p["out_wT"] + p["out_b"][0]

    def ln(z, g, b):
        mu = z.mean(-1, keepdims=True)
        var = ((z - mu) ** 2).mean(-1, keepdims=True)
        return (z - mu) / jnp.sqrt(var + EPS) * g[0] + b[0]

    h1 = ln(x + attn, p["ln1_g"], p["ln1_b"])
    ff = jax.nn.relu(h1 @ p["w1T"] + p["b1"][0]) @ p["w2T"] + p["b2"][0]
    return ln(h1 + ff, p["ln2_g"], p["ln2_b"])


def reference_forward(tokens, params):
    B, S = tokens.shape
    x = params["emb"][tokens] + params["pe"][None, :S, :]
    for lp in params["layers"]:
        x = ref_block(x, lp)
    return x @ params["out_wT"] + params["out_b"][0]


# ----------------------------------------------------------------------------
# Deterministic parameter construction (matches the PyTorch module's structure)
# ----------------------------------------------------------------------------
def make_params(key):
    def nrm(k, shape, scale=0.02):
        return (scale * jax.random.normal(k, shape)).astype(jnp.float32)

    keys = jax.random.split(key, 4 + N_LAYERS)
    params = {}
    params["emb"] = nrm(keys[0], (VOCAB, D_MODEL), 1.0)

    # sinusoidal positional encoding (matches PositionalEncoding)
    pos = jnp.arange(SEQ, dtype=jnp.float32)[:, None]
    div = jnp.exp(jnp.arange(0, D_MODEL, 2, dtype=jnp.float32) * (-math.log(10000.0) / D_MODEL))
    pe = jnp.zeros((SEQ, D_MODEL), jnp.float32)
    pe = pe.at[:, 0::2].set(jnp.sin(pos * div))
    pe = pe.at[:, 1::2].set(jnp.cos(pos * div))
    params["pe"] = pe

    layers = []
    for li in range(N_LAYERS):
        lk = jax.random.split(keys[2 + li], 8)
        layers.append({
            "in_wT":  nrm(lk[0], (3 * D_MODEL, D_MODEL)).T,     # (D, 3D)
            "in_b":   nrm(lk[1], (1, 3 * D_MODEL)),
            "out_wT": nrm(lk[2], (D_MODEL, D_MODEL)).T,         # (D, D)
            "out_b":  nrm(lk[3], (1, D_MODEL)),
            "ln1_g":  jnp.ones((1, D_MODEL), jnp.float32),
            "ln1_b":  jnp.zeros((1, D_MODEL), jnp.float32),
            "w1T":    nrm(lk[4], (D_FF, D_MODEL)).T,            # (D, D_FF)
            "b1":     nrm(lk[5], (1, D_FF)),
            "w2T":    nrm(lk[6], (D_MODEL, D_FF)).T,            # (D_FF, D)
            "b2":     nrm(lk[7], (1, D_MODEL)),
            "ln2_g":  jnp.ones((1, D_MODEL), jnp.float32),
            "ln2_b":  jnp.zeros((1, D_MODEL), jnp.float32),
        })
    params["layers"] = layers
    params["out_wT"] = nrm(keys[2 + N_LAYERS], (VOCAB, D_MODEL)).T   # (D, V)
    params["out_b"] = nrm(keys[3 + N_LAYERS], (1, VOCAB))
    return params


if __name__ == "__main__":
    key = jax.random.PRNGKey(0)
    k_params, k_tok = jax.random.split(key)
    params = make_params(k_params)
    packed = pack_params(params)
    tokens = jax.random.randint(k_tok, (BATCH, SEQ), 0, VOCAB)

    logits = gpt_forward(tokens, params, packed)
    logits = jax.block_until_ready(logits)

    ref = reference_forward(tokens, params)
    assert logits.shape == (BATCH, SEQ, VOCAB)
    assert jnp.allclose(logits, ref, atol=1e-3, rtol=1e-3), float(jnp.max(jnp.abs(logits - ref)))
    print("KERNEL_OK")
</pallas_src>

<mosaic_0001>
module attributes {stable_mosaic.version = 11 : i64} {
  func.func @gpt_kernel(%arg0: i32, %arg1: memref<16x32xf32, #tpu.memory_space<vmem>>, %arg2: memref<2x32x128xf32, #tpu.memory_space<vmem>>, %arg3: memref<2x32x64xf32, #tpu.memory_space<vmem>>, %arg4: memref<2x64x32xf32, #tpu.memory_space<vmem>>, %arg5: memref<2x8x128xf32, #tpu.memory_space<vmem>>, %arg6: memref<32x128xf32, #tpu.memory_space<vmem>>, %arg7: memref<1x128xf32, #tpu.memory_space<vmem>>, %arg8: memref<16x128xf32, #tpu.memory_space<vmem>>, %arg9: memref<2x8x32xf32, #tpu.memory_space<vmem>>) attributes {dimension_semantics = [#tpu.dimension_semantics<arbitrary>], iteration_bounds = array<i64: 1>, scalar_prefetch = 0 : i64, scratch_operands = 1 : i64, tpu.core_type = #tpu.core_type<tc>, window_params = [{pipeline_mode = #tpu.pipeline_mode<synchronous>, transform_indices = @transform_0, window_bounds = array<i64: 16, 32>}, {pipeline_mode = #tpu.pipeline_mode<synchronous>, transform_indices = @transform_1, window_bounds = array<i64: 2, 32, 128>}, {pipeline_mode = #tpu.pipeline_mode<synchronous>, transform_indices = @transform_2, window_bounds = array<i64: 2, 32, 64>}, {pipeline_mode = #tpu.pipeline_mode<synchronous>, transform_indices = @transform_3, window_bounds = array<i64: 2, 64, 32>}, {pipeline_mode = #tpu.pipeline_mode<synchronous>, transform_indices = @transform_4, window_bounds = array<i64: 2, 8, 128>}, {pipeline_mode = #tpu.pipeline_mode<synchronous>, transform_indices = @transform_5, window_bounds = array<i64: 32, 128>}, {pipeline_mode = #tpu.pipeline_mode<synchronous>, transform_indices = @transform_6, window_bounds = array<i64: 1, 128>}, {pipeline_mode = #tpu.pipeline_mode<synchronous>, transform_indices = @transform_7, window_bounds = array<i64: 16, 128>}]} {
    %c0 = arith.constant 0 : index
    %c0_0 = arith.constant 0 : index
    %0 = vector.load %arg1[%c0, %c0_0] : memref<16x32xf32, #tpu.memory_space<vmem>>, vector<16x32xf32>
    %1 = tpu.iota {dimensions = array<i32: 0>} : vector<8x8xi32>
    %2 = tpu.iota {dimensions = array<i32: 1>} : vector<8x8xi32>
    %3 = arith.cmpi sgt, %2, %1 : vector<8x8xi32>
    %cst = arith.constant 0xFF800000 : f32
    %cst_1 = arith.constant 0.000000e+00 : f32
    %4 = vector.broadcast %cst : f32 to vector<8x8xf32>
    %5 = vector.broadcast %cst_1 : f32 to vector<8x8xf32>
    %6 = arith.select %3, %4, %5 : vector<8x8xi1>, vector<8x8xf32>
    %7 = vector.shape_cast %6 : vector<8x8xf32> to vector<1x8x8xf32>
    %c0_2 = arith.constant 0 : index
    %c0_3 = arith.constant 0 : index
    %c0_4 = arith.constant 0 : index
    %8 = vector.load %arg2[%c0_2, %c0_3, %c0_4] : memref<2x32x128xf32, #tpu.memory_space<vmem>>, vector<1x32x128xf32>
    %9 = vector.shape_cast %8 : vector<1x32x128xf32> to vector<32x128xf32>
    %10 = vector.extract_strided_slice %9 {offsets = [0, 0], sizes = [32, 96], strides = [1, 1]} : vector<32x128xf32> to vector<32x96xf32>
    %11 = vector.extract_strided_slice %9 {offsets = [0, 96], sizes = [32, 32], strides = [1, 1]} : vector<32x128xf32> to vector<32x32xf32>
    %c0_5 = arith.constant 0 : index
    %c0_6 = arith.constant 0 : index
    %c0_7 = arith.constant 0 : index
    %12 = vector.load %arg5[%c0_5, %c0_6, %c0_7] : memref<2x8x128xf32, #tpu.memory_space<vmem>>, vector<1x8x128xf32>
    %13 = vector.shape_cast %12 : vector<1x8x128xf32> to vector<8x128xf32>
    %14 = vector.extract_strided_slice %13 {offsets = [0, 0], sizes = [1, 96], strides = [1, 1]} : vector<8x128xf32> to vector<1x96xf32>
    %15 = vector.extract_strided_slice %13 {offsets = [1, 0], sizes = [1, 32], strides = [1, 1]} : vector<8x128xf32> to vector<1x32xf32>
    %16 = vector.extract_strided_slice %13 {offsets = [2, 0], sizes = [1, 64], strides = [1, 1]} : vector<8x128xf32> to vector<1x64xf32>
    %17 = vector.extract_strided_slice %13 {offsets = [3, 0], sizes = [1, 32], strides = [1, 1]} : vector<8x128xf32> to vector<1x32xf32>
    %18 = vector.extract_strided_slice %13 {offsets = [4, 0], sizes = [1, 32], strides = [1, 1]} : vector<8x128xf32> to vector<1x32xf32>
    %19 = vector.extract_strided_slice %13 {offsets = [5, 0], sizes = [1, 32], strides = [1, 1]} : vector<8x128xf32> to vector<1x32xf32>
    %20 = vector.extract_strided_slice %13 {offsets = [6, 0], sizes = [1, 32], strides = [1, 1]} : vector<8x128xf32> to vector<1x32xf32>
    %21 = vector.extract_strided_slice %13 {offsets = [7, 0], sizes = [1, 32], strides = [1, 1]} : vector<8x128xf32> to vector<1x32xf32>
    %cst_8 = arith.constant dense<0.000000e+00> : vector<16x96xf32>
    %22 = tpu.matmul %0, %10, %cst_8 {dimension_numbers = #tpu.dot_dimension_numbers<[1], [0], [0], [1], [0, 0, 1, 1], [], []>} : vector<16x32xf32>, vector<32x96xf32>, vector<16x96xf32> -> vector<16x96xf32>
    %23 = vector.broadcast %14 : vector<1x96xf32> to vector<16x96xf32>
    %24 = arith.addf %22, %23 : vector<16x96xf32>
    %25 = vector.extract_strided_slice %24 {offsets = [0, 0], sizes = [16, 32], strides = [1, 1]} : vector<16x96xf32> to vector<16x32xf32>
    %26 = vector.shape_cast %25 : vector<16x32xf32> to vector<2x8x32xf32>
    %27 = vector.extract_strided_slice %24 {offsets = [0, 32], sizes = [16, 32], strides = [1, 1]} : vector<16x96xf32> to vector<16x32xf32>
    %28 = vector.shape_cast %27 : vector<16x32xf32> to vector<2x8x32xf32>
    %29 = vector.extract_strided_slice %24 {offsets = [0, 64], sizes = [16, 32], strides = [1, 1]} : vector<16x96xf32> to vector<16x32xf32>
    %30 = vector.shape_cast %29 : vector<16x32xf32> to vector<2x8x32xf32>
    %31 = vector.extract_strided_slice %26 {offsets = [0, 0, 0], sizes = [2, 8, 8], strides = [1, 1, 1]} : vector<2x8x32xf32> to vector<2x8x8xf32>
    %32 = vector.extract_strided_slice %28 {offsets = [0, 0, 0], sizes = [2, 8, 8], strides = [1, 1, 1]} : vector<2x8x32xf32> to vector<2x8x8xf32>
    %33 = vector.extract_strided_slice %30 {offsets = [0, 0, 0], sizes = [2, 8, 8], strides = [1, 1, 1]} : vector<2x8x32xf32> to vector<2x8x8xf32>
    "tpu.trace_start"() <{level = 10 : i32, message = "bqd,bkd->bqk"}> : () -> ()
    %cst_9 = arith.constant dense<0.000000e+00> : vector<2x8x8xf32>
    %34 = tpu.matmul %31, %32, %cst_9 {dimension_numbers = #tpu.dot_dimension_numbers<[2], [2], [1], [1], [0, 0, 0, 1, 1, 1], [0], [0]>} : vector<2x8x8xf32>, vector<2x8x8xf32>, vector<2x8x8xf32> -> vector<2x8x8xf32>
    "tpu.trace_stop"() : () -> ()
    %35 = vector.broadcast %7 : vector<1x8x8xf32> to vector<2x8x8xf32>
    %36 = arith.addf %34, %35 : vector<2x8x8xf32>
    %cst_10 = arith.constant dense<0xFF800000> : vector<2x8xf32>
    %37 = vector.multi_reduction <maximumf>, %36, %cst_10 [2] : vector<2x8x8xf32> to vector<2x8xf32>
    %38 = vector.shape_cast %37 : vector<2x8xf32> to vector<2x8x1xf32>
    %39 = vector.broadcast %38 : vector<2x8x1xf32> to vector<2x8x8xf32>
    %40 = arith.subf %36, %39 : vector<2x8x8xf32>
    %41 = math.exp %40 : vector<2x8x8xf32>
    %cst_11 = arith.constant dense<0.000000e+00> : vector<2x8xf32>
    %42 = vector.multi_reduction <add>, %41, %cst_11 [2] : vector<2x8x8xf32> to vector<2x8xf32>
    %43 = vector.shape_cast %42 : vector<2x8xf32> to vector<2x8x1xf32>
    %44 = tpu.reciprocal %43 {approx = true} : vector<2x8x1xf32> -> vector<2x8x1xf32>
    %45 = vector.broadcast %44 : vector<2x8x1xf32> to vector<2x8x8xf32>
    %46 = arith.mulf %41, %45 : vector<2x8x8xf32>
    "tpu.trace_start"() <{level = 10 : i32, message = "bqk,bkd->bqd"}> : () -> ()
    %cst_12 = arith.constant dense<0.000000e+00> : vector<2x8x8xf32>
    %47 = tpu.matmul %46, %33, %cst_12 {dimension_numbers = #tpu.dot_dimension_numbers<[2], [1], [1], [2], [0, 0, 0, 1, 1, 2], [0], [0]>} : vector<2x8x8xf32>, vector<2x8x8xf32>, vector<2x8x8xf32> -> vector<2x8x8xf32>
    "tpu.trace_stop"() : () -> ()
    %c0_13 = arith.constant 0 : index
    %c0_14 = arith.constant 0 : index
    %c0_15 = arith.constant 0 : index
    %48 = vector.load %arg9[%c0_13, %c0_14, %c0_15] : memref<2x8x32xf32, #tpu.memory_space<vmem>>, vector<2x8x8xf32>
    tpu.vector_store %arg9[%c0_13, %c0_14, %c0_15], %47 {strides = array<i32>} : memref<2x8x32xf32, #tpu.memory_space<vmem>>, vector<2x8x8xf32>,
    %49 = vector.extract_strided_slice %26 {offsets = [0, 0, 8], sizes = [2, 8, 8], strides = [1, 1, 1]} : vector<2x8x32xf32> to vector<2x8x8xf32>
    %50 = vector.extract_strided_slice %28 {offsets = [0, 0, 8], sizes = [2, 8, 8], strides = [1, 1, 1]} : vector<2x8x32xf32> to vector<2x8x8xf32>
    %51 = vector.extract_strided_slice %30 {offsets = [0, 0, 8], sizes = [2, 8, 8], strides = [1, 1, 1]} : vector<2x8x32xf32> to vector<2x8x8xf32>
    "tpu.trace_start"() <{level = 10 : i32, message = "bqd,bkd->bqk"}> : () -> ()
    %cst_16 = arith.constant dense<0.000000e+00> : vector<2x8x8xf32>
    %52 = tpu.matmul %49, %50, %cst_16 {dimension_numbers = #tpu.dot_dimension_numbers<[2], [2], [1], [1], [0, 0, 0, 1, 1, 1], [0], [0]>} : vector<2x8x8xf32>, vector<2x8x8xf32>, vector<2x8x8xf32> -> vector<2x8x8xf32>
    "tpu.trace_stop"() : () -> ()
    %53 = vector.broadcast %7 : vector<1x8x8xf32> to vector<2x8x8xf32>
    %54 = arith.addf %52, %53 : vector<2x8x8xf32>
    %cst_17 = arith.constant dense<0xFF800000> : vector<2x8xf32>
    %55 = vector.multi_reduction <maximumf>, %54, %cst_17 [2] : vector<2x8x8xf32> to vector<2x8xf32>
    %56 = vector.shape_cast %55 : vector<2x8xf32> to vector<2x8x1xf32>
    %57 = vector.broadcast %56 : vector<2x8x1xf32> to vector<2x8x8xf32>
    %58 = arith.subf %54, %57 : vector<2x8x8xf32>
    %59 = math.exp %58 : vector<2x8x8xf32>
    %cst_18 = arith.constant dense<0.000000e+00> : vector<2x8xf32>
    %60 = vector.multi_reduction <add>, %59, %cst_18 [2] : vector<2x8x8xf32> to vector<2x8xf32>
    %61 = vector.shape_cast %60 : vector<2x8xf32> to vector<2x8x1xf32>
    %62 = tpu.reciprocal %61 {approx = true} : vector<2x8x1xf32> -> vector<2x8x1xf32>
    %63 = vector.broadcast %62 : vector<2x8x1xf32> to vector<2x8x8xf32>
    %64 = arith.mulf %59, %63 : vector<2x8x8xf32>
    "tpu.trace_start"() <{level = 10 : i32, message = "bqk,bkd->bqd"}> : () -> ()
    %cst_19 = arith.constant dense<0.000000e+00> : vector<2x8x8xf32>
    %65 = tpu.matmul %64, %51, %cst_19 {dimension_numbers = #tpu.dot_dimension_numbers<[2], [1], [1], [2], [0, 0, 0, 1, 1, 2], [0], [0]>} : vector<2x8x8xf32>, vector<2x8x8xf32>, vector<2x8x8xf32> -> vector<2x8x8xf32>
    "tpu.trace_stop"() : () -> ()
    %c0_20 = arith.constant 0 : index
    %c0_21 = arith.constant 0 : index
    %c8 = arith.constant 8 : index
    %66 = vector.load %arg9[%c0_20, %c0_21, %c8] : memref<2x8x32xf32, #tpu.memory_space<vmem>>, vector<2x8x8xf32>
    tpu.vector_store %arg9[%c0_20, %c0_21, %c8], %65 {strides = array<i32>} : memref<2x8x32xf32, #tpu.memory_space<vmem>>, vector<2x8x8xf32>,
    %67 = vector.extract_strided_slice %26 {offsets = [0, 0, 16], sizes = [2, 8, 8], strides = [1, 1, 1]} : vector<2x8x32xf32> to vector<2x8x8xf32>
    %68 = vector.extract_strided_slice %28 {offsets = [0, 0, 16], sizes = [2, 8, 8], strides = [1, 1, 1]} : vector<2x8x32xf32> to vector<2x8x8xf32>
    %69 = vector.extract_strided_slice %30 {offsets = [0, 0, 16], sizes = [2, 8, 8], strides = [1, 1, 1]} : vector<2x8x32xf32> to vector<2x8x8xf32>
    "tpu.trace_start"() <{level = 10 : i32, message = "bqd,bkd->bqk"}> : () -> ()
    %cst_22 = arith.constant dense<0.000000e+00> : vector<2x8x8xf32>
    %70 = tpu.matmul %67, %68, %cst_22 {dimension_numbers = #tpu.dot_dimension_numbers<[2], [2], [1], [1], [0, 0, 0, 1, 1, 1], [0], [0]>} : vector<2x8x8xf32>, vector<2x8x8xf32>, vector<2x8x8xf32> -> vector<2x8x8xf32>
    "tpu.trace_stop"() : () -> ()
    %71 = vector.broadcast %7 : vector<1x8x8xf32> to vector<2x8x8xf32>
    %72 = arith.addf %70, %71 : vector<2x8x8xf32>
    %cst_23 = arith.constant dense<0xFF800000> : vector<2x8xf32>
    %73 = vector.multi_reduction <maximumf>, %72, %cst_23 [2] : vector<2x8x8xf32> to vector<2x8xf32>
    %74 = vector.shape_cast %73 : vector<2x8xf32> to vector<2x8x1xf32>
    %75 = vector.broadcast %74 : vector<2x8x1xf32> to vector<2x8x8xf32>
    %76 = arith.subf %72, %75 : vector<2x8x8xf32>
    %77 = math.exp %76 : vector<2x8x8xf32>
    %cst_24 = arith.constant dense<0.000000e+00> : vector<2x8xf32>
    %78 = vector.multi_reduction <add>, %77, %cst_24 [2] : vector<2x8x8xf32> to vector<2x8xf32>
    %79 = vector.shape_cast %78 : vector<2x8xf32> to vector<2x8x1xf32>
    %80 = tpu.reciprocal %79 {approx = true} : vector<2x8x1xf32> -> vector<2x8x1xf32>
    %81 = vector.broadcast %80 : vector<2x8x1xf32> to vector<2x8x8xf32>
    %82 = arith.mulf %77, %81 : vector<2x8x8xf32>
    "tpu.trace_start"() <{level = 10 : i32, message = "bqk,bkd->bqd"}> : () -> ()
    %cst_25 = arith.constant dense<0.000000e+00> : vector<2x8x8xf32>
    %83 = tpu.matmul %82, %69, %cst_25 {dimension_numbers = #tpu.dot_dimension_numbers<[2], [1], [1], [2], [0, 0, 0, 1, 1, 2], [0], [0]>} : vector<2x8x8xf32>, vector<2x8x8xf32>, vector<2x8x8xf32> -> vector<2x8x8xf32>
    "tpu.trace_stop"() : () -> ()
    %c0_26 = arith.constant 0 : index
    %c0_27 = arith.constant 0 : index
    %c16 = arith.constant 16 : index
    %84 = vector.load %arg9[%c0_26, %c0_27, %c16] : memref<2x8x32xf32, #tpu.memory_space<vmem>>, vector<2x8x8xf32>
    tpu.vector_store %arg9[%c0_26, %c0_27, %c16], %83 {strides = array<i32>} : memref<2x8x32xf32, #tpu.memory_space<vmem>>, vector<2x8x8xf32>,
    %85 = vector.extract_strided_slice %26 {offsets = [0, 0, 24], sizes = [2, 8, 8], strides = [1, 1, 1]} : vector<2x8x32xf32> to vector<2x8x8xf32>
    %86 = vector.extract_strided_slice %28 {offsets = [0, 0, 24], sizes = [2, 8, 8], strides = [1, 1, 1]} : vector<2x8x32xf32> to vector<2x8x8xf32>
    %87 = vector.extract_strided_slice %30 {offsets = [0, 0, 24], sizes = [2, 8, 8], strides = [1, 1, 1]} : vector<2x8x32xf32> to vector<2x8x8xf32>
    "tpu.trace_start"() <{level = 10 : i32, message = "bqd,bkd->bqk"}> : () -> ()
    %cst_28 = arith.constant dense<0.000000e+00> : vector<2x8x8xf32>
    %88 = tpu.matmul %85, %86, %cst_28 {dimension_numbers = #tpu.dot_dimension_numbers<[2], [2], [1], [1], [0, 0, 0, 1, 1, 1], [0], [0]>} : vector<2x8x8xf32>, vector<2x8x8xf32>, vector<2x8x8xf32> -> vector<2x8x8xf32>
    "tpu.trace_stop"() : () -> ()
    %89 = vector.broadcast %7 : vector<1x8x8xf32> to vector<2x8x8xf32>
    %90 = arith.addf %88, %89 : vector<2x8x8xf32>
    %cst_29 = arith.constant dense<0xFF800000> : vector<2x8xf32>
    %91 = vector.multi_reduction <maximumf>, %90, %cst_29 [2] : vector<2x8x8xf32> to vector<2x8xf32>
    %92 = vector.shape_cast %91 : vector<2x8xf32> to vector<2x8x1xf32>
    %93 = vector.broadcast %92 : vector<2x8x1xf32> to vector<2x8x8xf32>
    %94 = arith.subf %90, %93 : vector<2x8x8xf32>
    %95 = math.exp %94 : vector<2x8x8xf32>
    %cst_30 = arith.constant dense<0.000000e+00> : vector<2x8xf32>
    %96 = vector.multi_reduction <add>, %95, %cst_30 [2] : vector<2x8x8xf32> to vector<2x8xf32>
    %97 = vector.shape_cast %96 : vector<2x8xf32> to vector<2x8x1xf32>
    %98 = tpu.reciprocal %97 {approx = true} : vector<2x8x1xf32> -> vector<2x8x1xf32>
    %99 = vector.broadcast %98 : vector<2x8x1xf32> to vector<2x8x8xf32>
    %100 = arith.mulf %95, %99 : vector<2x8x8xf32>
    "tpu.trace_start"() <{level = 10 : i32, message = "bqk,bkd->bqd"}> : () -> ()
    %cst_31 = arith.constant dense<0.000000e+00> : vector<2x8x8xf32>
    %101 = tpu.matmul %100, %87, %cst_31 {dimension_numbers = #tpu.dot_dimension_numbers<[2], [1], [1], [2], [0, 0, 0, 1, 1, 2], [0], [0]>} : vector<2x8x8xf32>, vector<2x8x8xf32>, vector<2x8x8xf32> -> vector<2x8x8xf32>
    "tpu.trace_stop"() : () -> ()
    %c0_32 = arith.constant 0 : index
    %c0_33 = arith.constant 0 : index
    %c24 = arith.constant 24 : index
    %102 = vector.load %arg9[%c0_32, %c0_33, %c24] : memref<2x8x32xf32, #tpu.memory_space<vmem>>, vector<2x8x8xf32>
    tpu.vector_store %arg9[%c0_32, %c0_33, %c24], %101 {strides = array<i32>} : memref<2x8x32xf32, #tpu.memory_space<vmem>>, vector<2x8x8xf32>,
    %c0_34 = arith.constant 0 : index
    %c0_35 = arith.constant 0 : index
    %c0_36 = arith.constant 0 : index
    %103 = vector.load %arg9[%c0_34, %c0_35, %c0_36] : memref<2x8x32xf32, #tpu.memory_space<vmem>>, vector<2x8x32xf32>
    %104 = vector.shape_cast %103 : vector<2x8x32xf32> to vector<16x32xf32>
    %cst_37 = arith.constant dense<0.000000e+00> : vector<16x32xf32>
    %105 = tpu.matmul %104, %11, %cst_37 {dimension_numbers = #tpu.dot_dimension_numbers<[1], [0], [0], [1], [0, 0, 1, 1], [], []>} : vector<16x32xf32>, vector<32x32xf32>, vector<16x32xf32> -> vector<16x32xf32>
    %106 = vector.broadcast %15 : vector<1x32xf32> to vector<16x32xf32>
    %107 = arith.addf %105, %106 : vector<16x32xf32>
    %108 = arith.addf %0, %107 : vector<16x32xf32>
    %cst_38 = arith.constant dense<0.000000e+00> : vector<16xf32>
    %109 = vector.multi_reduction <add>, %108, %cst_38 [1] : vector<16x32xf32> to vector<16xf32>
    %110 = vector.shape_cast %109 : vector<16xf32> to vector<16x1xf32>
    %cst_39 = arith.constant 3.200000e+01 : f32
    %111 = vector.broadcast %cst_39 : f32 to vector<16x1xf32>
    %112 = arith.divf %110, %111 : vector<16x1xf32>
    %113 = vector.broadcast %112 : vector<16x1xf32> to vector<16x32xf32>
    %114 = arith.subf %108, %113 : vector<16x32xf32>
    %115 = vector.broadcast %112 : vector<16x1xf32> to vector<16x32xf32>
    %116 = arith.subf %108, %115 : vector<16x32xf32>
    %117 = arith.mulf %114, %116 : vector<16x32xf32>
    %cst_40 = arith.constant dense<0.000000e+00> : vector<16xf32>
    %118 = vector.multi_reduction <add>, %117, %cst_40 [1] : vector<16x32xf32> to vector<16xf32>
    %119 = vector.shape_cast %118 : vector<16xf32> to vector<16x1xf32>
    %cst_41 = arith.constant 3.200000e+01 : f32
    %120 = vector.broadcast %cst_41 : f32 to vector<16x1xf32>
    %121 = arith.divf %119, %120 : vector<16x1xf32>
    %122 = vector.broadcast %112 : vector<16x1xf32> to vector<16x32xf32>
    %123 = arith.subf %108, %122 : vector<16x32xf32>
    %cst_42 = arith.constant 9.99999974E-6 : f32
    %124 = vector.broadcast %cst_42 : f32 to vector<16x1xf32>
    %125 = arith.addf %121, %124 : vector<16x1xf32>
    %126 = math.rsqrt %125 : vector<16x1xf32>
    %127 = vector.broadcast %126 : vector<16x1xf32> to vector<16x32xf32>
    %128 = arith.mulf %123, %127 : vector<16x32xf32>
    %129 = vector.broadcast %18 : vector<1x32xf32> to vector<16x32xf32>
    %130 = arith.mulf %128, %129 : vector<16x32xf32>
    %131 = vector.broadcast %19 : vector<1x32xf32> to vector<16x32xf32>
    %132 = arith.addf %130, %131 : vector<16x32xf32>
    %c0_43 = arith.constant 0 : index
    %c0_44 = arith.constant 0 : index
    %c0_45 = arith.constant 0 : index
    %133 = vector.load %arg3[%c0_43, %c0_44, %c0_45] : memref<2x32x64xf32, #tpu.memory_space<vmem>>, vector<1x32x64xf32>
    %134 = vector.shape_cast %133 : vector<1x32x64xf32> to vector<32x64xf32>
    %cst_46 = arith.constant dense<0.000000e+00> : vector<16x64xf32>
    %135 = tpu.matmul %132, %134, %cst_46 {dimension_numbers = #tpu.dot_dimension_numbers<[1], [0], [0], [1], [0, 0, 1, 1], [], []>} : vector<16x32xf32>, vector<32x64xf32>, vector<16x64xf32> -> vector<16x64xf32>
    %136 = vector.broadcast %16 : vector<1x64xf32> to vector<16x64xf32>
    %137 = arith.addf %135, %136 : vector<16x64xf32>
    %cst_47 = arith.constant 0.000000e+00 : f32
    %138 = vector.broadcast %cst_47 : f32 to vector<16x64xf32>
    %139 = arith.maximumf %137, %138 : vector<16x64xf32>
    %c0_48 = arith.constant 0 : index
    %c0_49 = arith.constant 0 : index
    %c0_50 = arith.constant 0 : index
    %140 = vector.load %arg4[%c0_48, %c0_49, %c0_50] : memref<2x64x32xf32, #tpu.memory_space<vmem>>, vector<1x64x32xf32>
    %141 = vector.shape_cast %140 : vector<1x64x32xf32> to vector<64x32xf32>
    %cst_51 = arith.constant dense<0.000000e+00> : vector<16x32xf32>
    %142 = tpu.matmul %139, %141, %cst_51 {dimension_numbers = #tpu.dot_dimension_numbers<[1], [0], [0], [1], [0, 0, 1, 1], [], []>} : vector<16x64xf32>, vector<64x32xf32>, vector<16x32xf32> -> vector<16x32xf32>
    %143 = vector.broadcast %17 : vector<1x32xf32> to vector<16x32xf32>
    %144 = arith.addf %142, %143 : vector<16x32xf32>
    %145 = arith.addf %132, %144 : vector<16x32xf32>
    %cst_52 = arith.constant dense<0.000000e+00> : vector<16xf32>
    %146 = vector.multi_reduction <add>, %145, %cst_52 [1] : vector<16x32xf32> to vector<16xf32>
    %147 = vector.shape_cast %146 : vector<16xf32> to vector<16x1xf32>
    %cst_53 = arith.constant 3.200000e+01 : f32
    %148 = vector.broadcast %cst_53 : f32 to vector<16x1xf32>
    %149 = arith.divf %147, %148 : vector<16x1xf32>
    %150 = vector.broadcast %149 : vector<16x1xf32> to vector<16x32xf32>
    %151 = arith.subf %145, %150 : vector<16x32xf32>
    %152 = vector.broadcast %149 : vector<16x1xf32> to vector<16x32xf32>
    %153 = arith.subf %145, %152 : vector<16x32xf32>
    %154 = arith.mulf %151, %153 : vector<16x32xf32>
    %cst_54 = arith.constant dense<0.000000e+00> : vector<16xf32>
    %155 = vector.multi_reduction <add>, %154, %cst_54 [1] : vector<16x32xf32> to vector<16xf32>
    %156 = vector.shape_cast %155 : vector<16xf32> to vector<16x1xf32>
    %cst_55 = arith.constant 3.200000e+01 : f32
    %157 = vector.broadcast %cst_55 : f32 to vector<16x1xf32>
    %158 = arith.divf %156, %157 : vector<16x1xf32>
    %159 = vector.broadcast %149 : vector<16x1xf32> to vector<16x32xf32>
    %160 = arith.subf %145, %159 : vector<16x32xf32>
    %cst_56 = arith.constant 9.99999974E-6 : f32
    %161 = vector.broadcast %cst_56 : f32 to vector<16x1xf32>
    %162 = arith.addf %158, %161 : vector<16x1xf32>
    %163 = math.rsqrt %162 : vector<16x1xf32>
    %164 = vector.broadcast %163 : vector<16x1xf32> to vector<16x32xf32>
    %165 = arith.mulf %160, %164 : vector<16x32xf32>
    %166 = vector.broadcast %20 : vector<1x32xf32> to vector<16x32xf32>
    %167 = arith.mulf %165, %166 : vector<16x32xf32>
    %168 = vector.broadcast %21 : vector<1x32xf32> to vector<16x32xf32>
    %169 = arith.addf %167, %168 : vector<16x32xf32>
    %c1 = arith.constant 1 : index
    %c0_57 = arith.constant 0 : index
    %c0_58 = arith.constant 0 : index
    %170 = vector.load %arg2[%c1, %c0_57, %c0_58] : memref<2x32x128xf32, #tpu.memory_space<vmem>>, vector<1x32x128xf32>
    %171 = vector.shape_cast %170 : vector<1x32x128xf32> to vector<32x128xf32>
    %172 = vector.extract_strided_slice %171 {offsets = [0, 0], sizes = [32, 96], strides = [1, 1]} : vector<32x128xf32> to vector<32x96xf32>
    %173 = vector.extract_strided_slice %171 {offsets = [0, 96], sizes = [32, 32], strides = [1, 1]} : vector<32x128xf32> to vector<32x32xf32>
    %c1_59 = arith.constant 1 : index
    %c0_60 = arith.constant 0 : index
    %c0_61 = arith.constant 0 : index
    %174 = vector.load %arg5[%c1_59, %c0_60, %c0_61] : memref<2x8x128xf32, #tpu.memory_space<vmem>>, vector<1x8x128xf32>
    %175 = vector.shape_cast %174 : vector<1x8x128xf32> to vector<8x128xf32>
    %176 = vector.extract_strided_slice %175 {offsets = [0, 0], sizes = [1, 96], strides = [1, 1]} : vector<8x128xf32> to vector<1x96xf32>
    %177 = vector.extract_strided_slice %175 {offsets = [1, 0], sizes = [1, 32], strides = [1, 1]} : vector<8x128xf32> to vector<1x32xf32>
    %178 = vector.extract_strided_slice %175 {offsets = [2, 0], sizes = [1, 64], strides = [1, 1]} : vector<8x128xf32> to vector<1x64xf32>
    %179 = vector.extract_strided_slice %175 {offsets = [3, 0], sizes = [1, 32], strides = [1, 1]} : vector<8x128xf32> to vector<1x32xf32>
    %180 = vector.extract_strided_slice %175 {offsets = [4, 0], sizes = [1, 32], strides = [1, 1]} : vector<8x128xf32> to vector<1x32xf32>
    %181 = vector.extract_strided_slice %175 {offsets = [5, 0], sizes = [1, 32], strides = [1, 1]} : vector<8x128xf32> to vector<1x32xf32>
    %182 = vector.extract_strided_slice %175 {offsets = [6, 0], sizes = [1, 32], strides = [1, 1]} : vector<8x128xf32> to vector<1x32xf32>
    %183 = vector.extract_strided_slice %175 {offsets = [7, 0], sizes = [1, 32], strides = [1, 1]} : vector<8x128xf32> to vector<1x32xf32>
    %cst_62 = arith.constant dense<0.000000e+00> : vector<16x96xf32>
    %184 = tpu.matmul %169, %172, %cst_62 {dimension_numbers = #tpu.dot_dimension_numbers<[1], [0], [0], [1], [0, 0, 1, 1], [], []>} : vector<16x32xf32>, vector<32x96xf32>, vector<16x96xf32> -> vector<16x96xf32>
    %185 = vector.broadcast %176 : vector<1x96xf32> to vector<16x96xf32>
    %186 = arith.addf %184, %185 : vector<16x96xf32>
    %187 = vector.extract_strided_slice %186 {offsets = [0, 0], sizes = [16, 32], strides = [1, 1]} : vector<16x96xf32> to vector<16x32xf32>
    %188 = vector.shape_cast %187 : vector<16x32xf32> to vector<2x8x32xf32>
    %189 = vector.extract_strided_slice %186 {offsets = [0, 32], sizes = [16, 32], strides = [1, 1]} : vector<16x96xf32> to vector<16x32xf32>
    %190 = vector.shape_cast %189 : vector<16x32xf32> to vector<2x8x32xf32>
    %191 = vector.extract_strided_slice %186 {offsets = [0, 64], sizes = [16, 32], strides = [1, 1]} : vector<16x96xf32> to vector<16x32xf32>
    %192 = vector.shape_cast %191 : vector<16x32xf32> to vector<2x8x32xf32>
    %193 = vector.extract_strided_slice %188 {offsets = [0, 0, 0], sizes = [2, 8, 8], strides = [1, 1, 1]} : vector<2x8x32xf32> to vector<2x8x8xf32>
    %194 = vector.extract_strided_slice %190 {offsets = [0, 0, 0], sizes = [2, 8, 8], strides = [1, 1, 1]} : vector<2x8x32xf32> to vector<2x8x8xf32>
    %195 = vector.extract_strided_slice %192 {offsets = [0, 0, 0], sizes = [2, 8, 8], strides = [1, 1, 1]} : vector<2x8x32xf32> to vector<2x8x8xf32>
    "tpu.trace_start"() <{level = 10 : i32, message = "bqd,bkd->bqk"}> : () -> ()
    %cst_63 = arith.constant dense<0.000000e+00> : vector<2x8x8xf32>
    %196 = tpu.matmul %193, %194, %cst_63 {dimension_numbers = #tpu.dot_dimension_numbers<[2], [2], [1], [1], [0, 0, 0, 1, 1, 1], [0], [0]>} : vector<2x8x8xf32>, vector<2x8x8xf32>, vector<2x8x8xf32> -> vector<2x8x8xf32>
    "tpu.trace_stop"() : () -> ()
    %197 = vector.broadcast %7 : vector<1x8x8xf32> to vector<2x8x8xf32>
    %198 = arith.addf %196, %197 : vector<2x8x8xf32>
    %cst_64 = arith.constant dense<0xFF800000> : vector<2x8xf32>
    %199 = vector.multi_reduction <maximumf>, %198, %cst_64 [2] : vector<2x8x8xf32> to vector<2x8xf32>
    %200 = vector.shape_cast %199 : vector<2x8xf32> to vector<2x8x1xf32>
    %201 = vector.broadcast %200 : vector<2x8x1xf32> to vector<2x8x8xf32>
    %202 = arith.subf %198, %201 : vector<2x8x8xf32>
    %203 = math.exp %202 : vector<2x8x8xf32>
    %cst_65 = arith.constant dense<0.000000e+00> : vector<2x8xf32>
    %204 = vector.multi_reduction <add>, %203, %cst_65 [2] : vector<2x8x8xf32> to vector<2x8xf32>
    %205 = vector.shape_cast %204 : vector<2x8xf32> to vector<2x8x1xf32>
    %206 = tpu.reciprocal %205 {approx = true} : vector<2x8x1xf32> -> vector<2x8x1xf32>
    %207 = vector.broadcast %206 : vector<2x8x1xf32> to vector<2x8x8xf32>
    %208 = arith.mulf %203, %207 : vector<2x8x8xf32>
    "tpu.trace_start"() <{level = 10 : i32, message = "bqk,bkd->bqd"}> : () -> ()
    %cst_66 = arith.constant dense<0.000000e+00> : vector<2x8x8xf32>
    %209 = tpu.matmul %208, %195, %cst_66 {dimension_numbers = #tpu.dot_dimension_numbers<[2], [1], [1], [2], [0, 0, 0, 1, 1, 2], [0], [0]>} : vector<2x8x8xf32>, vector<2x8x8xf32>, vector<2x8x8xf32> -> vector<2x8x8xf32>
    "tpu.trace_stop"() : () -> ()
    %c0_67 = arith.constant 0 : index
    %c0_68 = arith.constant 0 : index
    %c0_69 = arith.constant 0 : index
    %210 = vector.load %arg9[%c0_67, %c0_68, %c0_69] : memref<2x8x32xf32, #tpu.memory_space<vmem>>, vector<2x8x8xf32>
    tpu.vector_store %arg9[%c0_67, %c0_68, %c0_69], %209 {strides = array<i32>} : memref<2x8x32xf32, #tpu.memory_space<vmem>>, vector<2x8x8xf32>,
    %211 = vector.extract_strided_slice %188 {offsets = [0, 0, 8], sizes = [2, 8, 8], strides = [1, 1, 1]} : vector<2x8x32xf32> to vector<2x8x8xf32>
    %212 = vector.extract_strided_slice %190 {offsets = [0, 0, 8], sizes = [2, 8, 8], strides = [1, 1, 1]} : vector<2x8x32xf32> to vector<2x8x8xf32>
    %213 = vector.extract_strided_slice %192 {offsets = [0, 0, 8], sizes = [2, 8, 8], strides = [1, 1, 1]} : vector<2x8x32xf32> to vector<2x8x8xf32>
    "tpu.trace_start"() <{level = 10 : i32, message = "bqd,bkd->bqk"}> : () -> ()
    %cst_70 = arith.constant dense<0.000000e+00> : vector<2x8x8xf32>
    %214 = tpu.matmul %211, %212, %cst_70 {dimension_numbers = #tpu.dot_dimension_numbers<[2], [2], [1], [1], [0, 0, 0, 1, 1, 1], [0], [0]>} : vector<2x8x8xf32>, vector<2x8x8xf32>, vector<2x8x8xf32> -> vector<2x8x8xf32>
    "tpu.trace_stop"() : () -> ()
    %215 = vector.broadcast %7 : vector<1x8x8xf32> to vector<2x8x8xf32>
    %216 = arith.addf %214, %215 : vector<2x8x8xf32>
    %cst_71 = arith.constant dense<0xFF800000> : vector<2x8xf32>
    %217 = vector.multi_reduction <maximumf>, %216, %cst_71 [2] : vector<2x8x8xf32> to vector<2x8xf32>
    %218 = vector.shape_cast %217 : vector<2x8xf32> to vector<2x8x1xf32>
    %219 = vector.broadcast %218 : vector<2x8x1xf32> to vector<2x8x8xf32>
    %220 = arith.subf %216, %219 : vector<2x8x8xf32>
    %221 = math.exp %220 : vector<2x8x8xf32>
    %cst_72 = arith.constant dense<0.000000e+00> : vector<2x8xf32>
    %222 = vector.multi_reduction <add>, %221, %cst_72 [2] : vector<2x8x8xf32> to vector<2x8xf32>
    %223 = vector.shape_cast %222 : vector<2x8xf32> to vector<2x8x1xf32>
    %224 = tpu.reciprocal %223 {approx = true} : vector<2x8x1xf32> -> vector<2x8x1xf32>
    %225 = vector.broadcast %224 : vector<2x8x1xf32> to vector<2x8x8xf32>
    %226 = arith.mulf %221, %225 : vector<2x8x8xf32>
    "tpu.trace_start"() <{level = 10 : i32, message = "bqk,bkd->bqd"}> : () -> ()
    %cst_73 = arith.constant dense<0.000000e+00> : vector<2x8x8xf32>
    %227 = tpu.matmul %226, %213, %cst_73 {dimension_numbers = #tpu.dot_dimension_numbers<[2], [1], [1], [2], [0, 0, 0, 1, 1, 2], [0], [0]>} : vector<2x8x8xf32>, vector<2x8x8xf32>, vector<2x8x8xf32> -> vector<2x8x8xf32>
    "tpu.trace_stop"() : () -> ()
    %c0_74 = arith.constant 0 : index
    %c0_75 = arith.constant 0 : index
    %c8_76 = arith.constant 8 : index
    %228 = vector.load %arg9[%c0_74, %c0_75, %c8_76] : memref<2x8x32xf32, #tpu.memory_space<vmem>>, vector<2x8x8xf32>
    tpu.vector_store %arg9[%c0_74, %c0_75, %c8_76], %227 {strides = array<i32>} : memref<2x8x32xf32, #tpu.memory_space<vmem>>, vector<2x8x8xf32>,
    %229 = vector.extract_strided_slice %188 {offsets = [0, 0, 16], sizes = [2, 8, 8], strides = [1, 1, 1]} : vector<2x8x32xf32> to vector<2x8x8xf32>
    %230 = vector.extract_strided_slice %190 {offsets = [0, 0, 16], sizes = [2, 8, 8], strides = [1, 1, 1]} : vector<2x8x32xf32> to vector<2x8x8xf32>
    %231 = vector.extract_strided_slice %192 {offsets = [0, 0, 16], sizes = [2, 8, 8], strides = [1, 1, 1]} : vector<2x8x32xf32> to vector<2x8x8xf32>
    "tpu.trace_start"() <{level = 10 : i32, message = "bqd,bkd->bqk"}> : () -> ()
    %cst_77 = arith.constant dense<0.000000e+00> : vector<2x8x8xf32>
    %232 = tpu.matmul %229, %230, %cst_77 {dimension_numbers = #tpu.dot_dimension_numbers<[2], [2], [1], [1], [0, 0, 0, 1, 1, 1], [0], [0]>} : vector<2x8x8xf32>, vector<2x8x8xf32>, vector<2x8x8xf32> -> vector<2x8x8xf32>
    "tpu.trace_stop"() : () -> ()
    %233 = vector.broadcast %7 : vector<1x8x8xf32> to vector<2x8x8xf32>
    %234 = arith.addf %232, %233 : vector<2x8x8xf32>
    %cst_78 = arith.constant dense<0xFF800000> : vector<2x8xf32>
    %235 = vector.multi_reduction <maximumf>, %234, %cst_78 [2] : vector<2x8x8xf32> to vector<2x8xf32>
    %236 = vector.shape_cast %235 : vector<2x8xf32> to vector<2x8x1xf32>
    %237 = vector.broadcast %236 : vector<2x8x1xf32> to vector<2x8x8xf32>
    %238 = arith.subf %234, %237 : vector<2x8x8xf32>
    %239 = math.exp %238 : vector<2x8x8xf32>
    %cst_79 = arith.constant dense<0.000000e+00> : vector<2x8xf32>
    %240 = vector.multi_reduction <add>, %239, %cst_79 [2] : vector<2x8x8xf32> to vector<2x8xf32>
    %241 = vector.shape_cast %240 : vector<2x8xf32> to vector<2x8x1xf32>
    %242 = tpu.reciprocal %241 {approx = true} : vector<2x8x1xf32> -> vector<2x8x1xf32>
    %243 = vector.broadcast %242 : vector<2x8x1xf32> to vector<2x8x8xf32>
    %244 = arith.mulf %239, %243 : vector<2x8x8xf32>
    "tpu.trace_start"() <{level = 10 : i32, message = "bqk,bkd->bqd"}> : () -> ()
    %cst_80 = arith.constant dense<0.000000e+00> : vector<2x8x8xf32>
    %245 = tpu.matmul %244, %231, %cst_80 {dimension_numbers = #tpu.dot_dimension_numbers<[2], [1], [1], [2], [0, 0, 0, 1, 1, 2], [0], [0]>} : vector<2x8x8xf32>, vector<2x8x8xf32>, vector<2x8x8xf32> -> vector<2x8x8xf32>
    "tpu.trace_stop"() : () -> ()
    %c0_81 = arith.constant 0 : index
    %c0_82 = arith.constant 0 : index
    %c16_83 = arith.constant 16 : index
    %246 = vector.load %arg9[%c0_81, %c0_82, %c16_83] : memref<2x8x32xf32, #tpu.memory_space<vmem>>, vector<2x8x8xf32>
    tpu.vector_store %arg9[%c0_81, %c0_82, %c16_83], %245 {strides = array<i32>} : memref<2x8x32xf32, #tpu.memory_space<vmem>>, vector<2x8x8xf32>,
    %247 = vector.extract_strided_slice %188 {offsets = [0, 0, 24], sizes = [2, 8, 8], strides = [1, 1, 1]} : vector<2x8x32xf32> to vector<2x8x8xf32>
    %248 = vector.extract_strided_slice %190 {offsets = [0, 0, 24], sizes = [2, 8, 8], strides = [1, 1, 1]} : vector<2x8x32xf32> to vector<2x8x8xf32>
    %249 = vector.extract_strided_slice %192 {offsets = [0, 0, 24], sizes = [2, 8, 8], strides = [1, 1, 1]} : vector<2x8x32xf32> to vector<2x8x8xf32>
    "tpu.trace_start"() <{level = 10 : i32, message = "bqd,bkd->bqk"}> : () -> ()
    %cst_84 = arith.constant dense<0.000000e+00> : vector<2x8x8xf32>
    %250 = tpu.matmul %247, %248, %cst_84 {dimension_numbers = #tpu.dot_dimension_numbers<[2], [2], [1], [1], [0, 0, 0, 1, 1, 1], [0], [0]>} : vector<2x8x8xf32>, vector<2x8x8xf32>, vector<2x8x8xf32> -> vector<2x8x8xf32>
    "tpu.trace_stop"() : () -> ()
    %251 = vector.broadcast %7 : vector<1x8x8xf32> to vector<2x8x8xf32>
    %252 = arith.addf %250, %251 : vector<2x8x8xf32>
    %cst_85 = arith.constant dense<0xFF800000> : vector<2x8xf32>
    %253 = vector.multi_reduction <maximumf>, %252, %cst_85 [2] : vector<2x8x8xf32> to vector<2x8xf32>
    %254 = vector.shape_cast %253 : vector<2x8xf32> to vector<2x8x1xf32>
    %255 = vector.broadcast %254 : vector<2x8x1xf32> to vector<2x8x8xf32>
    %256 = arith.subf %252, %255 : vector<2x8x8xf32>
    %257 = math.exp %256 : vector<2x8x8xf32>
    %cst_86 = arith.constant dense<0.000000e+00> : vector<2x8xf32>
    %258 = vector.multi_reduction <add>, %257, %cst_86 [2] : vector<2x8x8xf32> to vector<2x8xf32>
    %259 = vector.shape_cast %258 : vector<2x8xf32> to vector<2x8x1xf32>
    %260 = tpu.reciprocal %259 {approx = true} : vector<2x8x1xf32> -> vector<2x8x1xf32>
    %261 = vector.broadcast %260 : vector<2x8x1xf32> to vector<2x8x8xf32>
    %262 = arith.mulf %257, %261 : vector<2x8x8xf32>
    "tpu.trace_start"() <{level = 10 : i32, message = "bqk,bkd->bqd"}> : () -> ()
    %cst_87 = arith.constant dense<0.000000e+00> : vector<2x8x8xf32>
    %263 = tpu.matmul %262, %249, %cst_87 {dimension_numbers = #tpu.dot_dimension_numbers<[2], [1], [1], [2], [0, 0, 0, 1, 1, 2], [0], [0]>} : vector<2x8x8xf32>, vector<2x8x8xf32>, vector<2x8x8xf32> -> vector<2x8x8xf32>
    "tpu.trace_stop"() : () -> ()
    %c0_88 = arith.constant 0 : index
    %c0_89 = arith.constant 0 : index
    %c24_90 = arith.constant 24 : index
    %264 = vector.load %arg9[%c0_88, %c0_89, %c24_90] : memref<2x8x32xf32, #tpu.memory_space<vmem>>, vector<2x8x8xf32>
    tpu.vector_store %arg9[%c0_88, %c0_89, %c24_90], %263 {strides = array<i32>} : memref<2x8x32xf32, #tpu.memory_space<vmem>>, vector<2x8x8xf32>,
    %c0_91 = arith.constant 0 : index
    %c0_92 = arith.constant 0 : index
    %c0_93 = arith.constant 0 : index
    %265 = vector.load %arg9[%c0_91, %c0_92, %c0_93] : memref<2x8x32xf32, #tpu.memory_space<vmem>>, vector<2x8x32xf32>
    %266 = vector.shape_cast %265 : vector<2x8x32xf32> to vector<16x32xf32>
    %cst_94 = arith.constant dense<0.000000e+00> : vector<16x32xf32>
    %267 = tpu.matmul %266, %173, %cst_94 {dimension_numbers = #tpu.dot_dimension_numbers<[1], [0], [0], [1], [0, 0, 1, 1], [], []>} : vector<16x32xf32>, vector<32x32xf32>, vector<16x32xf32> -> vector<16x32xf32>
    %268 = vector.broadcast %177 : vector<1x32xf32> to vector<16x32xf32>
    %269 = arith.addf %267, %268 : vector<16x32xf32>
    %270 = arith.addf %169, %269 : vector<16x32xf32>
    %cst_95 = arith.constant dense<0.000000e+00> : vector<16xf32>
    %271 = vector.multi_reduction <add>, %270, %cst_95 [1] : vector<16x32xf32> to vector<16xf32>
    %272 = vector.shape_cast %271 : vector<16xf32> to vector<16x1xf32>
    %cst_96 = arith.constant 3.200000e+01 : f32
    %273 = vector.broadcast %cst_96 : f32 to vector<16x1xf32>
    %274 = arith.divf %272, %273 : vector<16x1xf32>
    %275 = vector.broadcast %274 : vector<16x1xf32> to vector<16x32xf32>
    %276 = arith.subf %270, %275 : vector<16x32xf32>
    %277 = vector.broadcast %274 : vector<16x1xf32> to vector<16x32xf32>
    %278 = arith.subf %270, %277 : vector<16x32xf32>
    %279 = arith.mulf %276, %278 : vector<16x32xf32>
    %cst_97 = arith.constant dense<0.000000e+00> : vector<16xf32>
    %280 = vector.multi_reduction <add>, %279, %cst_97 [1] : vector<16x32xf32> to vector<16xf32>
    %281 = vector.shape_cast %280 : vector<16xf32> to vector<16x1xf32>
    %cst_98 = arith.constant 3.200000e+01 : f32
    %282 = vector.broadcast %cst_98 : f32 to vector<16x1xf32>
    %283 = arith.divf %281, %282 : vector<16x1xf32>
    %284 = vector.broadcast %274 : vector<16x1xf32> to vector<16x32xf32>
    %285 = arith.subf %270, %284 : vector<16x32xf32>
    %cst_99 = arith.constant 9.99999974E-6 : f32
    %286 = vector.broadcast %cst_99 : f32 to vector<16x1xf32>
    %287 = arith.addf %283, %286 : vector<16x1xf32>
    %288 = math.rsqrt %287 : vector<16x1xf32>
    %289 = vector.broadcast %288 : vector<16x1xf32> to vector<16x32xf32>
    %290 = arith.mulf %285, %289 : vector<16x32xf32>
    %291 = vector.broadcast %180 : vector<1x32xf32> to vector<16x32xf32>
    %292 = arith.mulf %290, %291 : vector<16x32xf32>
    %293 = vector.broadcast %181 : vector<1x32xf32> to vector<16x32xf32>
    %294 = arith.addf %292, %293 : vector<16x32xf32>
    %c1_100 = arith.constant 1 : index
    %c0_101 = arith.constant 0 : index
    %c0_102 = arith.constant 0 : index
    %295 = vector.load %arg3[%c1_100, %c0_101, %c0_102] : memref<2x32x64xf32, #tpu.memory_space<vmem>>, vector<1x32x64xf32>
    %296 = vector.shape_cast %295 : vector<1x32x64xf32> to vector<32x64xf32>
    %cst_103 = arith.constant dense<0.000000e+00> : vector<16x64xf32>
    %297 = tpu.matmul %294, %296, %cst_103 {dimension_numbers = #tpu.dot_dimension_numbers<[1], [0], [0], [1], [0, 0, 1, 1], [], []>} : vector<16x32xf32>, vector<32x64xf32>, vector<16x64xf32> -> vector<16x64xf32>
    %298 = vector.broadcast %178 : vector<1x64xf32> to vector<16x64xf32>
    %299 = arith.addf %297, %298 : vector<16x64xf32>
    %cst_104 = arith.constant 0.000000e+00 : f32
    %300 = vector.broadcast %cst_104 : f32 to vector<16x64xf32>
    %301 = arith.maximumf %299, %300 : vector<16x64xf32>
    %c1_105 = arith.constant 1 : index
    %c0_106 = arith.constant 0 : index
    %c0_107 = arith.constant 0 : index
    %302 = vector.load %arg4[%c1_105, %c0_106, %c0_107] : memref<2x64x32xf32, #tpu.memory_space<vmem>>, vector<1x64x32xf32>
    %303 = vector.shape_cast %302 : vector<1x64x32xf32> to vector<64x32xf32>
    %cst_108 = arith.constant dense<0.000000e+00> : vector<16x32xf32>
    %304 = tpu.matmul %301, %303, %cst_108 {dimension_numbers = #tpu.dot_dimension_numbers<[1], [0], [0], [1], [0, 0, 1, 1], [], []>} : vector<16x64xf32>, vector<64x32xf32>, vector<16x32xf32> -> vector<16x32xf32>
    %305 = vector.broadcast %179 : vector<1x32xf32> to vector<16x32xf32>
    %306 = arith.addf %304, %305 : vector<16x32xf32>
    %307 = arith.addf %294, %306 : vector<16x32xf32>
    %cst_109 = arith.constant dense<0.000000e+00> : vector<16xf32>
    %308 = vector.multi_reduction <add>, %307, %cst_109 [1] : vector<16x32xf32> to vector<16xf32>
    %309 = vector.shape_cast %308 : vector<16xf32> to vector<16x1xf32>
    %cst_110 = arith.constant 3.200000e+01 : f32
    %310 = vector.broadcast %cst_110 : f32 to vector<16x1xf32>
    %311 = arith.divf %309, %310 : vector<16x1xf32>
    %312 = vector.broadcast %311 : vector<16x1xf32> to vector<16x32xf32>
    %313 = arith.subf %307, %312 : vector<16x32xf32>
    %314 = vector.broadcast %311 : vector<16x1xf32> to vector<16x32xf32>
    %315 = arith.subf %307, %314 : vector<16x32xf32>
    %316 = arith.mulf %313, %315 : vector<16x32xf32>
    %cst_111 = arith.constant dense<0.000000e+00> : vector<16xf32>
    %317 = vector.multi_reduction <add>, %316, %cst_111 [1] : vector<16x32xf32> to vector<16xf32>
    %318 = vector.shape_cast %317 : vector<16xf32> to vector<16x1xf32>
    %cst_112 = arith.constant 3.200000e+01 : f32
    %319 = vector.broadcast %cst_112 : f32 to vector<16x1xf32>
    %320 = arith.divf %318, %319 : vector<16x1xf32>
    %321 = vector.broadcast %311 : vector<16x1xf32> to vector<16x32xf32>
    %322 = arith.subf %307, %321 : vector<16x32xf32>
    %cst_113 = arith.constant 9.99999974E-6 : f32
    %323 = vector.broadcast %cst_113 : f32 to vector<16x1xf32>
    %324 = arith.addf %320, %323 : vector<16x1xf32>
    %325 = math.rsqrt %324 : vector<16x1xf32>
    %326 = vector.broadcast %325 : vector<16x1xf32> to vector<16x32xf32>
    %327 = arith.mulf %322, %326 : vector<16x32xf32>
    %328 = vector.broadcast %182 : vector<1x32xf32> to vector<16x32xf32>
    %329 = arith.mulf %327, %328 : vector<16x32xf32>
    %330 = vector.broadcast %183 : vector<1x32xf32> to vector<16x32xf32>
    %331 = arith.addf %329, %330 : vector<16x32xf32>
    %c0_114 = arith.constant 0 : index
    %c0_115 = arith.constant 0 : index
    %332 = vector.load %arg6[%c0_114, %c0_115] : memref<32x128xf32, #tpu.memory_space<vmem>>, vector<32x128xf32>
    %cst_116 = arith.constant dense<0.000000e+00> : vector<16x128xf32>
    %333 = tpu.matmul %331, %332, %cst_116 {dimension_numbers = #tpu.dot_dimension_numbers<[1], [0], [0], [1], [0, 0, 1, 1], [], []>} : vector<16x32xf32>, vector<32x128xf32>, vector<16x128xf32> -> vector<16x128xf32>
    %c0_117 = arith.constant 0 : index
    %c0_118 = arith.constant 0 : index
    %334 = vector.load %arg7[%c0_117, %c0_118] : memref<1x128xf32, #tpu.memory_space<vmem>>, vector<1x128xf32>
    %335 = vector.broadcast %334 : vector<1x128xf32> to vector<16x128xf32>
    %336 = arith.addf %333, %335 : vector<16x128xf32>
    %c0_119 = arith.constant 0 : index
    %c0_120 = arith.constant 0 : index
    %337 = vector.load %arg8[%c0_119, %c0_120] : memref<16x128xf32, #tpu.memory_space<vmem>>, vector<16x128xf32>
    tpu.vector_store %arg8[%c0_119, %c0_120], %336 {strides = array<i32>} : memref<16x128xf32, #tpu.memory_space<vmem>>, vector<16x128xf32>,
    return
  }
  func.func @transform_0(%arg0: i32) -> (i32, i32) {
    %c0_i32 = arith.constant 0 : i32
    %c0_i32_0 = arith.constant 0 : i32
    %c0_i32_1 = arith.constant 0 : i32
    return %c0_i32, %c0_i32_0 : i32, i32
  }
  func.func @transform_1(%arg0: i32) -> (i32, i32, i32) {
    %c0_i32 = arith.constant 0 : i32
    %c0_i32_0 = arith.constant 0 : i32
    %c0_i32_1 = arith.constant 0 : i32
    %c0_i32_2 = arith.constant 0 : i32
    return %c0_i32, %c0_i32_0, %c0_i32_1 : i32, i32, i32
  }
  func.func @transform_2(%arg0: i32) -> (i32, i32, i32) {
    %c0_i32 = arith.constant 0 : i32
    %c0_i32_0 = arith.constant 0 : i32
    %c0_i32_1 = arith.constant 0 : i32
    %c0_i32_2 = arith.constant 0 : i32
    return %c0_i32, %c0_i32_0, %c0_i32_1 : i32, i32, i32
  }
  func.func @transform_3(%arg0: i32) -> (i32, i32, i32) {
    %c0_i32 = arith.constant 0 : i32
    %c0_i32_0 = arith.constant 0 : i32
    %c0_i32_1 = arith.constant 0 : i32
    %c0_i32_2 = arith.constant 0 : i32
    return %c0_i32, %c0_i32_0, %c0_i32_1 : i32, i32, i32
  }
  func.func @transform_4(%arg0: i32) -> (i32, i32, i32) {
    %c0_i32 = arith.constant 0 : i32
    %c0_i32_0 = arith.constant 0 : i32
    %c0_i32_1 = arith.constant 0 : i32
    %c0_i32_2 = arith.constant 0 : i32
    return %c0_i32, %c0_i32_0, %c0_i32_1 : i32, i32, i32
  }
  func.func @transform_5(%arg0: i32) -> (i32, i32) {
    %c0_i32 = arith.constant 0 : i32
    %c0_i32_0 = arith.constant 0 : i32
    %c0_i32_1 = arith.constant 0 : i32
    return %c0_i32, %c0_i32_0 : i32, i32
  }
  func.func @transform_6(%arg0: i32) -> (i32, i32) {
    %c0_i32 = arith.constant 0 : i32
    %c0_i32_0 = arith.constant 0 : i32
    %c0_i32_1 = arith.constant 0 : i32
    return %c0_i32, %c0_i32_0 : i32, i32
  }
  func.func @transform_7(%arg0: i32) -> (i32, i32) {
    %c0_i32 = arith.constant 0 : i32
    %c0_i32_0 = arith.constant 0 : i32
    %c0_i32_1 = arith.constant 0 : i32
    return %c0_i32, %c0_i32_0 : i32, i32
  }
}

</mosaic_0001>

<llo_original>
// kernel: tpu_custom_call.1
$region0: #{tpu_custom_call.1}
  #allocation0 [shape = 'u32[]', space=smem, size = 0x4, offset = 0x4, fixed_abs, tag = 'smem constant byte address 0x4 - core index']
  #allocation1 [shape = 'u32[144,128]{1,0:T(1,128)}', space=vmem, size = 0x12000, scoped, tag = 'internal scratch']
  #allocation2 [shape = 'f32[2,8,32]{2,1,0:T(8,128)}', space=vmem, size = 0x2000, scoped, tag = 'scratch operand']
  %s0 = inlined_call_operand.vmem [shape: f32[16,32], index: 0, kind: input, shape index: {}]
  %s1 = inlined_call_operand.vmem [shape: f32[2,32,128], index: 1, kind: input, shape index: {}]
  %s2 = inlined_call_operand.vmem [shape: f32[2,32,64], index: 2, kind: input, shape index: {}]
  %s3 = inlined_call_operand.vmem [shape: f32[2,64,32], index: 3, kind: input, shape index: {}]
  %s4 = inlined_call_operand.vmem [shape: f32[2,8,128], index: 4, kind: input, shape index: {}]
  %s5 = inlined_call_operand.vmem [shape: f32[32,128], index: 5, kind: input, shape index: {}]
  %s6 = inlined_call_operand.vmem [shape: f32[1,128], index: 6, kind: input, shape index: {}]
  %s7 = inlined_call_operand.hbm [shape: f32[16,128], index: 7, kind: output, shape index: {}]
  %s8 = sld [smem:[#allocation0]]
  $region38: #{tpu_custom_call.1} parent=0
    _
  %s10 = ssub.s32 1, %s8
  %s11 = scalar_select 0, %s10, %s8
  $region1: #{tpu_custom_call.1} parent=0
    #allocation3 [shape = 'u8[8192]{0}', space=vmem, size = 0x2000, scoped, tag = 'output window, operand 0, single buffered']
    #allocation4 [shape = 's32[1]{0}', space=sflag, size = 0x4, scoped, tag = 'scoped memory for tpu_custom_call.1']
    %12 = vsyncpa [#allocation4], 0
    // Predicated region
    $region2: #{tpu_custom_call.1} parent=1 // pred_check
      _
    $region3: #{tpu_custom_call.1} parent=1 // pred_check_branch
      %14 = sbr.rel (0) target = $region5
    $region4: #{tpu_custom_call.1} parent=1 // pred_region
      _
    $region5: #{tpu_custom_call.1} parent=1 // pred_fallthru
      _
    // Predicated region
    $region6: #{tpu_custom_call.1} parent=1 // pred_check
      _
    $region7: #{tpu_custom_call.1} parent=1 // pred_check_branch
      %16 = sbr.rel (0) target = $region9
    $region8: #{tpu_custom_call.1} parent=1 // pred_region
      _
    $region9: #{tpu_custom_call.1} parent=1 // pred_fallthru
      _
    // Predicated region
    $region10: #{tpu_custom_call.1} parent=1 // pred_check
      _
    $region11: #{tpu_custom_call.1} parent=1 // pred_check_branch
      %18 = sbr.rel (0) target = $region13
    $region12: #{tpu_custom_call.1} parent=1 // pred_region
      _
    $region13: #{tpu_custom_call.1} parent=1 // pred_fallthru
      _
    // Predicated region
    $region14: #{tpu_custom_call.1} parent=1 // pred_check
      _
    $region15: #{tpu_custom_call.1} parent=1 // pred_check_branch
      %20 = sbr.rel (0) target = $region17
    $region16: #{tpu_custom_call.1} parent=1 // pred_region
      _
    $region17: #{tpu_custom_call.1} parent=1 // pred_fallthru
      _
    // Predicated region
    $region18: #{tpu_custom_call.1} parent=1 // pred_check
      _
    $region19: #{tpu_custom_call.1} parent=1 // pred_check_branch
      %22 = sbr.rel (0) target = $region21
    $region20: #{tpu_custom_call.1} parent=1 // pred_region
      _
    $region21: #{tpu_custom_call.1} parent=1 // pred_fallthru
      _
    // Predicated region
    $region22: #{tpu_custom_call.1} parent=1 // pred_check
      _
    $region23: #{tpu_custom_call.1} parent=1 // pred_check_branch
      %24 = sbr.rel (0) target = $region25
    $region24: #{tpu_custom_call.1} parent=1 // pred_region
      _
    $region25: #{tpu_custom_call.1} parent=1 // pred_fallthru
      _
    // Predicated region
    $region26: #{tpu_custom_call.1} parent=1 // pred_check
      _
    $region27: #{tpu_custom_call.1} parent=1 // pred_check_branch
      %26 = sbr.rel (0) target = $region29
    $region28: #{tpu_custom_call.1} parent=1 // pred_region
      _
    $region29: #{tpu_custom_call.1} parent=1 // pred_fallthru
      _
    %v27 = vld [vmem:[%s0] sm:$0xff]
    %v28 = vld [vmem:[%s0 + $0x8] sm:$0xff]
    %v29 = vlaneseq
    %v30 = vshrl.u32 %v29, 7
    %v31 = vlaneseq
    %v32 = vand.u32 %v31, 127
    %vm33 = vcmp.gt.s32.totalorder %v32, %v30
    %v34 = vsel %vm33, -inf, 0.0
    %v35 = vld [vmem:[%s1] sm:$0xff]
    %v36 = vld [vmem:[%s1 + $0x8] sm:$0xff]
    %v37 = vld [vmem:[%s1 + $0x10] sm:$0xff]
    %v38 = vld [vmem:[%s1 + $0x18] sm:$0xff]
    %v39 = vld [vmem:[%s4] sm:$0xff]
    %v40 = vlaneseq
    %v41 = vshrl.u32 %v40, 7
    %v42 = vsub.s32 0, %v41
    %v43 = vrot.slane %v39, %v42
    %vm44 = vcmask 261120
    %v46 = vsel %vm44, %v27, 0
    %v49 = vsel %vm44, %v28, 0
    %51 = vmatprep.subr.mxu0 0.0
    %52 = vmatpush1.msra.mxu0 %v35
    %53 = vmatprep.subr.mxu0 0.0
    %54 = vmatpush1.msra.mxu0 %v36
    %55 = vmatprep.subr.mxu0 0.0
    %56 = vmatpush1.msra.mxu0 %v37
    %57 = vmatprep.subr.mxu0 0.0
    %58 = vmatpush1.msra.mxu0 %v38
    %59 = vmatprep.subr.mxu0 0.0
    %60 = vmatpush1.msra.mxu0 0.0
    %61 = vmatprep.subr.mxu0 0.0
    %62 = vmatpush1.msra.mxu0 0.0
    %63 = vmatprep.subr.mxu0 0.0
    %64 = vmatpush1.msra.mxu0 0.0
    %65 = vmatprep.subr.mxu0 0.0
    %66 = vmatpush1.msra.mxu0 0.0
    %67 = vmatprep.subr.mxu0 0.0
    %68 = vmatpush1.msra.mxu0 0.0
    %69 = vmatprep.subr.mxu0 0.0
    %70 = vmatpush1.msra.mxu0 0.0
    %71 = vmatprep.subr.mxu0 0.0
    %72 = vmatpush1.msra.mxu0 0.0
    %73 = vmatprep.subr.mxu0 0.0
    %74 = vmatpush1.msra.mxu0 0.0
    %75 = vmatprep.subr.mxu0 0.0
    %76 = vmatpush1.msra.mxu0 0.0
    %77 = vmatprep.subr.mxu0 0.0
    %78 = vmatpush1.msra.mxu0 0.0
    %79 = vmatprep.subr.mxu0 0.0
    %80 = vmatpush1.msra.mxu0 0.0
    %81 = vmatprep.subr.mxu0 0.0
    %82 = vmatpush1.msra.mxu0 0.0
    %83 = vmatprep.subr.mxu0 0.0
    %84 = vmatpush1.msra.mxu0 0.0
    %85 = vmatprep.subr.mxu0 0.0
    %86 = vmatpush1.msra.mxu0 0.0
    %87 = vmatprep.subr.mxu0 0.0
    %88 = vmatpush1.msra.mxu0 0.0
    %89 = vmatprep.subr.mxu0 0.0
    %90 = vmatpush1.msra.mxu0 0.0
    %91 = vmatprep.subr.mxu0 0.0
    %92 = vmatpush1.msra.mxu0 0.0
    %93 = vmatprep.subr.mxu0 0.0
    %94 = vmatpush1.msra.mxu0 0.0
    %95 = vmatprep.subr.mxu0 0.0
    %96 = vmatpush1.msra.mxu0 0.0
    %97 = vmatprep.subr.mxu0 0.0
    %98 = vmatpush1.msra.mxu0 0.0
    %99 = vmatprep.subr.mxu0 0.0
    %100 = vmatpush1.msra.mxu0 0.0
    %101 = vmatprep.subr.mxu0 0.0
    %102 = vmatpush1.msra.mxu0 0.0
    %103 = vmatprep.subr.mxu0 0.0
    %104 = vmatpush1.msra.mxu0 0.0
    %105 = vmatprep.subr.mxu0 0.0
    %106 = vmatpush1.msra.mxu0 0.0
    %107 = vmatprep.subr.mxu0 0.0
    %108 = vmatpush1.msra.mxu0 0.0
    %109 = vmatprep.subr.mxu0 0.0
    %110 = vmatpush1.msra.mxu0 0.0
    %111 = vmatprep.subr.mxu0 0.0
    %112 = vmatpush1.msra.mxu0 0.0
    %113 = vmatprep.subr.mxu0 0.0
    %114 = vmatpush1.msra.mxu0 0.0
    %115 = vmatprep.mubr.f32.mxu0 0.0
    %116 = vmatmul.mubr.f32.gmra.mrb[0].mxu0 %v46
    %v117 = vpop.f32.mrb[0].mxu0
    %v118 = vadd.f32 %v43, %v117
    %v119 = vpop.f32.mrb[0].mxu0
    %120 = vmatprep.mubr.f32.mxu0 0.0
    %121 = vmatmul.mubr.f32.gmra.mrb[0].mxu0 %v49
    %v122 = vpop.f32.mrb[0].mxu0
    %v123 = vadd.f32 %v43, %v122
    %v124 = vpop.f32.mrb[0].mxu0
    %125 = vdwg.mxu0
    %127 = vrot.lane.b32.xlu0 %v118, 96
    %v128 = vpop.permute.xlu0 %127
    %vm129 = vcmask 64512
    %v130 = vsel %vm129, %v118, 0
    %v132 = vsel %vm129, %v128, 0
    %134 = vmatprep.subr.mxu0 0.0
    %135 = vmatpush1.xpose.msra.mxu0 %v132
    %136 = vmatprep.subr.mxu0 0.0
    %137 = vmatpush1.xpose.msra.mxu0 0.0
    %138 = vmatprep.subr.mxu0 0.0
    %139 = vmatpush1.xpose.msra.mxu0 0.0
    %140 = vmatprep.subr.mxu0 0.0
    %141 = vmatpush1.xpose.msra.mxu0 0.0
    %142 = vmatprep.subr.mxu0 0.0
    %143 = vmatpush1.xpose.msra.mxu0 0.0
    %144 = vmatprep.subr.mxu0 0.0
    %145 = vmatpush1.xpose.msra.mxu0 0.0
    %146 = vmatprep.subr.mxu0 0.0
    %147 = vmatpush1.xpose.msra.mxu0 0.0
    %148 = vmatprep.subr.mxu0 0.0
    %149 = vmatpush1.xpose.msra.mxu0 0.0
    %150 = vmatprep.subr.mxu0 0.0
    %151 = vmatpush1.xpose.msra.mxu0 0.0
    %152 = vmatprep.subr.mxu0 0.0
    %153 = vmatpush1.xpose.msra.mxu0 0.0
    %154 = vmatprep.subr.mxu0 0.0
    %155 = vmatpush1.xpose.msra.mxu0 0.0
    %156 = vmatprep.subr.mxu0 0.0
    %157 = vmatpush1.xpose.msra.mxu0 0.0
    %158 = vmatprep.subr.mxu0 0.0
    %159 = vmatpush1.xpose.msra.mxu0 0.0
    %160 = vmatprep.subr.mxu0 0.0
    %161 = vmatpush1.xpose.msra.mxu0 0.0
    %162 = vmatprep.subr.mxu0 0.0
    %163 = vmatpush1.xpose.msra.mxu0 0.0
    %164 = vmatprep.subr.mxu0 0.0
    %165 = vmatpush1.xpose.msra.mxu0 0.0
    %166 = vmatprep.subr.mxu0 0.0
    %167 = vmatpush1.xpose.msra.mxu0 0.0
    %168 = vmatprep.subr.mxu0 0.0
    %169 = vmatpush1.xpose.msra.mxu0 0.0
    %170 = vmatprep.subr.mxu0 0.0
    %171 = vmatpush1.xpose.msra.mxu0 0.0
    %172 = vmatprep.subr.mxu0 0.0
    %173 = vmatpush1.xpose.msra.mxu0 0.0
    %174 = vmatprep.subr.mxu0 0.0
    %175 = vmatpush1.xpose.msra.mxu0 0.0
    %176 = vmatprep.subr.mxu0 0.0
    %177 = vmatpush1.xpose.msra.mxu0 0.0
    %178 = vmatprep.subr.mxu0 0.0
    %179 = vmatpush1.xpose.msra.mxu0 0.0
    %180 = vmatprep.subr.mxu0 0.0
    %181 = vmatpush1.xpose.msra.mxu0 0.0
    %182 = vmatprep.subr.mxu0 0.0
    %183 = vmatpush1.xpose.msra.mxu0 0.0
    %184 = vmatprep.subr.mxu0 0.0
    %185 = vmatpush1.xpose.msra.mxu0 0.0
    %186 = vmatprep.subr.mxu0 0.0
    %187 = vmatpush1.xpose.msra.mxu0 0.0
    %188 = vmatprep.subr.mxu0 0.0
    %189 = vmatpush1.xpose.msra.mxu0 0.0
    %190 = vmatprep.subr.mxu0 0.0
    %191 = vmatpush1.xpose.msra.mxu0 0.0
    %192 = vmatprep.subr.mxu0 0.0
    %193 = vmatpush1.xpose.msra.mxu0 0.0
    %194 = vmatprep.subr.mxu0 0.0
    %195 = vmatpush1.xpose.msra.mxu0 0.0
    %196 = vmatprep.subr.mxu0 0.0
    %197 = vmatpush1.xpose.msra.mxu0 0.0
    %198 = vmatprep.mubr.f32.mxu0 0.0
    %199 = vmatmul.mubr.f32.gmra.mrb[0].mxu0 %v130
    %v200 = vpop.f32.mrb[0].mxu0
    %v201 = vadd.f32 %v34, %v200
    %v202 = vpop.f32.mrb[0].mxu0
    %203 = vdwg.mxu0
    %205 = vrot.lane.b32.xlu0 %v123, 96
    %v206 = vpop.permute.xlu0 %205
    %v207 = vsel %vm129, %v123, 0
    %v209 = vsel %vm129, %v206, 0
    %211 = vmatprep.subr.mxu0 0.0
    %212 = vmatpush1.xpose.msra.mxu0 %v209
    %213 = vmatprep.subr.mxu0 0.0
    %214 = vmatpush1.xpose.msra.mxu0 0.0
    %215 = vmatprep.subr.mxu0 0.0
    %216 = vmatpush1.xpose.msra.mxu0 0.0
    %217 = vmatprep.subr.mxu0 0.0
    %218 = vmatpush1.xpose.msra.mxu0 0.0
    %219 = vmatprep.subr.mxu0 0.0
    %220 = vmatpush1.xpose.msra.mxu0 0.0
    %221 = vmatprep.subr.mxu0 0.0
    %222 = vmatpush1.xpose.msra.mxu0 0.0
    %223 = vmatprep.subr.mxu0 0.0
    %224 = vmatpush1.xpose.msra.mxu0 0.0
    %225 = vmatprep.subr.mxu0 0.0
    %226 = vmatpush1.xpose.msra.mxu0 0.0
    %227 = vmatprep.subr.mxu0 0.0
    %228 = vmatpush1.xpose.msra.mxu0 0.0
    %229 = vmatprep.subr.mxu0 0.0
    %230 = vmatpush1.xpose.msra.mxu0 0.0
    %231 = vmatprep.subr.mxu0 0.0
    %232 = vmatpush1.xpose.msra.mxu0 0.0
    %233 = vmatprep.subr.mxu0 0.0
    %234 = vmatpush1.xpose.msra.mxu0 0.0
    %235 = vmatprep.subr.mxu0 0.0
    %236 = vmatpush1.xpose.msra.mxu0 0.0
    %237 = vmatprep.subr.mxu0 0.0
    %238 = vmatpush1.xpose.msra.mxu0 0.0
    %239 = vmatprep.subr.mxu0 0.0
    %240 = vmatpush1.xpose.msra.mxu0 0.0
    %241 = vmatprep.subr.mxu0 0.0
    %242 = vmatpush1.xpose.msra.mxu0 0.0
    %243 = vmatprep.subr.mxu0 0.0
    %244 = vmatpush1.xpose.msra.mxu0 0.0
    %245 = vmatprep.subr.mxu0 0.0
    %246 = vmatpush1.xpose.msra.mxu0 0.0
    %247 = vmatprep.subr.mxu0 0.0
    %248 = vmatpush1.xpose.msra.mxu0 0.0
    %249 = vmatprep.subr.mxu0 0.0
    %250 = vmatpush1.xpose.msra.mxu0 0.0
    %251 = vmatprep.subr.mxu0 0.0
    %252 = vmatpush1.xpose.msra.mxu0 0.0
    %253 = vmatprep.subr.mxu0 0.0
    %254 = vmatpush1.xpose.msra.mxu0 0.0
    %255 = vmatprep.subr.mxu0 0.0
    %256 = vmatpush1.xpose.msra.mxu0 0.0
    %257 = vmatprep.subr.mxu0 0.0
    %258 = vmatpush1.xpose.msra.mxu0 0.0
    %259 = vmatprep.subr.mxu0 0.0
    %260 = vmatpush1.xpose.msra.mxu0 0.0
    %261 = vmatprep.subr.mxu0 0.0
    %262 = vmatpush1.xpose.msra.mxu0 0.0
    %263 = vmatprep.subr.mxu0 0.0
    %264 = vmatpush1.xpose.msra.mxu0 0.0
    %265 = vmatprep.subr.mxu0 0.0
    %266 = vmatpush1.xpose.msra.mxu0 0.0
    %267 = vmatprep.subr.mxu0 0.0
    %268 = vmatpush1.xpose.msra.mxu0 0.0
    %269 = vmatprep.subr.mxu0 0.0
    %270 = vmatpush1.xpose.msra.mxu0 0.0
    %271 = vmatprep.subr.mxu0 0.0
    %272 = vmatpush1.xpose.msra.mxu0 0.0
    %273 = vmatprep.subr.mxu0 0.0
    %274 = vmatpush1.xpose.msra.mxu0 0.0
    %275 = vmatprep.mubr.f32.mxu0 0.0
    %276 = vmatmul.mubr.f32.gmra.mrb[0].mxu0 %v207
    %v277 = vpop.f32.mrb[0].mxu0
    %v278 = vadd.f32 %v34, %v277
    %v279 = vpop.f32.mrb[0].mxu0
    %280 = vdwg.mxu0
    %v281 = vsel %vm129, %v201, -inf
    %282 = vmax.xlane.f32.xlu0 %v281
    %v283 = vpop.xlane.xlu0 %282
    %v284 = vsel %vm129, %v278, -inf
    %285 = vmax.xlane.f32.xlu0 %v284
    %v286 = vpop.xlane.xlu0 %285
    %v287 = vsub.f32 %v201, %v283
    %v288 = vsub.f32 %v278, %v286
    %v289 = vmul.f32 %v287, 1.442695
    %v290 = vpow.pop %v289
    %v291 = vmul.f32 %v288, 1.442695
    %v292 = vpow.pop %v291
    %v293 = vsel %vm129, %v290, 0.0
    %294 = vadd.xlane.f32.xlu0 %v293
    %v295 = vpop.xlane.xlu0 %294
    %v296 = vsel %vm129, %v292, 0.0
    %297 = vadd.xlane.f32.xlu0 %v296
    %v298 = vpop.xlane.xlu0 %297
    %v299 = vrcp.pop %v295
    %v300 = vrcp.pop %v298
    %v301 = vmul.f32 %v290, %v299
    %v302 = vmul.f32 %v292, %v300
    %303 = vrot.lane.b32.xlu0 %v118, 64
    %v304 = vpop.permute.xlu0 %303
    %v307 = vsel %vm129, %v301, 0
    %309 = vmatprep.subr.mxu0 0.0
    %310 = vmatpush1.msra.mxu0 %v304
    %311 = vmatprep.subr.mxu0 0.0
    %312 = vmatpush1.msra.mxu0 0.0
    %313 = vmatprep.subr.mxu0 0.0
    %314 = vmatpush1.msra.mxu0 0.0
    %315 = vmatprep.subr.mxu0 0.0
    %316 = vmatpush1.msra.mxu0 0.0
    %317 = vmatprep.subr.mxu0 0.0
    %318 = vmatpush1.msra.mxu0 0.0
    %319 = vmatprep.subr.mxu0 0.0
    %320 = vmatpush1.msra.mxu0 0.0
    %321 = vmatprep.subr.mxu0 0.0
    %322 = vmatpush1.msra.mxu0 0.0
    %323 = vmatprep.subr.mxu0 0.0
    %324 = vmatpush1.msra.mxu0 0.0
    %325 = vmatprep.subr.mxu0 0.0
    %326 = vmatpush1.msra.mxu0 0.0
    %327 = vmatprep.subr.mxu0 0.0
    %328 = vmatpush1.msra.mxu0 0.0
    %329 = vmatprep.subr.mxu0 0.0
    %330 = vmatpush1.msra.mxu0 0.0
    %331 = vmatprep.subr.mxu0 0.0
    %332 = vmatpush1.msra.mxu0 0.0
    %333 = vmatprep.subr.mxu0 0.0
    %334 = vmatpush1.msra.mxu0 0.0
    %335 = vmatprep.subr.mxu0 0.0
    %336 = vmatpush1.msra.mxu0 0.0
    %337 = vmatprep.subr.mxu0 0.0
    %338 = vmatpush1.msra.mxu0 0.0
    %339 = vmatprep.subr.mxu0 0.0
    %340 = vmatpush1.msra.mxu0 0.0
    %341 = vmatprep.subr.mxu0 0.0
    %342 = vmatpush1.msra.mxu0 0.0
    %343 = vmatprep.subr.mxu0 0.0
    %344 = vmatpush1.msra.mxu0 0.0
    %345 = vmatprep.subr.mxu0 0.0
    %346 = vmatpush1.msra.mxu0 0.0
    %347 = vmatprep.subr.mxu0 0.0
    %348 = vmatpush1.msra.mxu0 0.0
    %349 = vmatprep.subr.mxu0 0.0
    %350 = vmatpush1.msra.mxu0 0.0
    %351 = vmatprep.subr.mxu0 0.0
    %352 = vmatpush1.msra.mxu0 0.0
    %353 = vmatprep.subr.mxu0 0.0
    %354 = vmatpush1.msra.mxu0 0.0
    %355 = vmatprep.subr.mxu0 0.0
    %356 = vmatpush1.msra.mxu0 0.0
    %357 = vmatprep.subr.mxu0 0.0
    %358 = vmatpush1.msra.mxu0 0.0
    %359 = vmatprep.subr.mxu0 0.0
    %360 = vmatpush1.msra.mxu0 0.0
    %361 = vmatprep.subr.mxu0 0.0
    %362 = vmatpush1.msra.mxu0 0.0
    %363 = vmatprep.subr.mxu0 0.0
    %364 = vmatpush1.msra.mxu0 0.0
    %365 = vmatprep.subr.mxu0 0.0
    %366 = vmatpush1.msra.mxu0 0.0
    %367 = vmatprep.subr.mxu0 0.0
    %368 = vmatpush1.msra.mxu0 0.0
    %369 = vmatprep.subr.mxu0 0.0
    %370 = vmatpush1.msra.mxu0 0.0
    %371 = vmatprep.subr.mxu0 0.0
    %372 = vmatpush1.msra.mxu0 0.0
    %373 = vmatprep.mubr.f32.mxu0 0.0
    %374 = vmatmul.mubr.f32.gmra.mrb[0].mxu0 %v307
    %v375 = vpop.f32.mrb[0].mxu0
    %v376 = vadd.f32 0.0, %v375
    %v377 = vpop.f32.mrb[0].mxu0
    %378 = vdwg.mxu0
    %379 = vrot.lane.b32.xlu0 %v123, 64
    %v380 = vpop.permute.xlu0 %379
    %v383 = vsel %vm129, %v302, 0
    %385 = vmatprep.subr.mxu0 0.0
    %386 = vmatpush1.msra.mxu0 %v380
    %387 = vmatprep.subr.mxu0 0.0
    %388 = vmatpush1.msra.mxu0 0.0
    %389 = vmatprep.subr.mxu0 0.0
    %390 = vmatpush1.msra.mxu0 0.0
    %391 = vmatprep.subr.mxu0 0.0
    %392 = vmatpush1.msra.mxu0 0.0
    %393 = vmatprep.subr.mxu0 0.0
    %394 = vmatpush1.msra.mxu0 0.0
    %395 = vmatprep.subr.mxu0 0.0
    %396 = vmatpush1.msra.mxu0 0.0
    %397 = vmatprep.subr.mxu0 0.0
    %398 = vmatpush1.msra.mxu0 0.0
    %399 = vmatprep.subr.mxu0 0.0
    %400 = vmatpush1.msra.mxu0 0.0
    %401 = vmatprep.subr.mxu0 0.0
    %402 = vmatpush1.msra.mxu0 0.0
    %403 = vmatprep.subr.mxu0 0.0
    %404 = vmatpush1.msra.mxu0 0.0
    %405 = vmatprep.subr.mxu0 0.0
    %406 = vmatpush1.msra.mxu0 0.0
    %407 = vmatprep.subr.mxu0 0.0
    %408 = vmatpush1.msra.mxu0 0.0
    %409 = vmatprep.subr.mxu0 0.0
    %410 = vmatpush1.msra.mxu0 0.0
    %411 = vmatprep.subr.mxu0 0.0
    %412 = vmatpush1.msra.mxu0 0.0
    %413 = vmatprep.subr.mxu0 0.0
    %414 = vmatpush1.msra.mxu0 0.0
    %415 = vmatprep.subr.mxu0 0.0
    %416 = vmatpush1.msra.mxu0 0.0
    %417 = vmatprep.subr.mxu0 0.0
    %418 = vmatpush1.msra.mxu0 0.0
    %419 = vmatprep.subr.mxu0 0.0
    %420 = vmatpush1.msra.mxu0 0.0
    %421 = vmatprep.subr.mxu0 0.0
    %422 = vmatpush1.msra.mxu0 0.0
    %423 = vmatprep.subr.mxu0 0.0
    %424 = vmatpush1.msra.mxu0 0.0
    %425 = vmatprep.subr.mxu0 0.0
    %426 = vmatpush1.msra.mxu0 0.0
    %427 = vmatprep.subr.mxu0 0.0
    %428 = vmatpush1.msra.mxu0 0.0
    %429 = vmatprep.subr.mxu0 0.0
    %430 = vmatpush1.msra.mxu0 0.0
    %431 = vmatprep.subr.mxu0 0.0
    %432 = vmatpush1.msra.mxu0 0.0
    %433 = vmatprep.subr.mxu0 0.0
    %434 = vmatpush1.msra.mxu0 0.0
    %435 = vmatprep.subr.mxu0 0.0
    %436 = vmatpush1.msra.mxu0 0.0
    %437 = vmatprep.subr.mxu0 0.0
    %438 = vmatpush1.msra.mxu0 0.0
    %439 = vmatprep.subr.mxu0 0.0
    %440 = vmatpush1.msra.mxu0 0.0
    %441 = vmatprep.subr.mxu0 0.0
    %442 = vmatpush1.msra.mxu0 0.0
    %443 = vmatprep.subr.mxu0 0.0
    %444 = vmatpush1.msra.mxu0 0.0
    %445 = vmatprep.subr.mxu0 0.0
    %446 = vmatpush1.msra.mxu0 0.0
    %447 = vmatprep.subr.mxu0 0.0
    %448 = vmatpush1.msra.mxu0 0.0
    %449 = vmatprep.mubr.f32.mxu0 0.0
    %450 = vmatmul.mubr.f32.gmra.mrb[0].mxu0 %v383
    %v451 = vpop.f32.mrb[0].mxu0
    %v452 = vadd.f32 0.0, %v451
    %v453 = vpop.f32.mrb[0].mxu0
    %454 = vdwg.mxu0
    %455 = vst.msk [vmem:[#allocation2] sm:$0xff] %vm129, %v376
    %456 = vst.msk [vmem:[#allocation2 + $0x8] sm:$0xff] %vm129, %v452
    %457 = vrot.lane.b32.xlu0 %v118, 120
    %v458 = vpop.permute.xlu0 %457
    %459 = vrot.lane.b32.xlu0 %v118, 88
    %v460 = vpop.permute.xlu0 %459
    %v461 = vsel %vm129, %v458, 0
    %v463 = vsel %vm129, %v460, 0
    %465 = vmatprep.subr.mxu0 0.0
    %466 = vmatpush1.xpose.msra.mxu0 %v463
    %467 = vmatprep.subr.mxu0 0.0
    %468 = vmatpush1.xpose.msra.mxu0 0.0
    %469 = vmatprep.subr.mxu0 0.0
    %470 = vmatpush1.xpose.msra.mxu0 0.0
    %471 = vmatprep.subr.mxu0 0.0
    %472 = vmatpush1.xpose.msra.mxu0 0.0
    %473 = vmatprep.subr.mxu0 0.0
    %474 = vmatpush1.xpose.msra.mxu0 0.0
    %475 = vmatprep.subr.mxu0 0.0
    %476 = vmatpush1.xpose.msra.mxu0 0.0
    %477 = vmatprep.subr.mxu0 0.0
    %478 = vmatpush1.xpose.msra.mxu0 0.0
    %479 = vmatprep.subr.mxu0 0.0
    %480 = vmatpush1.xpose.msra.mxu0 0.0
    %481 = vmatprep.subr.mxu0 0.0
    %482 = vmatpush1.xpose.msra.mxu0 0.0
    %483 = vmatprep.subr.mxu0 0.0
    %484 = vmatpush1.xpose.msra.mxu0 0.0
    %485 = vmatprep.subr.mxu0 0.0
    %486 = vmatpush1.xpose.msra.mxu0 0.0
    %487 = vmatprep.subr.mxu0 0.0
    %488 = vmatpush1.xpose.msra.mxu0 0.0
    %489 = vmatprep.subr.mxu0 0.0
    %490 = vmatpush1.xpose.msra.mxu0 0.0
    %491 = vmatprep.subr.mxu0 0.0
    %492 = vmatpush1.xpose.msra.mxu0 0.0
    %493 = vmatprep.subr.mxu0 0.0
    %494 = vmatpush1.xpose.msra.mxu0 0.0
    %495 = vmatprep.subr.mxu0 0.0
    %496 = vmatpush1.xpose.msra.mxu0 0.0
    %497 = vmatprep.subr.mxu0 0.0
    %498 = vmatpush1.xpose.msra.mxu0 0.0
    %499 = vmatprep.subr.mxu0 0.0
    %500 = vmatpush1.xpose.msra.mxu0 0.0
    %501 = vmatprep.subr.mxu0 0.0
    %502 = vmatpush1.xpose.msra.mxu0 0.0
    %503 = vmatprep.subr.mxu0 0.0
    %504 = vmatpush1.xpose.msra.mxu0 0.0
    %505 = vmatprep.subr.mxu0 0.0
    %506 = vmatpush1.xpose.msra.mxu0 0.0
    %507 = vmatprep.subr.mxu0 0.0
    %508 = vmatpush1.xpose.msra.mxu0 0.0
    %509 = vmatprep.subr.mxu0 0.0
    %510 = vmatpush1.xpose.msra.mxu0 0.0
    %511 = vmatprep.subr.mxu0 0.0
    %512 = vmatpush1.xpose.msra.mxu0 0.0
    %513 = vmatprep.subr.mxu0 0.0
    %514 = vmatpush1.xpose.msra.mxu0 0.0
    %515 = vmatprep.subr.mxu0 0.0
    %516 = vmatpush1.xpose.msra.mxu0 0.0
    %517 = vmatprep.subr.mxu0 0.0
    %518 = vmatpush1.xpose.msra.mxu0 0.0
    %519 = vmatprep.subr.mxu0 0.0
    %520 = vmatpush1.xpose.msra.mxu0 0.0
    %521 = vmatprep.subr.mxu0 0.0
    %522 = vmatpush1.xpose.msra.mxu0 0.0
    %523 = vmatprep.subr.mxu0 0.0
    %524 = vmatpush1.xpose.msra.mxu0 0.0
    %525 = vmatprep.subr.mxu0 0.0
    %526 = vmatpush1.xpose.msra.mxu0 0.0
    %527 = vmatprep.subr.mxu0 0.0
    %528 = vmatpush1.xpose.msra.mxu0 0.0
    %529 = vmatprep.mubr.f32.mxu0 0.0
    %530 = vmatmul.mubr.f32.gmra.mrb[0].mxu0 %v461
    %v531 = vpop.f32.mrb[0].mxu0
    %v532 = vadd.f32 %v34, %v531
    %v533 = vpop.f32.mrb[0].mxu0
    %534 = vdwg.mxu0
    %535 = vrot.lane.b32.xlu0 %v123, 120
    %v536 = vpop.permute.xlu0 %535
    %537 = vrot.lane.b32.xlu0 %v123, 88
    %v538 = vpop.permute.xlu0 %537
    %v539 = vsel %vm129, %v536, 0
    %v541 = vsel %vm129, %v538, 0
    %543 = vmatprep.subr.mxu0 0.0
    %544 = vmatpush1.xpose.msra.mxu0 %v541
    %545 = vmatprep.subr.mxu0 0.0
    %546 = vmatpush1.xpose.msra.mxu0 0.0
    %547 = vmatprep.subr.mxu0 0.0
    %548 = vmatpush1.xpose.msra.mxu0 0.0
    %549 = vmatprep.subr.mxu0 0.0
    %550 = vmatpush1.xpose.msra.mxu0 0.0
    %551 = vmatprep.subr.mxu0 0.0
    %552 = vmatpush1.xpose.msra.mxu0 0.0
    %553 = vmatprep.subr.mxu0 0.0
    %554 = vmatpush1.xpose.msra.mxu0 0.0
    %555 = vmatprep.subr.mxu0 0.0
    %556 = vmatpush1.xpose.msra.mxu0 0.0
    %557 = vmatprep.subr.mxu0 0.0
    %558 = vmatpush1.xpose.msra.mxu0 0.0
    %559 = vmatprep.subr.mxu0 0.0
    %560 = vmatpush1.xpose.msra.mxu0 0.0
    %561 = vmatprep.subr.mxu0 0.0
    %562 = vmatpush1.xpose.msra.mxu0 0.0
    %563 = vmatprep.subr.mxu0 0.0
    %564 = vmatpush1.xpose.msra.mxu0 0.0
    %565 = vmatprep.subr.mxu0 0.0
    %566 = vmatpush1.xpose.msra.mxu0 0.0
    %567 = vmatprep.subr.mxu0 0.0
    %568 = vmatpush1.xpose.msra.mxu0 0.0
    %569 = vmatprep.subr.mxu0 0.0
    %570 = vmatpush1.xpose.msra.mxu0 0.0
    %571 = vmatprep.subr.mxu0 0.0
    %572 = vmatpush1.xpose.msra.mxu0 0.0
    %573 = vmatprep.subr.mxu0 0.0
    %574 = vmatpush1.xpose.msra.mxu0 0.0
    %575 = vmatprep.subr.mxu0 0.0
    %576 = vmatpush1.xpose.msra.mxu0 0.0
    %577 = vmatprep.subr.mxu0 0.0
    %578 = vmatpush1.xpose.msra.mxu0 0.0
    %579 = vmatprep.subr.mxu0 0.0
    %580 = vmatpush1.xpose.msra.mxu0 0.0
    %581 = vmatprep.subr.mxu0 0.0
    %582 = vmatpush1.xpose.msra.mxu0 0.0
    %583 = vmatprep.subr.mxu0 0.0
    %584 = vmatpush1.xpose.msra.mxu0 0.0
    %585 = vmatprep.subr.mxu0 0.0
    %586 = vmatpush1.xpose.msra.mxu0 0.0
    %587 = vmatprep.subr.mxu0 0.0
    %588 = vmatpush1.xpose.msra.mxu0 0.0
    %589 = vmatprep.subr.mxu0 0.0
    %590 = vmatpush1.xpose.msra.mxu0 0.0
    %591 = vmatprep.subr.mxu0 0.0
    %592 = vmatpush1.xpose.msra.mxu0 0.0
    %593 = vmatprep.subr.mxu0 0.0
    %594 = vmatpush1.xpose.msra.mxu0 0.0
    %595 = vmatprep.subr.mxu0 0.0
    %596 = vmatpush1.xpose.msra.mxu0 0.0
    %597 = vmatprep.subr.mxu0 0.0
    %598 = vmatpush1.xpose.msra.mxu0 0.0
    %599 = vmatprep.subr.mxu0 0.0
    %600 = vmatpush1.xpose.msra.mxu0 0.0
    %601 = vmatprep.subr.mxu0 0.0
    %602 = vmatpush1.xpose.msra.mxu0 0.0
    %603 = vmatprep.subr.mxu0 0.0
    %604 = vmatpush1.xpose.msra.mxu0 0.0
    %605 = vmatprep.subr.mxu0 0.0
    %606 = vmatpush1.xpose.msra.mxu0 0.0
    %607 = vmatprep.mubr.f32.mxu0 0.0
    %608 = vmatmul.mubr.f32.gmra.mrb[0].mxu0 %v539
    %v609 = vpop.f32.mrb[0].mxu0
    %v610 = vadd.f32 %v34, %v609
    %v611 = vpop.f32.mrb[0].mxu0
    %612 = vdwg.mxu0
    %v613 = vsel %vm129, %v532, -inf
    %614 = vmax.xlane.f32.xlu0 %v613
    %v615 = vpop.xlane.xlu0 %614
    %v616 = vsel %vm129, %v610, -inf
    %617 = vmax.xlane.f32.xlu0 %v616
    %v618 = vpop.xlane.xlu0 %617
    %v619 = vsub.f32 %v532, %v615
    %v620 = vsub.f32 %v610, %v618
    %v621 = vmul.f32 %v619, 1.442695
    %v622 = vpow.pop %v621
    %v623 = vmul.f32 %v620, 1.442695
    %v624 = vpow.pop %v623
    %v625 = vsel %vm129, %v622, 0.0
    %626 = vadd.xlane.f32.xlu0 %v625
    %v627 = vpop.xlane.xlu0 %626
    %v628 = vsel %vm129, %v624, 0.0
    %629 = vadd.xlane.f32.xlu0 %v628
    %v630 = vpop.xlane.xlu0 %629
    %v631 = vrcp.pop %v627
    %v632 = vrcp.pop %v630
    %v633 = vmul.f32 %v622, %v631
    %v634 = vmul.f32 %v624, %v632
    %635 = vrot.lane.b32.xlu0 %v118, 56
    %v636 = vpop.permute.xlu0 %635
    %v639 = vsel %vm129, %v633, 0
    %641 = vmatprep.subr.mxu0 0.0
    %642 = vmatpush1.msra.mxu0 %v636
    %643 = vmatprep.subr.mxu0 0.0
    %644 = vmatpush1.msra.mxu0 0.0
    %645 = vmatprep.subr.mxu0 0.0
    %646 = vmatpush1.msra.mxu0 0.0
    %647 = vmatprep.subr.mxu0 0.0
    %648 = vmatpush1.msra.mxu0 0.0
    %649 = vmatprep.subr.mxu0 0.0
    %650 = vmatpush1.msra.mxu0 0.0
    %651 = vmatprep.subr.mxu0 0.0
    %652 = vmatpush1.msra.mxu0 0.0
    %653 = vmatprep.subr.mxu0 0.0
    %654 = vmatpush1.msra.mxu0 0.0
    %655 = vmatprep.subr.mxu0 0.0
    %656 = vmatpush1.msra.mxu0 0.0
    %657 = vmatprep.subr.mxu0 0.0
    %658 = vmatpush1.msra.mxu0 0.0
    %659 = vmatprep.subr.mxu0 0.0
    %660 = vmatpush1.msra.mxu0 0.0
    %661 = vmatprep.subr.mxu0 0.0
    %662 = vmatpush1.msra.mxu0 0.0
    %663 = vmatprep.subr.mxu0 0.0
    %664 = vmatpush1.msra.mxu0 0.0
    %665 = vmatprep.subr.mxu0 0.0
    %666 = vmatpush1.msra.mxu0 0.0
    %667 = vmatprep.subr.mxu0 0.0
    %668 = vmatpush1.msra.mxu0 0.0
    %669 = vmatprep.subr.mxu0 0.0
    %670 = vmatpush1.msra.mxu0 0.0
    %671 = vmatprep.subr.mxu0 0.0
    %672 = vmatpush1.msra.mxu0 0.0
    %673 = vmatprep.subr.mxu0 0.0
    %674 = vmatpush1.msra.mxu0 0.0
    %675 = vmatprep.subr.mxu0 0.0
    %676 = vmatpush1.msra.mxu0 0.0
    %677 = vmatprep.subr.mxu0 0.0
    %678 = vmatpush1.msra.mxu0 0.0
    %679 = vmatprep.subr.mxu0 0.0
    %680 = vmatpush1.msra.mxu0 0.0
    %681 = vmatprep.subr.mxu0 0.0
    %682 = vmatpush1.msra.mxu0 0.0
    %683 = vmatprep.subr.mxu0 0.0
    %684 = vmatpush1.msra.mxu0 0.0
    %685 = vmatprep.subr.mxu0 0.0
    %686 = vmatpush1.msra.mxu0 0.0
    %687 = vmatprep.subr.mxu0 0.0
    %688 = vmatpush1.msra.mxu0 0.0
    %689 = vmatprep.subr.mxu0 0.0
    %690 = vmatpush1.msra.mxu0 0.0
    %691 = vmatprep.subr.mxu0 0.0
    %692 = vmatpush1.msra.mxu0 0.0
    %693 = vmatprep.subr.mxu0 0.0
    %694 = vmatpush1.msra.mxu0 0.0
    %695 = vmatprep.subr.mxu0 0.0
    %696 = vmatpush1.msra.mxu0 0.0
    %697 = vmatprep.subr.mxu0 0.0
    %698 = vmatpush1.msra.mxu0 0.0
    %699 = vmatprep.subr.mxu0 0.0
    %700 = vmatpush1.msra.mxu0 0.0
    %701 = vmatprep.subr.mxu0 0.0
    %702 = vmatpush1.msra.mxu0 0.0
    %703 = vmatprep.subr.mxu0 0.0
    %704 = vmatpush1.msra.mxu0 0.0
    %705 = vmatprep.mubr.f32.mxu0 0.0
    %706 = vmatmul.mubr.f32.gmra.mrb[0].mxu0 %v639
    %v707 = vpop.f32.mrb[0].mxu0
    %v708 = vadd.f32 0.0, %v707
    %v709 = vpop.f32.mrb[0].mxu0
    %710 = vdwg.mxu0
    %711 = vrot.lane.b32.xlu0 %v123, 56
    %v712 = vpop.permute.xlu0 %711
    %v715 = vsel %vm129, %v634, 0
    %717 = vmatprep.subr.mxu0 0.0
    %718 = vmatpush1.msra.mxu0 %v712
    %719 = vmatprep.subr.mxu0 0.0
    %720 = vmatpush1.msra.mxu0 0.0
    %721 = vmatprep.subr.mxu0 0.0
    %722 = vmatpush1.msra.mxu0 0.0
    %723 = vmatprep.subr.mxu0 0.0
    %724 = vmatpush1.msra.mxu0 0.0
    %725 = vmatprep.subr.mxu0 0.0
    %726 = vmatpush1.msra.mxu0 0.0
    %727 = vmatprep.subr.mxu0 0.0
    %728 = vmatpush1.msra.mxu0 0.0
    %729 = vmatprep.subr.mxu0 0.0
    %730 = vmatpush1.msra.mxu0 0.0
    %731 = vmatprep.subr.mxu0 0.0
    %732 = vmatpush1.msra.mxu0 0.0
    %733 = vmatprep.subr.mxu0 0.0
    %734 = vmatpush1.msra.mxu0 0.0
    %735 = vmatprep.subr.mxu0 0.0
    %736 = vmatpush1.msra.mxu0 0.0
    %737 = vmatprep.subr.mxu0 0.0
    %738 = vmatpush1.msra.mxu0 0.0
    %739 = vmatprep.subr.mxu0 0.0
    %740 = vmatpush1.msra.mxu0 0.0
    %741 = vmatprep.subr.mxu0 0.0
    %742 = vmatpush1.msra.mxu0 0.0
    %743 = vmatprep.subr.mxu0 0.0
    %744 = vmatpush1.msra.mxu0 0.0
    %745 = vmatprep.subr.mxu0 0.0
    %746 = vmatpush1.msra.mxu0 0.0
    %747 = vmatprep.subr.mxu0 0.0
    %748 = vmatpush1.msra.mxu0 0.0
    %749 = vmatprep.subr.mxu0 0.0
    %750 = vmatpush1.msra.mxu0 0.0
    %751 = vmatprep.subr.mxu0 0.0
    %752 = vmatpush1.msra.mxu0 0.0
    %753 = vmatprep.subr.mxu0 0.0
    %754 = vmatpush1.msra.mxu0 0.0
    %755 = vmatprep.subr.mxu0 0.0
    %756 = vmatpush1.msra.mxu0 0.0
    %757 = vmatprep.subr.mxu0 0.0
    %758 = vmatpush1.msra.mxu0 0.0
    %759 = vmatprep.subr.mxu0 0.0
    %760 = vmatpush1.msra.mxu0 0.0
    %761 = vmatprep.subr.mxu0 0.0
    %762 = vmatpush1.msra.mxu0 0.0
    %763 = vmatprep.subr.mxu0 0.0
    %764 = vmatpush1.msra.mxu0 0.0
    %765 = vmatprep.subr.mxu0 0.0
    %766 = vmatpush1.msra.mxu0 0.0
    %767 = vmatprep.subr.mxu0 0.0
    %768 = vmatpush1.msra.mxu0 0.0
    %769 = vmatprep.subr.mxu0 0.0
    %770 = vmatpush1.msra.mxu0 0.0
    %771 = vmatprep.subr.mxu0 0.0
    %772 = vmatpush1.msra.mxu0 0.0
    %773 = vmatprep.subr.mxu0 0.0
    %774 = vmatpush1.msra.mxu0 0.0
    %775 = vmatprep.subr.mxu0 0.0
    %776 = vmatpush1.msra.mxu0 0.0
    %777 = vmatprep.subr.mxu0 0.0
    %778 = vmatpush1.msra.mxu0 0.0
    %779 = vmatprep.subr.mxu0 0.0
    %780 = vmatpush1.msra.mxu0 0.0
    %781 = vmatprep.mubr.f32.mxu0 0.0
    %782 = vmatmul.mubr.f32.gmra.mrb[0].mxu0 %v715
    %v783 = vpop.f32.mrb[0].mxu0
    %v784 = vadd.f32 0.0, %v783
    %v785 = vpop.f32.mrb[0].mxu0
    %786 = vdwg.mxu0
    %789 = vrot.lane.b32.xlu0 %v708, 8
    %v790 = vpop.permute.xlu0 %789
    %791 = vrot.lane.b32.xlu0 %v784, 8
    %v792 = vpop.permute.xlu0 %791
    %vm795 = vcmask 130112
    %796 = vst.msk [vmem:[#allocation2] sm:$0xff] %vm795, %v790
    %797 = vst.msk [vmem:[#allocation2 + $0x8] sm:$0xff] %vm795, %v792
    %798 = vrot.lane.b32.xlu0 %v118, 112
    %v799 = vpop.permute.xlu0 %798
    %800 = vrot.lane.b32.xlu0 %v118, 80
    %v801 = vpop.permute.xlu0 %800
    %v802 = vsel %vm129, %v799, 0
    %v804 = vsel %vm129, %v801, 0
    %806 = vmatprep.subr.mxu0 0.0
    %807 = vmatpush1.xpose.msra.mxu0 %v804
    %808 = vmatprep.subr.mxu0 0.0
    %809 = vmatpush1.xpose.msra.mxu0 0.0
    %810 = vmatprep.subr.mxu0 0.0
    %811 = vmatpush1.xpose.msra.mxu0 0.0
    %812 = vmatprep.subr.mxu0 0.0
    %813 = vmatpush1.xpose.msra.mxu0 0.0
    %814 = vmatprep.subr.mxu0 0.0
    %815 = vmatpush1.xpose.msra.mxu0 0.0
    %816 = vmatprep.subr.mxu0 0.0
    %817 = vmatpush1.xpose.msra.mxu0 0.0
    %818 = vmatprep.subr.mxu0 0.0
    %819 = vmatpush1.xpose.msra.mxu0 0.0
    %820 = vmatprep.subr.mxu0 0.0
    %821 = vmatpush1.xpose.msra.mxu0 0.0
    %822 = vmatprep.subr.mxu0 0.0
    %823 = vmatpush1.xpose.msra.mxu0 0.0
    %824 = vmatprep.subr.mxu0 0.0
    %825 = vmatpush1.xpose.msra.mxu0 0.0
    %826 = vmatprep.subr.mxu0 0.0
    %827 = vmatpush1.xpose.msra.mxu0 0.0
    %828 = vmatprep.subr.mxu0 0.0
    %829 = vmatpush1.xpose.msra.mxu0 0.0
    %830 = vmatprep.subr.mxu0 0.0
    %831 = vmatpush1.xpose.msra.mxu0 0.0
    %832 = vmatprep.subr.mxu0 0.0
    %833 = vmatpush1.xpose.msra.mxu0 0.0
    %834 = vmatprep.subr.mxu0 0.0
    %835 = vmatpush1.xpose.msra.mxu0 0.0
    %836 = vmatprep.subr.mxu0 0.0
    %837 = vmatpush1.xpose.msra.mxu0 0.0
    %838 = vmatprep.subr.mxu0 0.0
    %839 = vmatpush1.xpose.msra.mxu0 0.0
    %840 = vmatprep.subr.mxu0 0.0
    %841 = vmatpush1.xpose.msra.mxu0 0.0
    %842 = vmatprep.subr.mxu0 0.0
    %843 = vmatpush1.xpose.msra.mxu0 0.0
    %844 = vmatprep.subr.mxu0 0.0
    %845 = vmatpush1.xpose.msra.mxu0 0.0
    %846 = vmatprep.subr.mxu0 0.0
    %847 = vmatpush1.xpose.msra.mxu0 0.0
    %848 = vmatprep.subr.mxu0 0.0
    %849 = vmatpush1.xpose.msra.mxu0 0.0
    %850 = vmatprep.subr.mxu0 0.0
    %851 = vmatpush1.xpose.msra.mxu0 0.0
    %852 = vmatprep.subr.mxu0 0.0
    %853 = vmatpush1.xpose.msra.mxu0 0.0
    %854 = vmatprep.subr.mxu0 0.0
    %855 = vmatpush1.xpose.msra.mxu0 0.0
    %856 = vmatprep.subr.mxu0 0.0
    %857 = vmatpush1.xpose.msra.mxu0 0.0
    %858 = vmatprep.subr.mxu0 0.0
    %859 = vmatpush1.xpose.msra.mxu0 0.0
    %860 = vmatprep.subr.mxu0 0.0
    %861 = vmatpush1.xpose.msra.mxu0 0.0
    %862 = vmatprep.subr.mxu0 0.0
    %863 = vmatpush1.xpose.msra.mxu0 0.0
    %864 = vmatprep.subr.mxu0 0.0
    %865 = vmatpush1.xpose.msra.mxu0 0.0
    %866 = vmatprep.subr.mxu0 0.0
    %867 = vmatpush1.xpose.msra.mxu0 0.0
    %868 = vmatprep.subr.mxu0 0.0
    %869 = vmatpush1.xpose.msra.mxu0 0.0
    %870 = vmatprep.mubr.f32.mxu0 0.0
    %871 = vmatmul.mubr.f32.gmra.mrb[0].mxu0 %v802
    %v872 = vpop.f32.mrb[0].mxu0
    %v873 = vadd.f32 %v34, %v872
    %v874 = vpop.f32.mrb[0].mxu0
    %875 = vdwg.mxu0
    %876 = vrot.lane.b32.xlu0 %v123, 112
    %v877 = vpop.permute.xlu0 %876
    %878 = vrot.lane.b32.xlu0 %v123, 80
    %v879 = vpop.permute.xlu0 %878
    %v880 = vsel %vm129, %v877, 0
    %v882 = vsel %vm129, %v879, 0
    %884 = vmatprep.subr.mxu0 0.0
    %885 = vmatpush1.xpose.msra.mxu0 %v882
    %886 = vmatprep.subr.mxu0 0.0
    %887 = vmatpush1.xpose.msra.mxu0 0.0
    %888 = vmatprep.subr.mxu0 0.0
    %889 = vmatpush1.xpose.msra.mxu0 0.0
    %890 = vmatprep.subr.mxu0 0.0
    %891 = vmatpush1.xpose.msra.mxu0 0.0
    %892 = vmatprep.subr.mxu0 0.0
    %893 = vmatpush1.xpose.msra.mxu0 0.0
    %894 = vmatprep.subr.mxu0 0.0
    %895 = vmatpush1.xpose.msra.mxu0 0.0
    %896 = vmatprep.subr.mxu0 0.0
    %897 = vmatpush1.xpose.msra.mxu0 0.0
    %898 = vmatprep.subr.mxu0 0.0
    %899 = vmatpush1.xpose.msra.mxu0 0.0
    %900 = vmatprep.subr.mxu0 0.0
    %901 = vmatpush1.xpose.msra.mxu0 0.0
    %902 = vmatprep.subr.mxu0 0.0
    %903 = vmatpush1.xpose.msra.mxu0 0.0
    %904 = vmatprep.subr.mxu0 0.0
    %905 = vmatpush1.xpose.msra.mxu0 0.0
    %906 = vmatprep.subr.mxu0 0.0
    %907 = vmatpush1.xpose.msra.mxu0 0.0
    %908 = vmatprep.subr.mxu0 0.0
    %909 = vmatpush1.xpose.msra.mxu0 0.0
    %910 = vmatprep.subr.mxu0 0.0
    %911 = vmatpush1.xpose.msra.mxu0 0.0
    %912 = vmatprep.subr.mxu0 0.0
    %913 = vmatpush1.xpose.msra.mxu0 0.0
    %914 = vmatprep.subr.mxu0 0.0
    %915 = vmatpush1.xpose.msra.mxu0 0.0
    %916 = vmatprep.subr.mxu0 0.0
    %917 = vmatpush1.xpose.msra.mxu0 0.0
    %918 = vmatprep.subr.mxu0 0.0
    %919 = vmatpush1.xpose.msra.mxu0 0.0
    %920 = vmatprep.subr.mxu0 0.0
    %921 = vmatpush1.xpose.msra.mxu0 0.0
    %922 = vmatprep.subr.mxu0 0.0
    %923 = vmatpush1.xpose.msra.mxu0 0.0
    %924 = vmatprep.subr.mxu0 0.0
    %925 = vmatpush1.xpose.msra.mxu0 0.0
    %926 = vmatprep.subr.mxu0 0.0
    %927 = vmatpush1.xpose.msra.mxu0 0.0
    %928 = vmatprep.subr.mxu0 0.0
    %929 = vmatpush1.xpose.msra.mxu0 0.0
    %930 = vmatprep.subr.mxu0 0.0
    %931 = vmatpush1.xpose.msra.mxu0 0.0
    %932 = vmatprep.subr.mxu0 0.0
    %933 = vmatpush1.xpose.msra.mxu0 0.0
    %934 = vmatprep.subr.mxu0 0.0
    %935 = vmatpush1.xpose.msra.mxu0 0.0
    %936 = vmatprep.subr.mxu0 0.0
    %937 = vmatpush1.xpose.msra.mxu0 0.0
    %938 = vmatprep.subr.mxu0 0.0
    %939 = vmatpush1.xpose.msra.mxu0 0.0
    %940 = vmatprep.subr.mxu0 0.0
    %941 = vmatpush1.xpose.msra.mxu0 0.0
    %942 = vmatprep.subr.mxu0 0.0
    %943 = vmatpush1.xpose.msra.mxu0 0.0
    %944 = vmatprep.subr.mxu0 0.0
    %945 = vmatpush1.xpose.msra.mxu0 0.0
    %946 = vmatprep.subr.mxu0 0.0
    %947 = vmatpush1.xpose.msra.mxu0 0.0
    %948 = vmatprep.mubr.f32.mxu0 0.0
    %949 = vmatmul.mubr.f32.gmra.mrb[0].mxu0 %v880
    %v950 = vpop.f32.mrb[0].mxu0
    %v951 = vadd.f32 %v34, %v950
    %v952 = vpop.f32.mrb[0].mxu0
    %953 = vdwg.mxu0
    %v954 = vsel %vm129, %v873, -inf
    %955 = vmax.xlane.f32.xlu0 %v954
    %v956 = vpop.xlane.xlu0 %955
    %v957 = vsel %vm129, %v951, -inf
    %958 = vmax.xlane.f32.xlu0 %v957
    %v959 = vpop.xlane.xlu0 %958
    %v960 = vsub.f32 %v873, %v956
    %v961 = vsub.f32 %v951, %v959
    %v962 = vmul.f32 %v960, 1.442695
    %v963 = vpow.pop %v962
    %v964 = vmul.f32 %v961, 1.442695
    %v965 = vpow.pop %v964
    %v966 = vsel %vm129, %v963, 0.0
    %967 = vadd.xlane.f32.xlu0 %v966
    %v968 = vpop.xlane.xlu0 %967
    %v969 = vsel %vm129, %v965, 0.0
    %970 = vadd.xlane.f32.xlu0 %v969
    %v971 = vpop.xlane.xlu0 %970
    %v972 = vrcp.pop %v968
    %v973 = vrcp.pop %v971
    %v974 = vmul.f32 %v963, %v972
    %v975 = vmul.f32 %v965, %v973
    %976 = vrot.lane.b32.xlu0 %v118, 48
    %v977 = vpop.permute.xlu0 %976
    %v980 = vsel %vm129, %v974, 0
    %982 = vmatprep.subr.mxu0 0.0
    %983 = vmatpush1.msra.mxu0 %v977
    %984 = vmatprep.subr.mxu0 0.0
    %985 = vmatpush1.msra.mxu0 0.0
    %986 = vmatprep.subr.mxu0 0.0
    %987 = vmatpush1.msra.mxu0 0.0
    %988 = vmatprep.subr.mxu0 0.0
    %989 = vmatpush1.msra.mxu0 0.0
    %990 = vmatprep.subr.mxu0 0.0
    %991 = vmatpush1.msra.mxu0 0.0
    %992 = vmatprep.subr.mxu0 0.0
    %993 = vmatpush1.msra.mxu0 0.0
    %994 = vmatprep.subr.mxu0 0.0
    %995 = vmatpush1.msra.mxu0 0.0
    %996 = vmatprep.subr.mxu0 0.0
    %997 = vmatpush1.msra.mxu0 0.0
    %998 = vmatprep.subr.mxu0 0.0
    %999 = vmatpush1.msra.mxu0 0.0
    %1000 = vmatprep.subr.mxu0 0.0
    %1001 = vmatpush1.msra.mxu0 0.0
    %1002 = vmatprep.subr.mxu0 0.0
    %1003 = vmatpush1.msra.mxu0 0.0
    %1004 = vmatprep.subr.mxu0 0.0
    %1005 = vmatpush1.msra.mxu0 0.0
    %1006 = vmatprep.subr.mxu0 0.0
    %1007 = vmatpush1.msra.mxu0 0.0
    %1008 = vmatprep.subr.mxu0 0.0
    %1009 = vmatpush1.msra.mxu0 0.0
    %1010 = vmatprep.subr.mxu0 0.0
    %1011 = vmatpush1.msra.mxu0 0.0
    %1012 = vmatprep.subr.mxu0 0.0
    %1013 = vmatpush1.msra.mxu0 0.0
    %1014 = vmatprep.subr.mxu0 0.0
    %1015 = vmatpush1.msra.mxu0 0.0
    %1016 = vmatprep.subr.mxu0 0.0
    %1017 = vmatpush1.msra.mxu0 0.0
    %1018 = vmatprep.subr.mxu0 0.0
    %1019 = vmatpush1.msra.mxu0 0.0
    %1020 = vmatprep.subr.mxu0 0.0
    %1021 = vmatpush1.msra.mxu0 0.0
    %1022 = vmatprep.subr.mxu0 0.0
    %1023 = vmatpush1.msra.mxu0 0.0
    %1024 = vmatprep.subr.mxu0 0.0
    %1025 = vmatpush1.msra.mxu0 0.0
    %1026 = vmatprep.subr.mxu0 0.0
    %1027 = vmatpush1.msra.mxu0 0.0
    %1028 = vmatprep.subr.mxu0 0.0
    %1029 = vmatpush1.msra.mxu0 0.0
    %1030 = vmatprep.subr.mxu0 0.0
    %1031 = vmatpush1.msra.mxu0 0.0
    %1032 = vmatprep.subr.mxu0 0.0
    %1033 = vmatpush1.msra.mxu0 0.0
    %1034 = vmatprep.subr.mxu0 0.0
    %1035 = vmatpush1.msra.mxu0 0.0
    %1036 = vmatprep.subr.mxu0 0.0
    %1037 = vmatpush1.msra.mxu0 0.0
    %1038 = vmatprep.subr.mxu0 0.0
    %1039 = vmatpush1.msra.mxu0 0.0
    %1040 = vmatprep.subr.mxu0 0.0
    %1041 = vmatpush1.msra.mxu0 0.0
    %1042 = vmatprep.subr.mxu0 0.0
    %1043 = vmatpush1.msra.mxu0 0.0
    %1044 = vmatprep.subr.mxu0 0.0
    %1045 = vmatpush1.msra.mxu0 0.0
    %1046 = vmatprep.mubr.f32.mxu0 0.0
    %1047 = vmatmul.mubr.f32.gmra.mrb[0].mxu0 %v980
    %v1048 = vpop.f32.mrb[0].mxu0
    %v1049 = vadd.f32 0.0, %v1048
    %v1050 = vpop.f32.mrb[0].mxu0
    %1051 = vdwg.mxu0
    %1052 = vrot.lane.b32.xlu0 %v123, 48
    %v1053 = vpop.permute.xlu0 %1052
    %v1056 = vsel %vm129, %v975, 0
    %1058 = vmatprep.subr.mxu0 0.0
    %1059 = vmatpush1.msra.mxu0 %v1053
    %1060 = vmatprep.subr.mxu0 0.0
    %1061 = vmatpush1.msra.mxu0 0.0
    %1062 = vmatprep.subr.mxu0 0.0
    %1063 = vmatpush1.msra.mxu0 0.0
    %1064 = vmatprep.subr.mxu0 0.0
    %1065 = vmatpush1.msra.mxu0 0.0
    %1066 = vmatprep.subr.mxu0 0.0
    %1067 = vmatpush1.msra.mxu0 0.0
    %1068 = vmatprep.subr.mxu0 0.0
    %1069 = vmatpush1.msra.mxu0 0.0
    %1070 = vmatprep.subr.mxu0 0.0
    %1071 = vmatpush1.msra.mxu0 0.0
    %1072 = vmatprep.subr.mxu0 0.0
    %1073 = vmatpush1.msra.mxu0 0.0
    %1074 = vmatprep.subr.mxu0 0.0
    %1075 = vmatpush1.msra.mxu0 0.0
    %1076 = vmatprep.subr.mxu0 0.0
    %1077 = vmatpush1.msra.mxu0 0.0
    %1078 = vmatprep.subr.mxu0 0.0
    %1079 = vmatpush1.msra.mxu0 0.0
    %1080 = vmatprep.subr.mxu0 0.0
    %1081 = vmatpush1.msra.mxu0 0.0
    %1082 = vmatprep.subr.mxu0 0.0
    %1083 = vmatpush1.msra.mxu0 0.0
    %1084 = vmatprep.subr.mxu0 0.0
    %1085 = vmatpush1.msra.mxu0 0.0
    %1086 = vmatprep.subr.mxu0 0.0
    %1087 = vmatpush1.msra.mxu0 0.0
    %1088 = vmatprep.subr.mxu0 0.0
    %1089 = vmatpush1.msra.mxu0 0.0
    %1090 = vmatprep.subr.mxu0 0.0
    %1091 = vmatpush1.msra.mxu0 0.0
    %1092 = vmatprep.subr.mxu0 0.0
    %1093 = vmatpush1.msra.mxu0 0.0
    %1094 = vmatprep.subr.mxu0 0.0
    %1095 = vmatpush1.msra.mxu0 0.0
    %1096 = vmatprep.subr.mxu0 0.0
    %1097 = vmatpush1.msra.mxu0 0.0
    %1098 = vmatprep.subr.mxu0 0.0
    %1099 = vmatpush1.msra.mxu0 0.0
    %1100 = vmatprep.subr.mxu0 0.0
    %1101 = vmatpush1.msra.mxu0 0.0
    %1102 = vmatprep.subr.mxu0 0.0
    %1103 = vmatpush1.msra.mxu0 0.0
    %1104 = vmatprep.subr.mxu0 0.0
    %1105 = vmatpush1.msra.mxu0 0.0
    %1106 = vmatprep.subr.mxu0 0.0
    %1107 = vmatpush1.msra.mxu0 0.0
    %1108 = vmatprep.subr.mxu0 0.0
    %1109 = vmatpush1.msra.mxu0 0.0
    %1110 = vmatprep.subr.mxu0 0.0
    %1111 = vmatpush1.msra.mxu0 0.0
    %1112 = vmatprep.subr.mxu0 0.0
    %1113 = vmatpush1.msra.mxu0 0.0
    %1114 = vmatprep.subr.mxu0 0.0
    %1115 = vmatpush1.msra.mxu0 0.0
    %1116 = vmatprep.subr.mxu0 0.0
    %1117 = vmatpush1.msra.mxu0 0.0
    %1118 = vmatprep.subr.mxu0 0.0
    %1119 = vmatpush1.msra.mxu0 0.0
    %1120 = vmatprep.subr.mxu0 0.0
    %1121 = vmatpush1.msra.mxu0 0.0
    %1122 = vmatprep.mubr.f32.mxu0 0.0
    %1123 = vmatmul.mubr.f32.gmra.mrb[0].mxu0 %v1056
    %v1124 = vpop.f32.mrb[0].mxu0
    %v1125 = vadd.f32 0.0, %v1124
    %v1126 = vpop.f32.mrb[0].mxu0
    %1127 = vdwg.mxu0
    %1130 = vrot.lane.b32.xlu0 %v1049, 16
    %v1131 = vpop.permute.xlu0 %1130
    %1132 = vrot.lane.b32.xlu0 %v1125, 16
    %v1133 = vpop.permute.xlu0 %1132
    %vm1136 = vcmask 195712
    %1137 = vst.msk [vmem:[#allocation2] sm:$0xff] %vm1136, %v1131
    %1138 = vst.msk [vmem:[#allocation2 + $0x8] sm:$0xff] %vm1136, %v1133
    %1139 = vrot.lane.b32.xlu0 %v118, 104
    %v1140 = vpop.permute.xlu0 %1139
    %1141 = vrot.lane.b32.xlu0 %v118, 72
    %v1142 = vpop.permute.xlu0 %1141
    %v1143 = vsel %vm129, %v1140, 0
    %v1145 = vsel %vm129, %v1142, 0
    %1147 = vmatprep.subr.mxu0 0.0
    %1148 = vmatpush1.xpose.msra.mxu0 %v1145
    %1149 = vmatprep.subr.mxu0 0.0
    %1150 = vmatpush1.xpose.msra.mxu0 0.0
    %1151 = vmatprep.subr.mxu0 0.0
    %1152 = vmatpush1.xpose.msra.mxu0 0.0
    %1153 = vmatprep.subr.mxu0 0.0
    %1154 = vmatpush1.xpose.msra.mxu0 0.0
    %1155 = vmatprep.subr.mxu0 0.0
    %1156 = vmatpush1.xpose.msra.mxu0 0.0
    %1157 = vmatprep.subr.mxu0 0.0
    %1158 = vmatpush1.xpose.msra.mxu0 0.0
    %1159 = vmatprep.subr.mxu0 0.0
    %1160 = vmatpush1.xpose.msra.mxu0 0.0
    %1161 = vmatprep.subr.mxu0 0.0
    %1162 = vmatpush1.xpose.msra.mxu0 0.0
    %1163 = vmatprep.subr.mxu0 0.0
    %1164 = vmatpush1.xpose.msra.mxu0 0.0
    %1165 = vmatprep.subr.mxu0 0.0
    %1166 = vmatpush1.xpose.msra.mxu0 0.0
    %1167 = vmatprep.subr.mxu0 0.0
    %1168 = vmatpush1.xpose.msra.mxu0 0.0
    %1169 = vmatprep.subr.mxu0 0.0
    %1170 = vmatpush1.xpose.msra.mxu0 0.0
    %1171 = vmatprep.subr.mxu0 0.0
    %1172 = vmatpush1.xpose.msra.mxu0 0.0
    %1173 = vmatprep.subr.mxu0 0.0
    %1174 = vmatpush1.xpose.msra.mxu0 0.0
    %1175 = vmatprep.subr.mxu0 0.0
    %1176 = vmatpush1.xpose.msra.mxu0 0.0
    %1177 = vmatprep.subr.mxu0 0.0
    %1178 = vmatpush1.xpose.msra.mxu0 0.0
    %1179 = vmatprep.subr.mxu0 0.0
    %1180 = vmatpush1.xpose.msra.mxu0 0.0
    %1181 = vmatprep.subr.mxu0 0.0
    %1182 = vmatpush1.xpose.msra.mxu0 0.0
    %1183 = vmatprep.subr.mxu0 0.0
    %1184 = vmatpush1.xpose.msra.mxu0 0.0
    %1185 = vmatprep.subr.mxu0 0.0
    %1186 = vmatpush1.xpose.msra.mxu0 0.0
    %1187 = vmatprep.subr.mxu0 0.0
    %1188 = vmatpush1.xpose.msra.mxu0 0.0
    %1189 = vmatprep.subr.mxu0 0.0
    %1190 = vmatpush1.xpose.msra.mxu0 0.0
    %1191 = vmatprep.subr.mxu0 0.0
    %1192 = vmatpush1.xpose.msra.mxu0 0.0
    %1193 = vmatprep.subr.mxu0 0.0
    %1194 = vmatpush1.xpose.msra.mxu0 0.0
    %1195 = vmatprep.subr.mxu0 0.0
    %1196 = vmatpush1.xpose.msra.mxu0 0.0
    %1197 = vmatprep.subr.mxu0 0.0
    %1198 = vmatpush1.xpose.msra.mxu0 0.0
    %1199 = vmatprep.subr.mxu0 0.0
    %1200 = vmatpush1.xpose.msra.mxu0 0.0
    %1201 = vmatprep.subr.mxu0 0.0
    %1202 = vmatpush1.xpose.msra.mxu0 0.0
    %1203 = vmatprep.subr.mxu0 0.0
    %1204 = vmatpush1.xpose.msra.mxu0 0.0
    %1205 = vmatprep.subr.mxu0 0.0
    %1206 = vmatpush1.xpose.msra.mxu0 0.0
    %1207 = vmatprep.subr.mxu0 0.0
    %1208 = vmatpush1.xpose.msra.mxu0 0.0
    %1209 = vmatprep.subr.mxu0 0.0
    %1210 = vmatpush1.xpose.msra.mxu0 0.0
    %1211 = vmatprep.mubr.f32.mxu0 0.0
    %1212 = vmatmul.mubr.f32.gmra.mrb[0].mxu0 %v1143
    %v1213 = vpop.f32.mrb[0].mxu0
    %v1214 = vadd.f32 %v34, %v1213
    %v1215 = vpop.f32.mrb[0].mxu0
    %1216 = vdwg.mxu0
    %1217 = vrot.lane.b32.xlu0 %v123, 104
    %v1218 = vpop.permute.xlu0 %1217
    %1219 = vrot.lane.b32.xlu0 %v123, 72
    %v1220 = vpop.permute.xlu0 %1219
    %v1221 = vsel %vm129, %v1218, 0
    %v1223 = vsel %vm129, %v1220, 0
    %1225 = vmatprep.subr.mxu0 0.0
    %1226 = vmatpush1.xpose.msra.mxu0 %v1223
    %1227 = vmatprep.subr.mxu0 0.0
    %1228 = vmatpush1.xpose.msra.mxu0 0.0
    %1229 = vmatprep.subr.mxu0 0.0
    %1230 = vmatpush1.xpose.msra.mxu0 0.0
    %1231 = vmatprep.subr.mxu0 0.0
    %1232 = vmatpush1.xpose.msra.mxu0 0.0
    %1233 = vmatprep.subr.mxu0 0.0
    %1234 = vmatpush1.xpose.msra.mxu0 0.0
    %1235 = vmatprep.subr.mxu0 0.0
    %1236 = vmatpush1.xpose.msra.mxu0 0.0
    %1237 = vmatprep.subr.mxu0 0.0
    %1238 = vmatpush1.xpose.msra.mxu0 0.0
    %1239 = vmatprep.subr.mxu0 0.0
    %1240 = vmatpush1.xpose.msra.mxu0 0.0
    %1241 = vmatprep.subr.mxu0 0.0
    %1242 = vmatpush1.xpose.msra.mxu0 0.0
    %1243 = vmatprep.subr.mxu0 0.0
    %1244 = vmatpush1.xpose.msra.mxu0 0.0
    %1245 = vmatprep.subr.mxu0 0.0
    %1246 = vmatpush1.xpose.msra.mxu0 0.0
    %1247 = vmatprep.subr.mxu0 0.0
    %1248 = vmatpush1.xpose.msra.mxu0 0.0
    %1249 = vmatprep.subr.mxu0 0.0
    %1250 = vmatpush1.xpose.msra.mxu0 0.0
    %1251 = vmatprep.subr.mxu0 0.0
    %1252 = vmatpush1.xpose.msra.mxu0 0.0
    %1253 = vmatprep.subr.mxu0 0.0
    %1254 = vmatpush1.xpose.msra.mxu0 0.0
    %1255 = vmatprep.subr.mxu0 0.0
    %1256 = vmatpush1.xpose.msra.mxu0 0.0
    %1257 = vmatprep.subr.mxu0 0.0
    %1258 = vmatpush1.xpose.msra.mxu0 0.0
    %1259 = vmatprep.subr.mxu0 0.0
    %1260 = vmatpush1.xpose.msra.mxu0 0.0
    %1261 = vmatprep.subr.mxu0 0.0
    %1262 = vmatpush1.xpose.msra.mxu0 0.0
    %1263 = vmatprep.subr.mxu0 0.0
    %1264 = vmatpush1.xpose.msra.mxu0 0.0
    %1265 = vmatprep.subr.mxu0 0.0
    %1266 = vmatpush1.xpose.msra.mxu0 0.0
    %1267 = vmatprep.subr.mxu0 0.0
    %1268 = vmatpush1.xpose.msra.mxu0 0.0
    %1269 = vmatprep.subr.mxu0 0.0
    %1270 = vmatpush1.xpose.msra.mxu0 0.0
    %1271 = vmatprep.subr.mxu0 0.0
    %1272 = vmatpush1.xpose.msra.mxu0 0.0
    %1273 = vmatprep.subr.mxu0 0.0
    %1274 = vmatpush1.xpose.msra.mxu0 0.0
    %1275 = vmatprep.subr.mxu0 0.0
    %1276 = vmatpush1.xpose.msra.mxu0 0.0
    %1277 = vmatprep.subr.mxu0 0.0
    %1278 = vmatpush1.xpose.msra.mxu0 0.0
    %1279 = vmatprep.subr.mxu0 0.0
    %1280 = vmatpush1.xpose.msra.mxu0 0.0
    %1281 = vmatprep.subr.mxu0 0.0
    %1282 = vmatpush1.xpose.msra.mxu0 0.0
    %1283 = vmatprep.subr.mxu0 0.0
    %1284 = vmatpush1.xpose.msra.mxu0 0.0
    %1285 = vmatprep.subr.mxu0 0.0
    %1286 = vmatpush1.xpose.msra.mxu0 0.0
    %1287 = vmatprep.subr.mxu0 0.0
    %1288 = vmatpush1.xpose.msra.mxu0 0.0
    %1289 = vmatprep.mubr.f32.mxu0 0.0
    %1290 = vmatmul.mubr.f32.gmra.mrb[0].mxu0 %v1221
    %v1291 = vpop.f32.mrb[0].mxu0
    %v1292 = vadd.f32 %v34, %v1291
    %v1293 = vpop.f32.mrb[0].mxu0
    %1294 = vdwg.mxu0
    %v1295 = vsel %vm129, %v1214, -inf
    %1296 = vmax.xlane.f32.xlu0 %v1295
    %v1297 = vpop.xlane.xlu0 %1296
    %v1298 = vsel %vm129, %v1292, -inf
    %1299 = vmax.xlane.f32.xlu0 %v1298
    %v1300 = vpop.xlane.xlu0 %1299
    %v1301 = vsub.f32 %v1214, %v1297
    %v1302 = vsub.f32 %v1292, %v1300
    %v1303 = vmul.f32 %v1301, 1.442695
    %v1304 = vpow.pop %v1303
    %v1305 = vmul.f32 %v1302, 1.442695
    %v1306 = vpow.pop %v1305
    %v1307 = vsel %vm129, %v1304, 0.0
    %1308 = vadd.xlane.f32.xlu0 %v1307
    %v1309 = vpop.xlane.xlu0 %1308
    %v1310 = vsel %vm129, %v1306, 0.0
    %1311 = vadd.xlane.f32.xlu0 %v1310
    %v1312 = vpop.xlane.xlu0 %1311
    %v1313 = vrcp.pop %v1309
    %v1314 = vrcp.pop %v1312
    %v1315 = vmul.f32 %v1304, %v1313
    %v1316 = vmul.f32 %v1306, %v1314
    %1317 = vrot.lane.b32.xlu0 %v118, 40
    %v1318 = vpop.permute.xlu0 %1317
    %v1321 = vsel %vm129, %v1315, 0
    %1323 = vmatprep.subr.mxu0 0.0
    %1324 = vmatpush1.msra.mxu0 %v1318
    %1325 = vmatprep.subr.mxu0 0.0
    %1326 = vmatpush1.msra.mxu0 0.0
    %1327 = vmatprep.subr.mxu0 0.0
    %1328 = vmatpush1.msra.mxu0 0.0
    %1329 = vmatprep.subr.mxu0 0.0
    %1330 = vmatpush1.msra.mxu0 0.0
    %1331 = vmatprep.subr.mxu0 0.0
    %1332 = vmatpush1.msra.mxu0 0.0
    %1333 = vmatprep.subr.mxu0 0.0
    %1334 = vmatpush1.msra.mxu0 0.0
    %1335 = vmatprep.subr.mxu0 0.0
    %1336 = vmatpush1.msra.mxu0 0.0
    %1337 = vmatprep.subr.mxu0 0.0
    %1338 = vmatpush1.msra.mxu0 0.0
    %1339 = vmatprep.subr.mxu0 0.0
    %1340 = vmatpush1.msra.mxu0 0.0
    %1341 = vmatprep.subr.mxu0 0.0
    %1342 = vmatpush1.msra.mxu0 0.0
    %1343 = vmatprep.subr.mxu0 0.0
    %1344 = vmatpush1.msra.mxu0 0.0
    %1345 = vmatprep.subr.mxu0 0.0
    %1346 = vmatpush1.msra.mxu0 0.0
    %1347 = vmatprep.subr.mxu0 0.0
    %1348 = vmatpush1.msra.mxu0 0.0
    %1349 = vmatprep.subr.mxu0 0.0
    %1350 = vmatpush1.msra.mxu0 0.0
    %1351 = vmatprep.subr.mxu0 0.0
    %1352 = vmatpush1.msra.mxu0 0.0
    %1353 = vmatprep.subr.mxu0 0.0
    %1354 = vmatpush1.msra.mxu0 0.0
    %1355 = vmatprep.subr.mxu0 0.0
    %1356 = vmatpush1.msra.mxu0 0.0
    %1357 = vmatprep.subr.mxu0 0.0
    %1358 = vmatpush1.msra.mxu0 0.0
    %1359 = vmatprep.subr.mxu0 0.0
    %1360 = vmatpush1.msra.mxu0 0.0
    %1361 = vmatprep.subr.mxu0 0.0
    %1362 = vmatpush1.msra.mxu0 0.0
    %1363 = vmatprep.subr.mxu0 0.0
    %1364 = vmatpush1.msra.mxu0 0.0
    %1365 = vmatprep.subr.mxu0 0.0
    %1366 = vmatpush1.msra.mxu0 0.0
    %1367 = vmatprep.subr.mxu0 0.0
    %1368 = vmatpush1.msra.mxu0 0.0
    %1369 = vmatprep.subr.mxu0 0.0
    %1370 = vmatpush1.msra.mxu0 0.0
    %1371 = vmatprep.subr.mxu0 0.0
    %1372 = vmatpush1.msra.mxu0 0.0
    %1373 = vmatprep.subr.mxu0 0.0
    %1374 = vmatpush1.msra.mxu0 0.0
    %1375 = vmatprep.subr.mxu0 0.0
    %1376 = vmatpush1.msra.mxu0 0.0
    %1377 = vmatprep.subr.mxu0 0.0
    %1378 = vmatpush1.msra.mxu0 0.0
    %1379 = vmatprep.subr.mxu0 0.0
    %1380 = vmatpush1.msra.mxu0 0.0
    %1381 = vmatprep.subr.mxu0 0.0
    %1382 = vmatpush1.msra.mxu0 0.0
    %1383 = vmatprep.subr.mxu0 0.0
    %1384 = vmatpush1.msra.mxu0 0.0
    %1385 = vmatprep.subr.mxu0 0.0
    %1386 = vmatpush1.msra.mxu0 0.0
    %1387 = vmatprep.mubr.f32.mxu0 0.0
    %1388 = vmatmul.mubr.f32.gmra.mrb[0].mxu0 %v1321
    %v1389 = vpop.f32.mrb[0].mxu0
    %v1390 = vadd.f32 0.0, %v1389
    %v1391 = vpop.f32.mrb[0].mxu0
    %1392 = vdwg.mxu0
    %1393 = vrot.lane.b32.xlu0 %v123, 40
    %v1394 = vpop.permute.xlu0 %1393
    %v1397 = vsel %vm129, %v1316, 0
    %1399 = vmatprep.subr.mxu0 0.0
    %1400 = vmatpush1.msra.mxu0 %v1394
    %1401 = vmatprep.subr.mxu0 0.0
    %1402 = vmatpush1.msra.mxu0 0.0
    %1403 = vmatprep.subr.mxu0 0.0
    %1404 = vmatpush1.msra.mxu0 0.0
    %1405 = vmatprep.subr.mxu0 0.0
    %1406 = vmatpush1.msra.mxu0 0.0
    %1407 = vmatprep.subr.mxu0 0.0
    %1408 = vmatpush1.msra.mxu0 0.0
    %1409 = vmatprep.subr.mxu0 0.0
    %1410 = vmatpush1.msra.mxu0 0.0
    %1411 = vmatprep.subr.mxu0 0.0
    %1412 = vmatpush1.msra.mxu0 0.0
    %1413 = vmatprep.subr.mxu0 0.0
    %1414 = vmatpush1.msra.mxu0 0.0
    %1415 = vmatprep.subr.mxu0 0.0
    %1416 = vmatpush1.msra.mxu0 0.0
    %1417 = vmatprep.subr.mxu0 0.0
    %1418 = vmatpush1.msra.mxu0 0.0
    %1419 = vmatprep.subr.mxu0 0.0
    %1420 = vmatpush1.msra.mxu0 0.0
    %1421 = vmatprep.subr.mxu0 0.0
    %1422 = vmatpush1.msra.mxu0 0.0
    %1423 = vmatprep.subr.mxu0 0.0
    %1424 = vmatpush1.msra.mxu0 0.0
    %1425 = vmatprep.subr.mxu0 0.0
    %1426 = vmatpush1.msra.mxu0 0.0
    %1427 = vmatprep.subr.mxu0 0.0
    %1428 = vmatpush1.msra.mxu0 0.0
    %1429 = vmatprep.subr.mxu0 0.0
    %1430 = vmatpush1.msra.mxu0 0.0
    %1431 = vmatprep.subr.mxu0 0.0
    %1432 = vmatpush1.msra.mxu0 0.0
    %1433 = vmatprep.subr.mxu0 0.0
    %1434 = vmatpush1.msra.mxu0 0.0
    %1435 = vmatprep.subr.mxu0 0.0
    %1436 = vmatpush1.msra.mxu0 0.0
    %1437 = vmatprep.subr.mxu0 0.0
    %1438 = vmatpush1.msra.mxu0 0.0
    %1439 = vmatprep.subr.mxu0 0.0
    %1440 = vmatpush1.msra.mxu0 0.0
    %1441 = vmatprep.subr.mxu0 0.0
    %1442 = vmatpush1.msra.mxu0 0.0
    %1443 = vmatprep.subr.mxu0 0.0
    %1444 = vmatpush1.msra.mxu0 0.0
    %1445 = vmatprep.subr.mxu0 0.0
    %1446 = vmatpush1.msra.mxu0 0.0
    %1447 = vmatprep.subr.mxu0 0.0
    %1448 = vmatpush1.msra.mxu0 0.0
    %1449 = vmatprep.subr.mxu0 0.0
    %1450 = vmatpush1.msra.mxu0 0.0
    %1451 = vmatprep.subr.mxu0 0.0
    %1452 = vmatpush1.msra.mxu0 0.0
    %1453 = vmatprep.subr.mxu0 0.0
    %1454 = vmatpush1.msra.mxu0 0.0
    %1455 = vmatprep.subr.mxu0 0.0
    %1456 = vmatpush1.msra.mxu0 0.0
    %1457 = vmatprep.subr.mxu0 0.0
    %1458 = vmatpush1.msra.mxu0 0.0
    %1459 = vmatprep.subr.mxu0 0.0
    %1460 = vmatpush1.msra.mxu0 0.0
    %1461 = vmatprep.subr.mxu0 0.0
    %1462 = vmatpush1.msra.mxu0 0.0
    %1463 = vmatprep.mubr.f32.mxu0 0.0
    %1464 = vmatmul.mubr.f32.gmra.mrb[0].mxu0 %v1397
    %v1465 = vpop.f32.mrb[0].mxu0
    %v1466 = vadd.f32 0.0, %v1465
    %v1467 = vpop.f32.mrb[0].mxu0
    %1468 = vdwg.mxu0
    %1471 = vrot.lane.b32.xlu0 %v1390, 24
    %v1472 = vpop.permute.xlu0 %1471
    %1473 = vrot.lane.b32.xlu0 %v1466, 24
    %v1474 = vpop.permute.xlu0 %1473
    %vm1477 = vcmask 261312
    %1478 = vst.msk [vmem:[#allocation2] sm:$0xff] %vm1477, %v1472
    %1479 = vst.msk [vmem:[#allocation2 + $0x8] sm:$0xff] %vm1477, %v1474
    %v1480 = vld [vmem:[#allocation2] sm:$0xff]
    %v1481 = vld [vmem:[#allocation2 + $0x8] sm:$0xff]
    %v1482 = vlaneseq
    %v1483 = vshrl.u32 %v1482, 7
    %v1484 = vsub.s32 1, %v1483
    %v1485 = vrot.slane %v39, %v1484
    %1490 = vrot.lane.b32.xlu0 %v35, 32
    %v1491 = vpop.permute.xlu0 %1490
    %1492 = vrot.lane.b32.xlu0 %v36, 32
    %v1493 = vpop.permute.xlu0 %1492
    %1494 = vrot.lane.b32.xlu0 %v37, 32
    %v1495 = vpop.permute.xlu0 %1494
    %1496 = vrot.lane.b32.xlu0 %v38, 32
    %v1497 = vpop.permute.xlu0 %1496
    %v1503 = vsel %vm44, %v1480, 0
    %v1506 = vsel %vm44, %v1481, 0
    %1508 = vmatprep.subr.mxu0 0.0
    %1509 = vmatpush1.msra.mxu0 %v1491
    %1510 = vmatprep.subr.mxu0 0.0
    %1511 = vmatpush1.msra.mxu0 %v1493
    %1512 = vmatprep.subr.mxu0 0.0
    %1513 = vmatpush1.msra.mxu0 %v1495
    %1514 = vmatprep.subr.mxu0 0.0
    %1515 = vmatpush1.msra.mxu0 %v1497
    %1516 = vmatprep.subr.mxu0 0.0
    %1517 = vmatpush1.msra.mxu0 0.0
    %1518 = vmatprep.subr.mxu0 0.0
    %1519 = vmatpush1.msra.mxu0 0.0
    %1520 = vmatprep.subr.mxu0 0.0
    %1521 = vmatpush1.msra.mxu0 0.0
    %1522 = vmatprep.subr.mxu0 0.0
    %1523 = vmatpush1.msra.mxu0 0.0
    %1524 = vmatprep.subr.mxu0 0.0
    %1525 = vmatpush1.msra.mxu0 0.0
    %1526 = vmatprep.subr.mxu0 0.0
    %1527 = vmatpush1.msra.mxu0 0.0
    %1528 = vmatprep.subr.mxu0 0.0
    %1529 = vmatpush1.msra.mxu0 0.0
    %1530 = vmatprep.subr.mxu0 0.0
    %1531 = vmatpush1.msra.mxu0 0.0
    %1532 = vmatprep.subr.mxu0 0.0
    %1533 = vmatpush1.msra.mxu0 0.0
    %1534 = vmatprep.subr.mxu0 0.0
    %1535 = vmatpush1.msra.mxu0 0.0
    %1536 = vmatprep.subr.mxu0 0.0
    %1537 = vmatpush1.msra.mxu0 0.0
    %1538 = vmatprep.subr.mxu0 0.0
    %1539 = vmatpush1.msra.mxu0 0.0
    %1540 = vmatprep.subr.mxu0 0.0
    %1541 = vmatpush1.msra.mxu0 0.0
    %1542 = vmatprep.subr.mxu0 0.0
    %1543 = vmatpush1.msra.mxu0 0.0
    %1544 = vmatprep.subr.mxu0 0.0
    %1545 = vmatpush1.msra.mxu0 0.0
    %1546 = vmatprep.subr.mxu0 0.0
    %1547 = vmatpush1.msra.mxu0 0.0
    %1548 = vmatprep.subr.mxu0 0.0
    %1549 = vmatpush1.msra.mxu0 0.0
    %1550 = vmatprep.subr.mxu0 0.0
    %1551 = vmatpush1.msra.mxu0 0.0
    %1552 = vmatprep.subr.mxu0 0.0
    %1553 = vmatpush1.msra.mxu0 0.0
    %1554 = vmatprep.subr.mxu0 0.0
    %1555 = vmatpush1.msra.mxu0 0.0
    %1556 = vmatprep.subr.mxu0 0.0
    %1557 = vmatpush1.msra.mxu0 0.0
    %1558 = vmatprep.subr.mxu0 0.0
    %1559 = vmatpush1.msra.mxu0 0.0
    %1560 = vmatprep.subr.mxu0 0.0
    %1561 = vmatpush1.msra.mxu0 0.0
    %1562 = vmatprep.subr.mxu0 0.0
    %1563 = vmatpush1.msra.mxu0 0.0
    %1564 = vmatprep.subr.mxu0 0.0
    %1565 = vmatpush1.msra.mxu0 0.0
    %1566 = vmatprep.subr.mxu0 0.0
    %1567 = vmatpush1.msra.mxu0 0.0
    %1568 = vmatprep.subr.mxu0 0.0
    %1569 = vmatpush1.msra.mxu0 0.0
    %1570 = vmatprep.subr.mxu0 0.0
    %1571 = vmatpush1.msra.mxu0 0.0
    %1572 = vmatprep.mubr.f32.mxu0 0.0
    %1573 = vmatmul.mubr.f32.gmra.mrb[0].mxu0 %v1503
    %v1574 = vpop.f32.mrb[0].mxu0
    %v1575 = vadd.f32 %v1485, %v1574
    %v1576 = vpop.f32.mrb[0].mxu0
    %1577 = vmatprep.mubr.f32.mxu0 0.0
    %1578 = vmatmul.mubr.f32.gmra.mrb[0].mxu0 %v1506
    %v1579 = vpop.f32.mrb[0].mxu0
    %v1580 = vadd.f32 %v1485, %v1579
    %v1581 = vpop.f32.mrb[0].mxu0
    %1582 = vdwg.mxu0
    %v1583 = vadd.f32 %v27, %v1575
    %v1584 = vadd.f32 %v28, %v1580
    %v1585 = vsel %vm44, %v1583, 0.0
    %1586 = vadd.xlane.f32.xlu0 %v1585
    %v1587 = vpop.xlane.xlu0 %1586
    %v1588 = vsel %vm44, %v1584, 0.0
    %1589 = vadd.xlane.f32.xlu0 %v1588
    %v1590 = vpop.xlane.xlu0 %1589
    %v1591 = vrcp.pop 32.0
    %v1592 = vmul.f32 %v1587, %v1591
    %v1593 = vmul.f32 %v1590, %v1591
    %v1594 = vsub.f32 %v1583, %v1592
    %v1595 = vsub.f32 %v1584, %v1593
    %v1596 = vmul.f32 %v1594, %v1594
    %v1597 = vmul.f32 %v1595, %v1595
    %v1598 = vsel %vm44, %v1596, 0.0
    %1599 = vadd.xlane.f32.xlu0 %v1598
    %v1600 = vpop.xlane.xlu0 %1599
    %v1601 = vsel %vm44, %v1597, 0.0
    %1602 = vadd.xlane.f32.xlu0 %v1601
    %v1603 = vpop.xlane.xlu0 %1602
    %v1604 = vmul.f32 %v1600, %v1591
    %v1605 = vmul.f32 %v1603, %v1591
    %v1606 = vadd.f32 %v1604, 1e-05
    %v1607 = vadd.f32 %v1605, 1e-05
    %v1608 = vrsqrt.pop %v1606
    %v1609 = vrsqrt.pop %v1607
    %v1610 = vmul.f32 %v1594, %v1608
    %v1611 = vmul.f32 %v1595, %v1609
    %v1612 = vlaneseq
    %v1613 = vshrl.u32 %v1612, 7
    %v1614 = vsub.s32 4, %v1613
    %v1615 = vrot.slane %v39, %v1614
    %v1616 = vmul.f32 %v1610, %v1615
    %v1617 = vmul.f32 %v1611, %v1615
    %v1618 = vlaneseq
    %v1619 = vshrl.u32 %v1618, 7
    %v1620 = vsub.s32 5, %v1619
    %v1621 = vrot.slane %v39, %v1620
    %v1622 = vadd.f32 %v1616, %v1621
    %v1623 = vadd.f32 %v1617, %v1621
    %v1624 = vld [vmem:[%s2] sm:$0xff]
    %v1625 = vld [vmem:[%s2 + $0x8] sm:$0xff]
    %v1626 = vld [vmem:[%s2 + $0x10] sm:$0xff]
    %v1627 = vld [vmem:[%s2 + $0x18] sm:$0xff]
    %v1628 = vlaneseq
    %v1629 = vshrl.u32 %v1628, 7
    %v1630 = vsub.s32 2, %v1629
    %v1631 = vrot.slane %v39, %v1630
    %v1633 = vsel %vm44, %v1622, 0
    %v1636 = vsel %vm44, %v1623, 0
    %1638 = vmatprep.subr.mxu0 0.0
    %1639 = vmatpush1.msra.mxu0 %v1624
    %1640 = vmatprep.subr.mxu0 0.0
    %1641 = vmatpush1.msra.mxu0 %v1625
    %1642 = vmatprep.subr.mxu0 0.0
    %1643 = vmatpush1.msra.mxu0 %v1626
    %1644 = vmatprep.subr.mxu0 0.0
    %1645 = vmatpush1.msra.mxu0 %v1627
    %1646 = vmatprep.subr.mxu0 0.0
    %1647 = vmatpush1.msra.mxu0 0.0
    %1648 = vmatprep.subr.mxu0 0.0
    %1649 = vmatpush1.msra.mxu0 0.0
    %1650 = vmatprep.subr.mxu0 0.0
    %1651 = vmatpush1.msra.mxu0 0.0
    %1652 = vmatprep.subr.mxu0 0.0
    %1653 = vmatpush1.msra.mxu0 0.0
    %1654 = vmatprep.subr.mxu0 0.0
    %1655 = vmatpush1.msra.mxu0 0.0
    %1656 = vmatprep.subr.mxu0 0.0
    %1657 = vmatpush1.msra.mxu0 0.0
    %1658 = vmatprep.subr.mxu0 0.0
    %1659 = vmatpush1.msra.mxu0 0.0
    %1660 = vmatprep.subr.mxu0 0.0
    %1661 = vmatpush1.msra.mxu0 0.0
    %1662 = vmatprep.subr.mxu0 0.0
    %1663 = vmatpush1.msra.mxu0 0.0
    %1664 = vmatprep.subr.mxu0 0.0
    %1665 = vmatpush1.msra.mxu0 0.0
    %1666 = vmatprep.subr.mxu0 0.0
    %1667 = vmatpush1.msra.mxu0 0.0
    %1668 = vmatprep.subr.mxu0 0.0
    %1669 = vmatpush1.msra.mxu0 0.0
    %1670 = vmatprep.subr.mxu0 0.0
    %1671 = vmatpush1.msra.mxu0 0.0
    %1672 = vmatprep.subr.mxu0 0.0
    %1673 = vmatpush1.msra.mxu0 0.0
    %1674 = vmatprep.subr.mxu0 0.0
    %1675 = vmatpush1.msra.mxu0 0.0
    %1676 = vmatprep.subr.mxu0 0.0
    %1677 = vmatpush1.msra.mxu0 0.0
    %1678 = vmatprep.subr.mxu0 0.0
    %1679 = vmatpush1.msra.mxu0 0.0
    %1680 = vmatprep.subr.mxu0 0.0
    %1681 = vmatpush1.msra.mxu0 0.0
    %1682 = vmatprep.subr.mxu0 0.0
    %1683 = vmatpush1.msra.mxu0 0.0
    %1684 = vmatprep.subr.mxu0 0.0
    %1685 = vmatpush1.msra.mxu0 0.0
    %1686 = vmatprep.subr.mxu0 0.0
    %1687 = vmatpush1.msra.mxu0 0.0
    %1688 = vmatprep.subr.mxu0 0.0
    %1689 = vmatpush1.msra.mxu0 0.0
    %1690 = vmatprep.subr.mxu0 0.0
    %1691 = vmatpush1.msra.mxu0 0.0
    %1692 = vmatprep.subr.mxu0 0.0
    %1693 = vmatpush1.msra.mxu0 0.0
    %1694 = vmatprep.subr.mxu0 0.0
    %1695 = vmatpush1.msra.mxu0 0.0
    %1696 = vmatprep.subr.mxu0 0.0
    %1697 = vmatpush1.msra.mxu0 0.0
    %1698 = vmatprep.subr.mxu0 0.0
    %1699 = vmatpush1.msra.mxu0 0.0
    %1700 = vmatprep.subr.mxu0 0.0
    %1701 = vmatpush1.msra.mxu0 0.0
    %1702 = vmatprep.mubr.f32.mxu0 0.0
    %1703 = vmatmul.mubr.f32.gmra.mrb[0].mxu0 %v1633
    %v1704 = vpop.f32.mrb[0].mxu0
    %v1705 = vadd.f32 %v1631, %v1704
    %v1706 = vpop.f32.mrb[0].mxu0
    %1707 = vmatprep.mubr.f32.mxu0 0.0
    %1708 = vmatmul.mubr.f32.gmra.mrb[0].mxu0 %v1636
    %v1709 = vpop.f32.mrb[0].mxu0
    %v1710 = vadd.f32 %v1631, %v1709
    %v1711 = vpop.f32.mrb[0].mxu0
    %1712 = vdwg.mxu0
    %v1713 = vmax.f32 %v1705, 0.0
    %v1714 = vmax.f32 %v1710, 0.0
    %v1715 = vld [vmem:[%s3] sm:$0xff]
    %v1716 = vld [vmem:[%s3 + $0x8] sm:$0xff]
    %v1717 = vld [vmem:[%s3 + $0x10] sm:$0xff]
    %v1718 = vld [vmem:[%s3 + $0x18] sm:$0xff]
    %v1719 = vld [vmem:[%s3 + $0x20] sm:$0xff]
    %v1720 = vld [vmem:[%s3 + $0x28] sm:$0xff]
    %v1721 = vld [vmem:[%s3 + $0x30] sm:$0xff]
    %v1722 = vld [vmem:[%s3 + $0x38] sm:$0xff]
    %v1723 = vlaneseq
    %v1724 = vshrl.u32 %v1723, 7
    %v1725 = vsub.s32 3, %v1724
    %v1726 = vrot.slane %v39, %v1725
    %vm1727 = vcmask 523264
    %v1729 = vsel %vm1727, %v1713, 0
    %v1732 = vsel %vm1727, %v1714, 0
    %1734 = vmatprep.subr.mxu0 0.0
    %1735 = vmatpush1.msra.mxu0 %v1715
    %1736 = vmatprep.subr.mxu0 0.0
    %1737 = vmatpush1.msra.mxu0 %v1716
    %1738 = vmatprep.subr.mxu0 0.0
    %1739 = vmatpush1.msra.mxu0 %v1717
    %1740 = vmatprep.subr.mxu0 0.0
    %1741 = vmatpush1.msra.mxu0 %v1718
    %1742 = vmatprep.subr.mxu0 0.0
    %1743 = vmatpush1.msra.mxu0 %v1719
    %1744 = vmatprep.subr.mxu0 0.0
    %1745 = vmatpush1.msra.mxu0 %v1720
    %1746 = vmatprep.subr.mxu0 0.0
    %1747 = vmatpush1.msra.mxu0 %v1721
    %1748 = vmatprep.subr.mxu0 0.0
    %1749 = vmatpush1.msra.mxu0 %v1722
    %1750 = vmatprep.subr.mxu0 0.0
    %1751 = vmatpush1.msra.mxu0 0.0
    %1752 = vmatprep.subr.mxu0 0.0
    %1753 = vmatpush1.msra.mxu0 0.0
    %1754 = vmatprep.subr.mxu0 0.0
    %1755 = vmatpush1.msra.mxu0 0.0
    %1756 = vmatprep.subr.mxu0 0.0
    %1757 = vmatpush1.msra.mxu0 0.0
    %1758 = vmatprep.subr.mxu0 0.0
    %1759 = vmatpush1.msra.mxu0 0.0
    %1760 = vmatprep.subr.mxu0 0.0
    %1761 = vmatpush1.msra.mxu0 0.0
    %1762 = vmatprep.subr.mxu0 0.0
    %1763 = vmatpush1.msra.mxu0 0.0
    %1764 = vmatprep.subr.mxu0 0.0
    %1765 = vmatpush1.msra.mxu0 0.0
    %1766 = vmatprep.subr.mxu0 0.0
    %1767 = vmatpush1.msra.mxu0 0.0
    %1768 = vmatprep.subr.mxu0 0.0
    %1769 = vmatpush1.msra.mxu0 0.0
    %1770 = vmatprep.subr.mxu0 0.0
    %1771 = vmatpush1.msra.mxu0 0.0
    %1772 = vmatprep.subr.mxu0 0.0
    %1773 = vmatpush1.msra.mxu0 0.0
    %1774 = vmatprep.subr.mxu0 0.0
    %1775 = vmatpush1.msra.mxu0 0.0
    %1776 = vmatprep.subr.mxu0 0.0
    %1777 = vmatpush1.msra.mxu0 0.0
    %1778 = vmatprep.subr.mxu0 0.0
    %1779 = vmatpush1.msra.mxu0 0.0
    %1780 = vmatprep.subr.mxu0 0.0
    %1781 = vmatpush1.msra.mxu0 0.0
    %1782 = vmatprep.subr.mxu0 0.0
    %1783 = vmatpush1.msra.mxu0 0.0
    %1784 = vmatprep.subr.mxu0 0.0
    %1785 = vmatpush1.msra.mxu0 0.0
    %1786 = vmatprep.subr.mxu0 0.0
    %1787 = vmatpush1.msra.mxu0 0.0
    %1788 = vmatprep.subr.mxu0 0.0
    %1789 = vmatpush1.msra.mxu0 0.0
    %1790 = vmatprep.subr.mxu0 0.0
    %1791 = vmatpush1.msra.mxu0 0.0
    %1792 = vmatprep.subr.mxu0 0.0
    %1793 = vmatpush1.msra.mxu0 0.0
    %1794 = vmatprep.subr.mxu0 0.0
    %1795 = vmatpush1.msra.mxu0 0.0
    %1796 = vmatprep.subr.mxu0 0.0
    %1797 = vmatpush1.msra.mxu0 0.0
    %1798 = vmatprep.mubr.f32.mxu0 0.0
    %1799 = vmatmul.mubr.f32.gmra.mrb[0].mxu0 %v1729
    %v1800 = vpop.f32.mrb[0].mxu0
    %v1801 = vadd.f32 %v1726, %v1800
    %v1802 = vpop.f32.mrb[0].mxu0
    %1803 = vmatprep.mubr.f32.mxu0 0.0
    %1804 = vmatmul.mubr.f32.gmra.mrb[0].mxu0 %v1732
    %v1805 = vpop.f32.mrb[0].mxu0
    %v1806 = vadd.f32 %v1726, %v1805
    %v1807 = vpop.f32.mrb[0].mxu0
    %1808 = vdwg.mxu0
    %v1809 = vadd.f32 %v1622, %v1801
    %v1810 = vadd.f32 %v1623, %v1806
    %v1811 = vsel %vm44, %v1809, 0.0
    %1812 = vadd.xlane.f32.xlu0 %v1811
    %v1813 = vpop.xlane.xlu0 %1812
    %v1814 = vsel %vm44, %v1810, 0.0
    %1815 = vadd.xlane.f32.xlu0 %v1814
    %v1816 = vpop.xlane.xlu0 %1815
    %v1817 = vmul.f32 %v1813, %v1591
    %v1818 = vmul.f32 %v1816, %v1591
    %v1819 = vsub.f32 %v1809, %v1817
    %v1820 = vsub.f32 %v1810, %v1818
    %v1821 = vmul.f32 %v1819, %v1819
    %v1822 = vmul.f32 %v1820, %v1820
    %v1823 = vsel %vm44, %v1821, 0.0
    %1824 = vadd.xlane.f32.xlu0 %v1823
    %v1825 = vpop.xlane.xlu0 %1824
    %v1826 = vsel %vm44, %v1822, 0.0
    %1827 = vadd.xlane.f32.xlu0 %v1826
    %v1828 = vpop.xlane.xlu0 %1827
    %v1829 = vmul.f32 %v1825, %v1591
    %v1830 = vmul.f32 %v1828, %v1591
    %v1831 = vadd.f32 %v1829, 1e-05
    %v1832 = vadd.f32 %v1830, 1e-05
    %v1833 = vrsqrt.pop %v1831
    %v1834 = vrsqrt.pop %v1832
    %v1835 = vmul.f32 %v1819, %v1833
    %v1836 = vmul.f32 %v1820, %v1834
    %v1837 = vlaneseq
    %v1838 = vshrl.u32 %v1837, 7
    %v1839 = vsub.s32 6, %v1838
    %v1840 = vrot.slane %v39, %v1839
    %v1841 = vmul.f32 %v1835, %v1840
    %v1842 = vmul.f32 %v1836, %v1840
    %v1843 = vlaneseq
    %v1844 = vshrl.u32 %v1843, 7
    %v1845 = vsub.s32 7, %v1844
    %v1846 = vrot.slane %v39, %v1845
    %v1847 = vadd.f32 %v1841, %v1846
    %v1848 = vadd.f32 %v1842, %v1846
    %s1849 = scalar_lea.vmem %s1, 32
    %v1850 = vld [vmem:[%s1849] sm:$0xff]
    %v1851 = vld [vmem:[%s1849 + $0x8] sm:$0xff]
    %v1852 = vld [vmem:[%s1849 + $0x10] sm:$0xff]
    %v1853 = vld [vmem:[%s1849 + $0x18] sm:$0xff]
    %s1854 = scalar_lea.vmem %s4, 8
    %v1855 = vld [vmem:[%s1854] sm:$0xff]
    %v1856 = vlaneseq
    %v1857 = vshrl.u32 %v1856, 7
    %v1858 = vsub.s32 0, %v1857
    %v1859 = vrot.slane %v1855, %v1858
    %v1861 = vsel %vm44, %v1847, 0
    %v1864 = vsel %vm44, %v1848, 0
    %1866 = vmatprep.subr.mxu0 0.0
    %1867 = vmatpush1.msra.mxu0 %v1850
    %1868 = vmatprep.subr.mxu0 0.0
    %1869 = vmatpush1.msra.mxu0 %v1851
    %1870 = vmatprep.subr.mxu0 0.0
    %1871 = vmatpush1.msra.mxu0 %v1852
    %1872 = vmatprep.subr.mxu0 0.0
    %1873 = vmatpush1.msra.mxu0 %v1853
    %1874 = vmatprep.subr.mxu0 0.0
    %1875 = vmatpush1.msra.mxu0 0.0
    %1876 = vmatprep.subr.mxu0 0.0
    %1877 = vmatpush1.msra.mxu0 0.0
    %1878 = vmatprep.subr.mxu0 0.0
    %1879 = vmatpush1.msra.mxu0 0.0
    %1880 = vmatprep.subr.mxu0 0.0
    %1881 = vmatpush1.msra.mxu0 0.0
    %1882 = vmatprep.subr.mxu0 0.0
    %1883 = vmatpush1.msra.mxu0 0.0
    %1884 = vmatprep.subr.mxu0 0.0
    %1885 = vmatpush1.msra.mxu0 0.0
    %1886 = vmatprep.subr.mxu0 0.0
    %1887 = vmatpush1.msra.mxu0 0.0
    %1888 = vmatprep.subr.mxu0 0.0
    %1889 = vmatpush1.msra.mxu0 0.0
    %1890 = vmatprep.subr.mxu0 0.0
    %1891 = vmatpush1.msra.mxu0 0.0
    %1892 = vmatprep.subr.mxu0 0.0
    %1893 = vmatpush1.msra.mxu0 0.0
    %1894 = vmatprep.subr.mxu0 0.0
    %1895 = vmatpush1.msra.mxu0 0.0
    %1896 = vmatprep.subr.mxu0 0.0
    %1897 = vmatpush1.msra.mxu0 0.0
    %1898 = vmatprep.subr.mxu0 0.0
    %1899 = vmatpush1.msra.mxu0 0.0
    %1900 = vmatprep.subr.mxu0 0.0
    %1901 = vmatpush1.msra.mxu0 0.0
    %1902 = vmatprep.subr.mxu0 0.0
    %1903 = vmatpush1.msra.mxu0 0.0
    %1904 = vmatprep.subr.mxu0 0.0
    %1905 = vmatpush1.msra.mxu0 0.0
    %1906 = vmatprep.subr.mxu0 0.0
    %1907 = vmatpush1.msra.mxu0 0.0
    %1908 = vmatprep.subr.mxu0 0.0
    %1909 = vmatpush1.msra.mxu0 0.0
    %1910 = vmatprep.subr.mxu0 0.0
    %1911 = vmatpush1.msra.mxu0 0.0
    %1912 = vmatprep.subr.mxu0 0.0
    %1913 = vmatpush1.msra.mxu0 0.0
    %1914 = vmatprep.subr.mxu0 0.0
    %1915 = vmatpush1.msra.mxu0 0.0
    %1916 = vmatprep.subr.mxu0 0.0
    %1917 = vmatpush1.msra.mxu0 0.0
    %1918 = vmatprep.subr.mxu0 0.0
    %1919 = vmatpush1.msra.mxu0 0.0
    %1920 = vmatprep.subr.mxu0 0.0
    %1921 = vmatpush1.msra.mxu0 0.0
    %1922 = vmatprep.subr.mxu0 0.0
    %1923 = vmatpush1.msra.mxu0 0.0
    %1924 = vmatprep.subr.mxu0 0.0
    %1925 = vmatpush1.msra.mxu0 0.0
    %1926 = vmatprep.subr.mxu0 0.0
    %1927 = vmatpush1.msra.mxu0 0.0
    %1928 = vmatprep.subr.mxu0 0.0
    %1929 = vmatpush1.msra.mxu0 0.0
    %1930 = vmatprep.mubr.f32.mxu0 0.0
    %1931 = vmatmul.mubr.f32.gmra.mrb[0].mxu0 %v1861
    %v1932 = vpop.f32.mrb[0].mxu0
    %v1933 = vadd.f32 %v1859, %v1932
    %v1934 = vpop.f32.mrb[0].mxu0
    %1935 = vmatprep.mubr.f32.mxu0 0.0
    %1936 = vmatmul.mubr.f32.gmra.mrb[0].mxu0 %v1864
    %v1937 = vpop.f32.mrb[0].mxu0
    %v1938 = vadd.f32 %v1859, %v1937
    %v1939 = vpop.f32.mrb[0].mxu0
    %1940 = vdwg.mxu0
    %1942 = vrot.lane.b32.xlu0 %v1933, 96
    %v1943 = vpop.permute.xlu0 %1942
    %v1944 = vsel %vm129, %v1933, 0
    %v1946 = vsel %vm129, %v1943, 0
    %1948 = vmatprep.subr.mxu0 0.0
    %1949 = vmatpush1.xpose.msra.mxu0 %v1946
    %1950 = vmatprep.subr.mxu0 0.0
    %1951 = vmatpush1.xpose.msra.mxu0 0.0
    %1952 = vmatprep.subr.mxu0 0.0
    %1953 = vmatpush1.xpose.msra.mxu0 0.0
    %1954 = vmatprep.subr.mxu0 0.0
    %1955 = vmatpush1.xpose.msra.mxu0 0.0
    %1956 = vmatprep.subr.mxu0 0.0
    %1957 = vmatpush1.xpose.msra.mxu0 0.0
    %1958 = vmatprep.subr.mxu0 0.0
    %1959 = vmatpush1.xpose.msra.mxu0 0.0
    %1960 = vmatprep.subr.mxu0 0.0
    %1961 = vmatpush1.xpose.msra.mxu0 0.0
    %1962 = vmatprep.subr.mxu0 0.0
    %1963 = vmatpush1.xpose.msra.mxu0 0.0
    %1964 = vmatprep.subr.mxu0 0.0
    %1965 = vmatpush1.xpose.msra.mxu0 0.0
    %1966 = vmatprep.subr.mxu0 0.0
    %1967 = vmatpush1.xpose.msra.mxu0 0.0
    %1968 = vmatprep.subr.mxu0 0.0
    %1969 = vmatpush1.xpose.msra.mxu0 0.0
    %1970 = vmatprep.subr.mxu0 0.0
    %1971 = vmatpush1.xpose.msra.mxu0 0.0
    %1972 = vmatprep.subr.mxu0 0.0
    %1973 = vmatpush1.xpose.msra.mxu0 0.0
    %1974 = vmatprep.subr.mxu0 0.0
    %1975 = vmatpush1.xpose.msra.mxu0 0.0
    %1976 = vmatprep.subr.mxu0 0.0
    %1977 = vmatpush1.xpose.msra.mxu0 0.0
    %1978 = vmatprep.subr.mxu0 0.0
    %1979 = vmatpush1.xpose.msra.mxu0 0.0
    %1980 = vmatprep.subr.mxu0 0.0
    %1981 = vmatpush1.xpose.msra.mxu0 0.0
    %1982 = vmatprep.subr.mxu0 0.0
    %1983 = vmatpush1.xpose.msra.mxu0 0.0
    %1984 = vmatprep.subr.mxu0 0.0
    %1985 = vmatpush1.xpose.msra.mxu0 0.0
    %1986 = vmatprep.subr.mxu0 0.0
    %1987 = vmatpush1.xpose.msra.mxu0 0.0
    %1988 = vmatprep.subr.mxu0 0.0
    %1989 = vmatpush1.xpose.msra.mxu0 0.0
    %1990 = vmatprep.subr.mxu0 0.0
    %1991 = vmatpush1.xpose.msra.mxu0 0.0
    %1992 = vmatprep.subr.mxu0 0.0
    %1993 = vmatpush1.xpose.msra.mxu0 0.0
    %1994 = vmatprep.subr.mxu0 0.0
    %1995 = vmatpush1.xpose.msra.mxu0 0.0
    %1996 = vmatprep.subr.mxu0 0.0
    %1997 = vmatpush1.xpose.msra.mxu0 0.0
    %1998 = vmatprep.subr.mxu0 0.0
    %1999 = vmatpush1.xpose.msra.mxu0 0.0
    %2000 = vmatprep.subr.mxu0 0.0
    %2001 = vmatpush1.xpose.msra.mxu0 0.0
    %2002 = vmatprep.subr.mxu0 0.0
    %2003 = vmatpush1.xpose.msra.mxu0 0.0
    %2004 = vmatprep.subr.mxu0 0.0
    %2005 = vmatpush1.xpose.msra.mxu0 0.0
    %2006 = vmatprep.subr.mxu0 0.0
    %2007 = vmatpush1.xpose.msra.mxu0 0.0
    %2008 = vmatprep.subr.mxu0 0.0
    %2009 = vmatpush1.xpose.msra.mxu0 0.0
    %2010 = vmatprep.subr.mxu0 0.0
    %2011 = vmatpush1.xpose.msra.mxu0 0.0
    %2012 = vmatprep.mubr.f32.mxu0 0.0
    %2013 = vmatmul.mubr.f32.gmra.mrb[0].mxu0 %v1944
    %v2014 = vpop.f32.mrb[0].mxu0
    %v2015 = vadd.f32 %v34, %v2014
    %v2016 = vpop.f32.mrb[0].mxu0
    %2017 = vdwg.mxu0
    %2019 = vrot.lane.b32.xlu0 %v1938, 96
    %v2020 = vpop.permute.xlu0 %2019
    %v2021 = vsel %vm129, %v1938, 0
    %v2023 = vsel %vm129, %v2020, 0
    %2025 = vmatprep.subr.mxu0 0.0
    %2026 = vmatpush1.xpose.msra.mxu0 %v2023
    %2027 = vmatprep.subr.mxu0 0.0
    %2028 = vmatpush1.xpose.msra.mxu0 0.0
    %2029 = vmatprep.subr.mxu0 0.0
    %2030 = vmatpush1.xpose.msra.mxu0 0.0
    %2031 = vmatprep.subr.mxu0 0.0
    %2032 = vmatpush1.xpose.msra.mxu0 0.0
    %2033 = vmatprep.subr.mxu0 0.0
    %2034 = vmatpush1.xpose.msra.mxu0 0.0
    %2035 = vmatprep.subr.mxu0 0.0
    %2036 = vmatpush1.xpose.msra.mxu0 0.0
    %2037 = vmatprep.subr.mxu0 0.0
    %2038 = vmatpush1.xpose.msra.mxu0 0.0
    %2039 = vmatprep.subr.mxu0 0.0
    %2040 = vmatpush1.xpose.msra.mxu0 0.0
    %2041 = vmatprep.subr.mxu0 0.0
    %2042 = vmatpush1.xpose.msra.mxu0 0.0
    %2043 = vmatprep.subr.mxu0 0.0
    %2044 = vmatpush1.xpose.msra.mxu0 0.0
    %2045 = vmatprep.subr.mxu0 0.0
    %2046 = vmatpush1.xpose.msra.mxu0 0.0
    %2047 = vmatprep.subr.mxu0 0.0
    %2048 = vmatpush1.xpose.msra.mxu0 0.0
    %2049 = vmatprep.subr.mxu0 0.0
    %2050 = vmatpush1.xpose.msra.mxu0 0.0
    %2051 = vmatprep.subr.mxu0 0.0
    %2052 = vmatpush1.xpose.msra.mxu0 0.0
    %2053 = vmatprep.subr.mxu0 0.0
    %2054 = vmatpush1.xpose.msra.mxu0 0.0
    %2055 = vmatprep.subr.mxu0 0.0
    %2056 = vmatpush1.xpose.msra.mxu0 0.0
    %2057 = vmatprep.subr.mxu0 0.0
    %2058 = vmatpush1.xpose.msra.mxu0 0.0
    %2059 = vmatprep.subr.mxu0 0.0
    %2060 = vmatpush1.xpose.msra.mxu0 0.0
    %2061 = vmatprep.subr.mxu0 0.0
    %2062 = vmatpush1.xpose.msra.mxu0 0.0
    %2063 = vmatprep.subr.mxu0 0.0
    %2064 = vmatpush1.xpose.msra.mxu0 0.0
    %2065 = vmatprep.subr.mxu0 0.0
    %2066 = vmatpush1.xpose.msra.mxu0 0.0
    %2067 = vmatprep.subr.mxu0 0.0
    %2068 = vmatpush1.xpose.msra.mxu0 0.0
    %2069 = vmatprep.subr.mxu0 0.0
    %2070 = vmatpush1.xpose.msra.mxu0 0.0
    %2071 = vmatprep.subr.mxu0 0.0
    %2072 = vmatpush1.xpose.msra.mxu0 0.0
    %2073 = vmatprep.subr.mxu0 0.0
    %2074 = vmatpush1.xpose.msra.mxu0 0.0
    %2075 = vmatprep.subr.mxu0 0.0
    %2076 = vmatpush1.xpose.msra.mxu0 0.0
    %2077 = vmatprep.subr.mxu0 0.0
    %2078 = vmatpush1.xpose.msra.mxu0 0.0
    %2079 = vmatprep.subr.mxu0 0.0
    %2080 = vmatpush1.xpose.msra.mxu0 0.0
    %2081 = vmatprep.subr.mxu0 0.0
    %2082 = vmatpush1.xpose.msra.mxu0 0.0
    %2083 = vmatprep.subr.mxu0 0.0
    %2084 = vmatpush1.xpose.msra.mxu0 0.0
    %2085 = vmatprep.subr.mxu0 0.0
    %2086 = vmatpush1.xpose.msra.mxu0 0.0
    %2087 = vmatprep.subr.mxu0 0.0
    %2088 = vmatpush1.xpose.msra.mxu0 0.0
    %2089 = vmatprep.mubr.f32.mxu0 0.0
    %2090 = vmatmul.mubr.f32.gmra.mrb[0].mxu0 %v2021
    %v2091 = vpop.f32.mrb[0].mxu0
    %v2092 = vadd.f32 %v34, %v2091
    %v2093 = vpop.f32.mrb[0].mxu0
    %2094 = vdwg.mxu0
    %v2095 = vsel %vm129, %v2015, -inf
    %2096 = vmax.xlane.f32.xlu0 %v2095
    %v2097 = vpop.xlane.xlu0 %2096
    %v2098 = vsel %vm129, %v2092, -inf
    %2099 = vmax.xlane.f32.xlu0 %v2098
    %v2100 = vpop.xlane.xlu0 %2099
    %v2101 = vsub.f32 %v2015, %v2097
    %v2102 = vsub.f32 %v2092, %v2100
    %v2103 = vmul.f32 %v2101, 1.442695
    %v2104 = vpow.pop %v2103
    %v2105 = vmul.f32 %v2102, 1.442695
    %v2106 = vpow.pop %v2105
    %v2107 = vsel %vm129, %v2104, 0.0
    %2108 = vadd.xlane.f32.xlu0 %v2107
    %v2109 = vpop.xlane.xlu0 %2108
    %v2110 = vsel %vm129, %v2106, 0.0
    %2111 = vadd.xlane.f32.xlu0 %v2110
    %v2112 = vpop.xlane.xlu0 %2111
    %v2113 = vrcp.pop %v2109
    %v2114 = vrcp.pop %v2112
    %v2115 = vmul.f32 %v2104, %v2113
    %v2116 = vmul.f32 %v2106, %v2114
    %2117 = vrot.lane.b32.xlu0 %v1933, 64
    %v2118 = vpop.permute.xlu0 %2117
    %v2121 = vsel %vm129, %v2115, 0
    %2123 = vmatprep.subr.mxu0 0.0
    %2124 = vmatpush1.msra.mxu0 %v2118
    %2125 = vmatprep.subr.mxu0 0.0
    %2126 = vmatpush1.msra.mxu0 0.0
    %2127 = vmatprep.subr.mxu0 0.0
    %2128 = vmatpush1.msra.mxu0 0.0
    %2129 = vmatprep.subr.mxu0 0.0
    %2130 = vmatpush1.msra.mxu0 0.0
    %2131 = vmatprep.subr.mxu0 0.0
    %2132 = vmatpush1.msra.mxu0 0.0
    %2133 = vmatprep.subr.mxu0 0.0
    %2134 = vmatpush1.msra.mxu0 0.0
    %2135 = vmatprep.subr.mxu0 0.0
    %2136 = vmatpush1.msra.mxu0 0.0
    %2137 = vmatprep.subr.mxu0 0.0
    %2138 = vmatpush1.msra.mxu0 0.0
    %2139 = vmatprep.subr.mxu0 0.0
    %2140 = vmatpush1.msra.mxu0 0.0
    %2141 = vmatprep.subr.mxu0 0.0
    %2142 = vmatpush1.msra.mxu0 0.0
    %2143 = vmatprep.subr.mxu0 0.0
    %2144 = vmatpush1.msra.mxu0 0.0
    %2145 = vmatprep.subr.mxu0 0.0
    %2146 = vmatpush1.msra.mxu0 0.0
    %2147 = vmatprep.subr.mxu0 0.0
    %2148 = vmatpush1.msra.mxu0 0.0
    %2149 = vmatprep.subr.mxu0 0.0
    %2150 = vmatpush1.msra.mxu0 0.0
    %2151 = vmatprep.subr.mxu0 0.0
    %2152 = vmatpush1.msra.mxu0 0.0
    %2153 = vmatprep.subr.mxu0 0.0
    %2154 = vmatpush1.msra.mxu0 0.0
    %2155 = vmatprep.subr.mxu0 0.0
    %2156 = vmatpush1.msra.mxu0 0.0
    %2157 = vmatprep.subr.mxu0 0.0
    %2158 = vmatpush1.msra.mxu0 0.0
    %2159 = vmatprep.subr.mxu0 0.0
    %2160 = vmatpush1.msra.mxu0 0.0
    %2161 = vmatprep.subr.mxu0 0.0
    %2162 = vmatpush1.msra.mxu0 0.0
    %2163 = vmatprep.subr.mxu0 0.0
    %2164 = vmatpush1.msra.mxu0 0.0
    %2165 = vmatprep.subr.mxu0 0.0
    %2166 = vmatpush1.msra.mxu0 0.0
    %2167 = vmatprep.subr.mxu0 0.0
    %2168 = vmatpush1.msra.mxu0 0.0
    %2169 = vmatprep.subr.mxu0 0.0
    %2170 = vmatpush1.msra.mxu0 0.0
    %2171 = vmatprep.subr.mxu0 0.0
    %2172 = vmatpush1.msra.mxu0 0.0
    %2173 = vmatprep.subr.mxu0 0.0
    %2174 = vmatpush1.msra.mxu0 0.0
    %2175 = vmatprep.subr.mxu0 0.0
    %2176 = vmatpush1.msra.mxu0 0.0
    %2177 = vmatprep.subr.mxu0 0.0
    %2178 = vmatpush1.msra.mxu0 0.0
    %2179 = vmatprep.subr.mxu0 0.0
    %2180 = vmatpush1.msra.mxu0 0.0
    %2181 = vmatprep.subr.mxu0 0.0
    %2182 = vmatpush1.msra.mxu0 0.0
    %2183 = vmatprep.subr.mxu0 0.0
    %2184 = vmatpush1.msra.mxu0 0.0
    %2185 = vmatprep.subr.mxu0 0.0
    %2186 = vmatpush1.msra.mxu0 0.0
    %2187 = vmatprep.mubr.f32.mxu0 0.0
    %2188 = vmatmul.mubr.f32.gmra.mrb[0].mxu0 %v2121
    %v2189 = vpop.f32.mrb[0].mxu0
    %v2190 = vadd.f32 0.0, %v2189
    %v2191 = vpop.f32.mrb[0].mxu0
    %2192 = vdwg.mxu0
    %2193 = vrot.lane.b32.xlu0 %v1938, 64
    %v2194 = vpop.permute.xlu0 %2193
    %v2197 = vsel %vm129, %v2116, 0
    %2199 = vmatprep.subr.mxu0 0.0
    %2200 = vmatpush1.msra.mxu0 %v2194
    %2201 = vmatprep.subr.mxu0 0.0
    %2202 = vmatpush1.msra.mxu0 0.0
    %2203 = vmatprep.subr.mxu0 0.0
    %2204 = vmatpush1.msra.mxu0 0.0
    %2205 = vmatprep.subr.mxu0 0.0
    %2206 = vmatpush1.msra.mxu0 0.0
    %2207 = vmatprep.subr.mxu0 0.0
    %2208 = vmatpush1.msra.mxu0 0.0
    %2209 = vmatprep.subr.mxu0 0.0
    %2210 = vmatpush1.msra.mxu0 0.0
    %2211 = vmatprep.subr.mxu0 0.0
    %2212 = vmatpush1.msra.mxu0 0.0
    %2213 = vmatprep.subr.mxu0 0.0
    %2214 = vmatpush1.msra.mxu0 0.0
    %2215 = vmatprep.subr.mxu0 0.0
    %2216 = vmatpush1.msra.mxu0 0.0
    %2217 = vmatprep.subr.mxu0 0.0
    %2218 = vmatpush1.msra.mxu0 0.0
    %2219 = vmatprep.subr.mxu0 0.0
    %2220 = vmatpush1.msra.mxu0 0.0
    %2221 = vmatprep.subr.mxu0 0.0
    %2222 = vmatpush1.msra.mxu0 0.0
    %2223 = vmatprep.subr.mxu0 0.0
    %2224 = vmatpush1.msra.mxu0 0.0
    %2225 = vmatprep.subr.mxu0 0.0
    %2226 = vmatpush1.msra.mxu0 0.0
    %2227 = vmatprep.subr.mxu0 0.0
    %2228 = vmatpush1.msra.mxu0 0.0
    %2229 = vmatprep.subr.mxu0 0.0
    %2230 = vmatpush1.msra.mxu0 0.0
    %2231 = vmatprep.subr.mxu0 0.0
    %2232 = vmatpush1.msra.mxu0 0.0
    %2233 = vmatprep.subr.mxu0 0.0
    %2234 = vmatpush1.msra.mxu0 0.0
    %2235 = vmatprep.subr.mxu0 0.0
    %2236 = vmatpush1.msra.mxu0 0.0
    %2237 = vmatprep.subr.mxu0 0.0
    %2238 = vmatpush1.msra.mxu0 0.0
    %2239 = vmatprep.subr.mxu0 0.0
    %2240 = vmatpush1.msra.mxu0 0.0
    %2241 = vmatprep.subr.mxu0 0.0
    %2242 = vmatpush1.msra.mxu0 0.0
    %2243 = vmatprep.subr.mxu0 0.0
    %2244 = vmatpush1.msra.mxu0 0.0
    %2245 = vmatprep.subr.mxu0 0.0
    %2246 = vmatpush1.msra.mxu0 0.0
    %2247 = vmatprep.subr.mxu0 0.0
    %2248 = vmatpush1.msra.mxu0 0.0
    %2249 = vmatprep.subr.mxu0 0.0
    %2250 = vmatpush1.msra.mxu0 0.0
    %2251 = vmatprep.subr.mxu0 0.0
    %2252 = vmatpush1.msra.mxu0 0.0
    %2253 = vmatprep.subr.mxu0 0.0
    %2254 = vmatpush1.msra.mxu0 0.0
    %2255 = vmatprep.subr.mxu0 0.0
    %2256 = vmatpush1.msra.mxu0 0.0
    %2257 = vmatprep.subr.mxu0 0.0
    %2258 = vmatpush1.msra.mxu0 0.0
    %2259 = vmatprep.subr.mxu0 0.0
    %2260 = vmatpush1.msra.mxu0 0.0
    %2261 = vmatprep.subr.mxu0 0.0
    %2262 = vmatpush1.msra.mxu0 0.0
    %2263 = vmatprep.mubr.f32.mxu0 0.0
    %2264 = vmatmul.mubr.f32.gmra.mrb[0].mxu0 %v2197
    %v2265 = vpop.f32.mrb[0].mxu0
    %v2266 = vadd.f32 0.0, %v2265
    %v2267 = vpop.f32.mrb[0].mxu0
    %2268 = vdwg.mxu0
    %2269 = vst.msk [vmem:[#allocation2] sm:$0xff] %vm129, %v2190
    %2270 = vst.msk [vmem:[#allocation2 + $0x8] sm:$0xff] %vm129, %v2266
    %2271 = vrot.lane.b32.xlu0 %v1933, 120
    %v2272 = vpop.permute.xlu0 %2271
    %2273 = vrot.lane.b32.xlu0 %v1933, 88
    %v2274 = vpop.permute.xlu0 %2273
    %v2275 = vsel %vm129, %v2272, 0
    %v2277 = vsel %vm129, %v2274, 0
    %2279 = vmatprep.subr.mxu0 0.0
    %2280 = vmatpush1.xpose.msra.mxu0 %v2277
    %2281 = vmatprep.subr.mxu0 0.0
    %2282 = vmatpush1.xpose.msra.mxu0 0.0
    %2283 = vmatprep.subr.mxu0 0.0
    %2284 = vmatpush1.xpose.msra.mxu0 0.0
    %2285 = vmatprep.subr.mxu0 0.0
    %2286 = vmatpush1.xpose.msra.mxu0 0.0
    %2287 = vmatprep.subr.mxu0 0.0
    %2288 = vmatpush1.xpose.msra.mxu0 0.0
    %2289 = vmatprep.subr.mxu0 0.0
    %2290 = vmatpush1.xpose.msra.mxu0 0.0
    %2291 = vmatprep.subr.mxu0 0.0
    %2292 = vmatpush1.xpose.msra.mxu0 0.0
    %2293 = vmatprep.subr.mxu0 0.0
    %2294 = vmatpush1.xpose.msra.mxu0 0.0
    %2295 = vmatprep.subr.mxu0 0.0
    %2296 = vmatpush1.xpose.msra.mxu0 0.0
    %2297 = vmatprep.subr.mxu0 0.0
    %2298 = vmatpush1.xpose.msra.mxu0 0.0
    %2299 = vmatprep.subr.mxu0 0.0
    %2300 = vmatpush1.xpose.msra.mxu0 0.0
    %2301 = vmatprep.subr.mxu0 0.0
    %2302 = vmatpush1.xpose.msra.mxu0 0.0
    %2303 = vmatprep.subr.mxu0 0.0
    %2304 = vmatpush1.xpose.msra.mxu0 0.0
    %2305 = vmatprep.subr.mxu0 0.0
    %2306 = vmatpush1.xpose.msra.mxu0 0.0
    %2307 = vmatprep.subr.mxu0 0.0
    %2308 = vmatpush1.xpose.msra.mxu0 0.0
    %2309 = vmatprep.subr.mxu0 0.0
    %2310 = vmatpush1.xpose.msra.mxu0 0.0
    %2311 = vmatprep.subr.mxu0 0.0
    %2312 = vmatpush1.xpose.msra.mxu0 0.0
    %2313 = vmatprep.subr.mxu0 0.0
    %2314 = vmatpush1.xpose.msra.mxu0 0.0
    %2315 = vmatprep.subr.mxu0 0.0
    %2316 = vmatpush1.xpose.msra.mxu0 0.0
    %2317 = vmatprep.subr.mxu0 0.0
    %2318 = vmatpush1.xpose.msra.mxu0 0.0
    %2319 = vmatprep.subr.mxu0 0.0
    %2320 = vmatpush1.xpose.msra.mxu0 0.0
    %2321 = vmatprep.subr.mxu0 0.0
    %2322 = vmatpush1.xpose.msra.mxu0 0.0
    %2323 = vmatprep.subr.mxu0 0.0
    %2324 = vmatpush1.xpose.msra.mxu0 0.0
    %2325 = vmatprep.subr.mxu0 0.0
    %2326 = vmatpush1.xpose.msra.mxu0 0.0
    %2327 = vmatprep.subr.mxu0 0.0
    %2328 = vmatpush1.xpose.msra.mxu0 0.0
    %2329 = vmatprep.subr.mxu0 0.0
    %2330 = vmatpush1.xpose.msra.mxu0 0.0
    %2331 = vmatprep.subr.mxu0 0.0
    %2332 = vmatpush1.xpose.msra.mxu0 0.0
    %2333 = vmatprep.subr.mxu0 0.0
    %2334 = vmatpush1.xpose.msra.mxu0 0.0
    %2335 = vmatprep.subr.mxu0 0.0
    %2336 = vmatpush1.xpose.msra.mxu0 0.0
    %2337 = vmatprep.subr.mxu0 0.0
    %2338 = vmatpush1.xpose.msra.mxu0 0.0
    %2339 = vmatprep.subr.mxu0 0.0
    %2340 = vmatpush1.xpose.msra.mxu0 0.0
    %2341 = vmatprep.subr.mxu0 0.0
    %2342 = vmatpush1.xpose.msra.mxu0 0.0
    %2343 = vmatprep.mubr.f32.mxu0 0.0
    %2344 = vmatmul.mubr.f32.gmra.mrb[0].mxu0 %v2275
    %v2345 = vpop.f32.mrb[0].mxu0
    %v2346 = vadd.f32 %v34, %v2345
    %v2347 = vpop.f32.mrb[0].mxu0
    %2348 = vdwg.mxu0
    %2349 = vrot.lane.b32.xlu0 %v1938, 120
    %v2350 = vpop.permute.xlu0 %2349
    %2351 = vrot.lane.b32.xlu0 %v1938, 88
    %v2352 = vpop.permute.xlu0 %2351
    %v2353 = vsel %vm129, %v2350, 0
    %v2355 = vsel %vm129, %v2352, 0
    %2357 = vmatprep.subr.mxu0 0.0
    %2358 = vmatpush1.xpose.msra.mxu0 %v2355
    %2359 = vmatprep.subr.mxu0 0.0
    %2360 = vmatpush1.xpose.msra.mxu0 0.0
    %2361 = vmatprep.subr.mxu0 0.0
    %2362 = vmatpush1.xpose.msra.mxu0 0.0
    %2363 = vmatprep.subr.mxu0 0.0
    %2364 = vmatpush1.xpose.msra.mxu0 0.0
    %2365 = vmatprep.subr.mxu0 0.0
    %2366 = vmatpush1.xpose.msra.mxu0 0.0
    %2367 = vmatprep.subr.mxu0 0.0
    %2368 = vmatpush1.xpose.msra.mxu0 0.0
    %2369 = vmatprep.subr.mxu0 0.0
    %2370 = vmatpush1.xpose.msra.mxu0 0.0
    %2371 = vmatprep.subr.mxu0 0.0
    %2372 = vmatpush1.xpose.msra.mxu0 0.0
    %2373 = vmatprep.subr.mxu0 0.0
    %2374 = vmatpush1.xpose.msra.mxu0 0.0
    %2375 = vmatprep.subr.mxu0 0.0
    %2376 = vmatpush1.xpose.msra.mxu0 0.0
    %2377 = vmatprep.subr.mxu0 0.0
    %2378 = vmatpush1.xpose.msra.mxu0 0.0
    %2379 = vmatprep.subr.mxu0 0.0
    %2380 = vmatpush1.xpose.msra.mxu0 0.0
    %2381 = vmatprep.subr.mxu0 0.0
    %2382 = vmatpush1.xpose.msra.mxu0 0.0
    %2383 = vmatprep.subr.mxu0 0.0
    %2384 = vmatpush1.xpose.msra.mxu0 0.0
    %2385 = vmatprep.subr.mxu0 0.0
    %2386 = vmatpush1.xpose.msra.mxu0 0.0
    %2387 = vmatprep.subr.mxu0 0.0
    %2388 = vmatpush1.xpose.msra.mxu0 0.0
    %2389 = vmatprep.subr.mxu0 0.0
    %2390 = vmatpush1.xpose.msra.mxu0 0.0
    %2391 = vmatprep.subr.mxu0 0.0
    %2392 = vmatpush1.xpose.msra.mxu0 0.0
    %2393 = vmatprep.subr.mxu0 0.0
    %2394 = vmatpush1.xpose.msra.mxu0 0.0
    %2395 = vmatprep.subr.mxu0 0.0
    %2396 = vmatpush1.xpose.msra.mxu0 0.0
    %2397 = vmatprep.subr.mxu0 0.0
    %2398 = vmatpush1.xpose.msra.mxu0 0.0
    %2399 = vmatprep.subr.mxu0 0.0
    %2400 = vmatpush1.xpose.msra.mxu0 0.0
    %2401 = vmatprep.subr.mxu0 0.0
    %2402 = vmatpush1.xpose.msra.mxu0 0.0
    %2403 = vmatprep.subr.mxu0 0.0
    %2404 = vmatpush1.xpose.msra.mxu0 0.0
    %2405 = vmatprep.subr.mxu0 0.0
    %2406 = vmatpush1.xpose.msra.mxu0 0.0
    %2407 = vmatprep.subr.mxu0 0.0
    %2408 = vmatpush1.xpose.msra.mxu0 0.0
    %2409 = vmatprep.subr.mxu0 0.0
    %2410 = vmatpush1.xpose.msra.mxu0 0.0
    %2411 = vmatprep.subr.mxu0 0.0
    %2412 = vmatpush1.xpose.msra.mxu0 0.0
    %2413 = vmatprep.subr.mxu0 0.0
    %2414 = vmatpush1.xpose.msra.mxu0 0.0
    %2415 = vmatprep.subr.mxu0 0.0
    %2416 = vmatpush1.xpose.msra.mxu0 0.0
    %2417 = vmatprep.subr.mxu0 0.0
    %2418 = vmatpush1.xpose.msra.mxu0 0.0
    %2419 = vmatprep.subr.mxu0 0.0
    %2420 = vmatpush1.xpose.msra.mxu0 0.0
    %2421 = vmatprep.mubr.f32.mxu0 0.0
    %2422 = vmatmul.mubr.f32.gmra.mrb[0].mxu0 %v2353
    %v2423 = vpop.f32.mrb[0].mxu0
    %v2424 = vadd.f32 %v34, %v2423
    %v2425 = vpop.f32.mrb[0].mxu0
    %2426 = vdwg.mxu0
    %v2427 = vsel %vm129, %v2346, -inf
    %2428 = vmax.xlane.f32.xlu0 %v2427
    %v2429 = vpop.xlane.xlu0 %2428
    %v2430 = vsel %vm129, %v2424, -inf
    %2431 = vmax.xlane.f32.xlu0 %v2430
    %v2432 = vpop.xlane.xlu0 %2431
    %v2433 = vsub.f32 %v2346, %v2429
    %v2434 = vsub.f32 %v2424, %v2432
    %v2435 = vmul.f32 %v2433, 1.442695
    %v2436 = vpow.pop %v2435
    %v2437 = vmul.f32 %v2434, 1.442695
    %v2438 = vpow.pop %v2437
    %v2439 = vsel %vm129, %v2436, 0.0
    %2440 = vadd.xlane.f32.xlu0 %v2439
    %v2441 = vpop.xlane.xlu0 %2440
    %v2442 = vsel %vm129, %v2438, 0.0
    %2443 = vadd.xlane.f32.xlu0 %v2442
    %v2444 = vpop.xlane.xlu0 %2443
    %v2445 = vrcp.pop %v2441
    %v2446 = vrcp.pop %v2444
    %v2447 = vmul.f32 %v2436, %v2445
    %v2448 = vmul.f32 %v2438, %v2446
    %2449 = vrot.lane.b32.xlu0 %v1933, 56
    %v2450 = vpop.permute.xlu0 %2449
    %v2453 = vsel %vm129, %v2447, 0
    %2455 = vmatprep.subr.mxu0 0.0
    %2456 = vmatpush1.msra.mxu0 %v2450
    %2457 = vmatprep.subr.mxu0 0.0
    %2458 = vmatpush1.msra.mxu0 0.0
    %2459 = vmatprep.subr.mxu0 0.0
    %2460 = vmatpush1.msra.mxu0 0.0
    %2461 = vmatprep.subr.mxu0 0.0
    %2462 = vmatpush1.msra.mxu0 0.0
    %2463 = vmatprep.subr.mxu0 0.0
    %2464 = vmatpush1.msra.mxu0 0.0
    %2465 = vmatprep.subr.mxu0 0.0
    %2466 = vmatpush1.msra.mxu0 0.0
    %2467 = vmatprep.subr.mxu0 0.0
    %2468 = vmatpush1.msra.mxu0 0.0
    %2469 = vmatprep.subr.mxu0 0.0
    %2470 = vmatpush1.msra.mxu0 0.0
    %2471 = vmatprep.subr.mxu0 0.0
    %2472 = vmatpush1.msra.mxu0 0.0
    %2473 = vmatprep.subr.mxu0 0.0
    %2474 = vmatpush1.msra.mxu0 0.0
    %2475 = vmatprep.subr.mxu0 0.0
    %2476 = vmatpush1.msra.mxu0 0.0
    %2477 = vmatprep.subr.mxu0 0.0
    %2478 = vmatpush1.msra.mxu0 0.0
    %2479 = vmatprep.subr.mxu0 0.0
    %2480 = vmatpush1.msra.mxu0 0.0
    %2481 = vmatprep.subr.mxu0 0.0
    %2482 = vmatpush1.msra.mxu0 0.0
    %2483 = vmatprep.subr.mxu0 0.0
    %2484 = vmatpush1.msra.mxu0 0.0
    %2485 = vmatprep.subr.mxu0 0.0
    %2486 = vmatpush1.msra.mxu0 0.0
    %2487 = vmatprep.subr.mxu0 0.0
    %2488 = vmatpush1.msra.mxu0 0.0
    %2489 = vmatprep.subr.mxu0 0.0
    %2490 = vmatpush1.msra.mxu0 0.0
    %2491 = vmatprep.subr.mxu0 0.0
    %2492 = vmatpush1.msra.mxu0 0.0
    %2493 = vmatprep.subr.mxu0 0.0
    %2494 = vmatpush1.msra.mxu0 0.0
    %2495 = vmatprep.subr.mxu0 0.0
    %2496 = vmatpush1.msra.mxu0 0.0
    %2497 = vmatprep.subr.mxu0 0.0
    %2498 = vmatpush1.msra.mxu0 0.0
    %2499 = vmatprep.subr.mxu0 0.0
    %2500 = vmatpush1.msra.mxu0 0.0
    %2501 = vmatprep.subr.mxu0 0.0
    %2502 = vmatpush1.msra.mxu0 0.0
    %2503 = vmatprep.subr.mxu0 0.0
    %2504 = vmatpush1.msra.mxu0 0.0
    %2505 = vmatprep.subr.mxu0 0.0
    %2506 = vmatpush1.msra.mxu0 0.0
    %2507 = vmatprep.subr.mxu0 0.0
    %2508 = vmatpush1.msra.mxu0 0.0
    %2509 = vmatprep.subr.mxu0 0.0
    %2510 = vmatpush1.msra.mxu0 0.0
    %2511 = vmatprep.subr.mxu0 0.0
    %2512 = vmatpush1.msra.mxu0 0.0
    %2513 = vmatprep.subr.mxu0 0.0
    %2514 = vmatpush1.msra.mxu0 0.0
    %2515 = vmatprep.subr.mxu0 0.0
    %2516 = vmatpush1.msra.mxu0 0.0
    %2517 = vmatprep.subr.mxu0 0.0
    %2518 = vmatpush1.msra.mxu0 0.0
    %2519 = vmatprep.mubr.f32.mxu0 0.0
    %2520 = vmatmul.mubr.f32.gmra.mrb[0].mxu0 %v2453
    %v2521 = vpop.f32.mrb[0].mxu0
    %v2522 = vadd.f32 0.0, %v2521
    %v2523 = vpop.f32.mrb[0].mxu0
    %2524 = vdwg.mxu0
    %2525 = vrot.lane.b32.xlu0 %v1938, 56
    %v2526 = vpop.permute.xlu0 %2525
    %v2529 = vsel %vm129, %v2448, 0
    %2531 = vmatprep.subr.mxu0 0.0
    %2532 = vmatpush1.msra.mxu0 %v2526
    %2533 = vmatprep.subr.mxu0 0.0
    %2534 = vmatpush1.msra.mxu0 0.0
    %2535 = vmatprep.subr.mxu0 0.0
    %2536 = vmatpush1.msra.mxu0 0.0
    %2537 = vmatprep.subr.mxu0 0.0
    %2538 = vmatpush1.msra.mxu0 0.0
    %2539 = vmatprep.subr.mxu0 0.0
    %2540 = vmatpush1.msra.mxu0 0.0
    %2541 = vmatprep.subr.mxu0 0.0
    %2542 = vmatpush1.msra.mxu0 0.0
    %2543 = vmatprep.subr.mxu0 0.0
    %2544 = vmatpush1.msra.mxu0 0.0
    %2545 = vmatprep.subr.mxu0 0.0
    %2546 = vmatpush1.msra.mxu0 0.0
    %2547 = vmatprep.subr.mxu0 0.0
    %2548 = vmatpush1.msra.mxu0 0.0
    %2549 = vmatprep.subr.mxu0 0.0
    %2550 = vmatpush1.msra.mxu0 0.0
    %2551 = vmatprep.subr.mxu0 0.0
    %2552 = vmatpush1.msra.mxu0 0.0
    %2553 = vmatprep.subr.mxu0 0.0
    %2554 = vmatpush1.msra.mxu0 0.0
    %2555 = vmatprep.subr.mxu0 0.0
    %2556 = vmatpush1.msra.mxu0 0.0
    %2557 = vmatprep.subr.mxu0 0.0
    %2558 = vmatpush1.msra.mxu0 0.0
    %2559 = vmatprep.subr.mxu0 0.0
    %2560 = vmatpush1.msra.mxu0 0.0
    %2561 = vmatprep.subr.mxu0 0.0
    %2562 = vmatpush1.msra.mxu0 0.0
    %2563 = vmatprep.subr.mxu0 0.0
    %2564 = vmatpush1.msra.mxu0 0.0
    %2565 = vmatprep.subr.mxu0 0.0
    %2566 = vmatpush1.msra.mxu0 0.0
    %2567 = vmatprep.subr.mxu0 0.0
    %2568 = vmatpush1.msra.mxu0 0.0
    %2569 = vmatprep.subr.mxu0 0.0
    %2570 = vmatpush1.msra.mxu0 0.0
    %2571 = vmatprep.subr.mxu0 0.0
    %2572 = vmatpush1.msra.mxu0 0.0
    %2573 = vmatprep.subr.mxu0 0.0
    %2574 = vmatpush1.msra.mxu0 0.0
    %2575 = vmatprep.subr.mxu0 0.0
    %2576 = vmatpush1.msra.mxu0 0.0
    %2577 = vmatprep.subr.mxu0 0.0
    %2578 = vmatpush1.msra.mxu0 0.0
    %2579 = vmatprep.subr.mxu0 0.0
    %2580 = vmatpush1.msra.mxu0 0.0
    %2581 = vmatprep.subr.mxu0 0.0
    %2582 = vmatpush1.msra.mxu0 0.0
    %2583 = vmatprep.subr.mxu0 0.0
    %2584 = vmatpush1.msra.mxu0 0.0
    %2585 = vmatprep.subr.mxu0 0.0
    %2586 = vmatpush1.msra.mxu0 0.0
    %2587 = vmatprep.subr.mxu0 0.0
    %2588 = vmatpush1.msra.mxu0 0.0
    %2589 = vmatprep.subr.mxu0 0.0
    %2590 = vmatpush1.msra.mxu0 0.0
    %2591 = vmatprep.subr.mxu0 0.0
    %2592 = vmatpush1.msra.mxu0 0.0
    %2593 = vmatprep.subr.mxu0 0.0
    %2594 = vmatpush1.msra.mxu0 0.0
    %2595 = vmatprep.mubr.f32.mxu0 0.0
    %2596 = vmatmul.mubr.f32.gmra.mrb[0].mxu0 %v2529
    %v2597 = vpop.f32.mrb[0].mxu0
    %v2598 = vadd.f32 0.0, %v2597
    %v2599 = vpop.f32.mrb[0].mxu0
    %2600 = vdwg.mxu0
    %2603 = vrot.lane.b32.xlu0 %v2522, 8
    %v2604 = vpop.permute.xlu0 %2603
    %2605 = vrot.lane.b32.xlu0 %v2598, 8
    %v2606 = vpop.permute.xlu0 %2605
    %2609 = vst.msk [vmem:[#allocation2] sm:$0xff] %vm795, %v2604
    %2610 = vst.msk [vmem:[#allocation2 + $0x8] sm:$0xff] %vm795, %v2606
    %2611 = vrot.lane.b32.xlu0 %v1933, 112
    %v2612 = vpop.permute.xlu0 %2611
    %2613 = vrot.lane.b32.xlu0 %v1933, 80
    %v2614 = vpop.permute.xlu0 %2613
    %v2615 = vsel %vm129, %v2612, 0
    %v2617 = vsel %vm129, %v2614, 0
    %2619 = vmatprep.subr.mxu0 0.0
    %2620 = vmatpush1.xpose.msra.mxu0 %v2617
    %2621 = vmatprep.subr.mxu0 0.0
    %2622 = vmatpush1.xpose.msra.mxu0 0.0
    %2623 = vmatprep.subr.mxu0 0.0
    %2624 = vmatpush1.xpose.msra.mxu0 0.0
    %2625 = vmatprep.subr.mxu0 0.0
    %2626 = vmatpush1.xpose.msra.mxu0 0.0
    %2627 = vmatprep.subr.mxu0 0.0
    %2628 = vmatpush1.xpose.msra.mxu0 0.0
    %2629 = vmatprep.subr.mxu0 0.0
    %2630 = vmatpush1.xpose.msra.mxu0 0.0
    %2631 = vmatprep.subr.mxu0 0.0
    %2632 = vmatpush1.xpose.msra.mxu0 0.0
    %2633 = vmatprep.subr.mxu0 0.0
    %2634 = vmatpush1.xpose.msra.mxu0 0.0
    %2635 = vmatprep.subr.mxu0 0.0
    %2636 = vmatpush1.xpose.msra.mxu0 0.0
    %2637 = vmatprep.subr.mxu0 0.0
    %2638 = vmatpush1.xpose.msra.mxu0 0.0
    %2639 = vmatprep.subr.mxu0 0.0
    %2640 = vmatpush1.xpose.msra.mxu0 0.0
    %2641 = vmatprep.subr.mxu0 0.0
    %2642 = vmatpush1.xpose.msra.mxu0 0.0
    %2643 = vmatprep.subr.mxu0 0.0
    %2644 = vmatpush1.xpose.msra.mxu0 0.0
    %2645 = vmatprep.subr.mxu0 0.0
    %2646 = vmatpush1.xpose.msra.mxu0 0.0
    %2647 = vmatprep.subr.mxu0 0.0
    %2648 = vmatpush1.xpose.msra.mxu0 0.0
    %2649 = vmatprep.subr.mxu0 0.0
    %2650 = vmatpush1.xpose.msra.mxu0 0.0
    %2651 = vmatprep.subr.mxu0 0.0
    %2652 = vmatpush1.xpose.msra.mxu0 0.0
    %2653 = vmatprep.subr.mxu0 0.0
    %2654 = vmatpush1.xpose.msra.mxu0 0.0
    %2655 = vmatprep.subr.mxu0 0.0
    %2656 = vmatpush1.xpose.msra.mxu0 0.0
    %2657 = vmatprep.subr.mxu0 0.0
    %2658 = vmatpush1.xpose.msra.mxu0 0.0
    %2659 = vmatprep.subr.mxu0 0.0
    %2660 = vmatpush1.xpose.msra.mxu0 0.0
    %2661 = vmatprep.subr.mxu0 0.0
    %2662 = vmatpush1.xpose.msra.mxu0 0.0
    %2663 = vmatprep.subr.mxu0 0.0
    %2664 = vmatpush1.xpose.msra.mxu0 0.0
    %2665 = vmatprep.subr.mxu0 0.0
    %2666 = vmatpush1.xpose.msra.mxu0 0.0
    %2667 = vmatprep.subr.mxu0 0.0
    %2668 = vmatpush1.xpose.msra.mxu0 0.0
    %2669 = vmatprep.subr.mxu0 0.0
    %2670 = vmatpush1.xpose.msra.mxu0 0.0
    %2671 = vmatprep.subr.mxu0 0.0
    %2672 = vmatpush1.xpose.msra.mxu0 0.0
    %2673 = vmatprep.subr.mxu0 0.0
    %2674 = vmatpush1.xpose.msra.mxu0 0.0
    %2675 = vmatprep.subr.mxu0 0.0
    %2676 = vmatpush1.xpose.msra.mxu0 0.0
    %2677 = vmatprep.subr.mxu0 0.0
    %2678 = vmatpush1.xpose.msra.mxu0 0.0
    %2679 = vmatprep.subr.mxu0 0.0
    %2680 = vmatpush1.xpose.msra.mxu0 0.0
    %2681 = vmatprep.subr.mxu0 0.0
    %2682 = vmatpush1.xpose.msra.mxu0 0.0
    %2683 = vmatprep.mubr.f32.mxu0 0.0
    %2684 = vmatmul.mubr.f32.gmra.mrb[0].mxu0 %v2615
    %v2685 = vpop.f32.mrb[0].mxu0
    %v2686 = vadd.f32 %v34, %v2685
    %v2687 = vpop.f32.mrb[0].mxu0
    %2688 = vdwg.mxu0
    %2689 = vrot.lane.b32.xlu0 %v1938, 112
    %v2690 = vpop.permute.xlu0 %2689
    %2691 = vrot.lane.b32.xlu0 %v1938, 80
    %v2692 = vpop.permute.xlu0 %2691
    %v2693 = vsel %vm129, %v2690, 0
    %v2695 = vsel %vm129, %v2692, 0
    %2697 = vmatprep.subr.mxu0 0.0
    %2698 = vmatpush1.xpose.msra.mxu0 %v2695
    %2699 = vmatprep.subr.mxu0 0.0
    %2700 = vmatpush1.xpose.msra.mxu0 0.0
    %2701 = vmatprep.subr.mxu0 0.0
    %2702 = vmatpush1.xpose.msra.mxu0 0.0
    %2703 = vmatprep.subr.mxu0 0.0
    %2704 = vmatpush1.xpose.msra.mxu0 0.0
    %2705 = vmatprep.subr.mxu0 0.0
    %2706 = vmatpush1.xpose.msra.mxu0 0.0
    %2707 = vmatprep.subr.mxu0 0.0
    %2708 = vmatpush1.xpose.msra.mxu0 0.0
    %2709 = vmatprep.subr.mxu0 0.0
    %2710 = vmatpush1.xpose.msra.mxu0 0.0
    %2711 = vmatprep.subr.mxu0 0.0
    %2712 = vmatpush1.xpose.msra.mxu0 0.0
    %2713 = vmatprep.subr.mxu0 0.0
    %2714 = vmatpush1.xpose.msra.mxu0 0.0
    %2715 = vmatprep.subr.mxu0 0.0
    %2716 = vmatpush1.xpose.msra.mxu0 0.0
    %2717 = vmatprep.subr.mxu0 0.0
    %2718 = vmatpush1.xpose.msra.mxu0 0.0
    %2719 = vmatprep.subr.mxu0 0.0
    %2720 = vmatpush1.xpose.msra.mxu0 0.0
    %2721 = vmatprep.subr.mxu0 0.0
    %2722 = vmatpush1.xpose.msra.mxu0 0.0
    %2723 = vmatprep.subr.mxu0 0.0
    %2724 = vmatpush1.xpose.msra.mxu0 0.0
    %2725 = vmatprep.subr.mxu0 0.0
    %2726 = vmatpush1.xpose.msra.mxu0 0.0
    %2727 = vmatprep.subr.mxu0 0.0
    %2728 = vmatpush1.xpose.msra.mxu0 0.0
    %2729 = vmatprep.subr.mxu0 0.0
    %2730 = vmatpush1.xpose.msra.mxu0 0.0
    %2731 = vmatprep.subr.mxu0 0.0
    %2732 = vmatpush1.xpose.msra.mxu0 0.0
    %2733 = vmatprep.subr.mxu0 0.0
    %2734 = vmatpush1.xpose.msra.mxu0 0.0
    %2735 = vmatprep.subr.mxu0 0.0
    %2736 = vmatpush1.xpose.msra.mxu0 0.0
    %2737 = vmatprep.subr.mxu0 0.0
    %2738 = vmatpush1.xpose.msra.mxu0 0.0
    %2739 = vmatprep.subr.mxu0 0.0
    %2740 = vmatpush1.xpose.msra.mxu0 0.0
    %2741 = vmatprep.subr.mxu0 0.0
    %2742 = vmatpush1.xpose.msra.mxu0 0.0
    %2743 = vmatprep.subr.mxu0 0.0
    %2744 = vmatpush1.xpose.msra.mxu0 0.0
    %2745 = vmatprep.subr.mxu0 0.0
    %2746 = vmatpush1.xpose.msra.mxu0 0.0
    %2747 = vmatprep.subr.mxu0 0.0
    %2748 = vmatpush1.xpose.msra.mxu0 0.0
    %2749 = vmatprep.subr.mxu0 0.0
    %2750 = vmatpush1.xpose.msra.mxu0 0.0
    %2751 = vmatprep.subr.mxu0 0.0
    %2752 = vmatpush1.xpose.msra.mxu0 0.0
    %2753 = vmatprep.subr.mxu0 0.0
    %2754 = vmatpush1.xpose.msra.mxu0 0.0
    %2755 = vmatprep.subr.mxu0 0.0
    %2756 = vmatpush1.xpose.msra.mxu0 0.0
    %2757 = vmatprep.subr.mxu0 0.0
    %2758 = vmatpush1.xpose.msra.mxu0 0.0
    %2759 = vmatprep.subr.mxu0 0.0
    %2760 = vmatpush1.xpose.msra.mxu0 0.0
    %2761 = vmatprep.mubr.f32.mxu0 0.0
    %2762 = vmatmul.mubr.f32.gmra.mrb[0].mxu0 %v2693
    %v2763 = vpop.f32.mrb[0].mxu0
    %v2764 = vadd.f32 %v34, %v2763
    %v2765 = vpop.f32.mrb[0].mxu0
    %2766 = vdwg.mxu0
    %v2767 = vsel %vm129, %v2686, -inf
    %2768 = vmax.xlane.f32.xlu0 %v2767
    %v2769 = vpop.xlane.xlu0 %2768
    %v2770 = vsel %vm129, %v2764, -inf
    %2771 = vmax.xlane.f32.xlu0 %v2770
    %v2772 = vpop.xlane.xlu0 %2771
    %v2773 = vsub.f32 %v2686, %v2769
    %v2774 = vsub.f32 %v2764, %v2772
    %v2775 = vmul.f32 %v2773, 1.442695
    %v2776 = vpow.pop %v2775
    %v2777 = vmul.f32 %v2774, 1.442695
    %v2778 = vpow.pop %v2777
    %v2779 = vsel %vm129, %v2776, 0.0
    %2780 = vadd.xlane.f32.xlu0 %v2779
    %v2781 = vpop.xlane.xlu0 %2780
    %v2782 = vsel %vm129, %v2778, 0.0
    %2783 = vadd.xlane.f32.xlu0 %v2782
    %v2784 = vpop.xlane.xlu0 %2783
    %v2785 = vrcp.pop %v2781
    %v2786 = vrcp.pop %v2784
    %v2787 = vmul.f32 %v2776, %v2785
    %v2788 = vmul.f32 %v2778, %v2786
    %2789 = vrot.lane.b32.xlu0 %v1933, 48
    %v2790 = vpop.permute.xlu0 %2789
    %v2793 = vsel %vm129, %v2787, 0
    %2795 = vmatprep.subr.mxu0 0.0
    %2796 = vmatpush1.msra.mxu0 %v2790
    %2797 = vmatprep.subr.mxu0 0.0
    %2798 = vmatpush1.msra.mxu0 0.0
    %2799 = vmatprep.subr.mxu0 0.0
    %2800 = vmatpush1.msra.mxu0 0.0
    %2801 = vmatprep.subr.mxu0 0.0
    %2802 = vmatpush1.msra.mxu0 0.0
    %2803 = vmatprep.subr.mxu0 0.0
    %2804 = vmatpush1.msra.mxu0 0.0
    %2805 = vmatprep.subr.mxu0 0.0
    %2806 = vmatpush1.msra.mxu0 0.0
    %2807 = vmatprep.subr.mxu0 0.0
    %2808 = vmatpush1.msra.mxu0 0.0
    %2809 = vmatprep.subr.mxu0 0.0
    %2810 = vmatpush1.msra.mxu0 0.0
    %2811 = vmatprep.subr.mxu0 0.0
    %2812 = vmatpush1.msra.mxu0 0.0
    %2813 = vmatprep.subr.mxu0 0.0
    %2814 = vmatpush1.msra.mxu0 0.0
    %2815 = vmatprep.subr.mxu0 0.0
    %2816 = vmatpush1.msra.mxu0 0.0
    %2817 = vmatprep.subr.mxu0 0.0
    %2818 = vmatpush1.msra.mxu0 0.0
    %2819 = vmatprep.subr.mxu0 0.0
    %2820 = vmatpush1.msra.mxu0 0.0
    %2821 = vmatprep.subr.mxu0 0.0
    %2822 = vmatpush1.msra.mxu0 0.0
    %2823 = vmatprep.subr.mxu0 0.0
    %2824 = vmatpush1.msra.mxu0 0.0
    %2825 = vmatprep.subr.mxu0 0.0
    %2826 = vmatpush1.msra.mxu0 0.0
    %2827 = vmatprep.subr.mxu0 0.0
    %2828 = vmatpush1.msra.mxu0 0.0
    %2829 = vmatprep.subr.mxu0 0.0
    %2830 = vmatpush1.msra.mxu0 0.0
    %2831 = vmatprep.subr.mxu0 0.0
    %2832 = vmatpush1.msra.mxu0 0.0
    %2833 = vmatprep.subr.mxu0 0.0
    %2834 = vmatpush1.msra.mxu0 0.0
    %2835 = vmatprep.subr.mxu0 0.0
    %2836 = vmatpush1.msra.mxu0 0.0
    %2837 = vmatprep.subr.mxu0 0.0
    %2838 = vmatpush1.msra.mxu0 0.0
    %2839 = vmatprep.subr.mxu0 0.0
    %2840 = vmatpush1.msra.mxu0 0.0
    %2841 = vmatprep.subr.mxu0 0.0
    %2842 = vmatpush1.msra.mxu0 0.0
    %2843 = vmatprep.subr.mxu0 0.0
    %2844 = vmatpush1.msra.mxu0 0.0
    %2845 = vmatprep.subr.mxu0 0.0
    %2846 = vmatpush1.msra.mxu0 0.0
    %2847 = vmatprep.subr.mxu0 0.0
    %2848 = vmatpush1.msra.mxu0 0.0
    %2849 = vmatprep.subr.mxu0 0.0
    %2850 = vmatpush1.msra.mxu0 0.0
    %2851 = vmatprep.subr.mxu0 0.0
    %2852 = vmatpush1.msra.mxu0 0.0
    %2853 = vmatprep.subr.mxu0 0.0
    %2854 = vmatpush1.msra.mxu0 0.0
    %2855 = vmatprep.subr.mxu0 0.0
    %2856 = vmatpush1.msra.mxu0 0.0
    %2857 = vmatprep.subr.mxu0 0.0
    %2858 = vmatpush1.msra.mxu0 0.0
    %2859 = vmatprep.mubr.f32.mxu0 0.0
    %2860 = vmatmul.mubr.f32.gmra.mrb[0].mxu0 %v2793
    %v2861 = vpop.f32.mrb[0].mxu0
    %v2862 = vadd.f32 0.0, %v2861
    %v2863 = vpop.f32.mrb[0].mxu0
    %2864 = vdwg.mxu0
    %2865 = vrot.lane.b32.xlu0 %v1938, 48
    %v2866 = vpop.permute.xlu0 %2865
    %v2869 = vsel %vm129, %v2788, 0
    %2871 = vmatprep.subr.mxu0 0.0
    %2872 = vmatpush1.msra.mxu0 %v2866
    %2873 = vmatprep.subr.mxu0 0.0
    %2874 = vmatpush1.msra.mxu0 0.0
    %2875 = vmatprep.subr.mxu0 0.0
    %2876 = vmatpush1.msra.mxu0 0.0
    %2877 = vmatprep.subr.mxu0 0.0
    %2878 = vmatpush1.msra.mxu0 0.0
    %2879 = vmatprep.subr.mxu0 0.0
    %2880 = vmatpush1.msra.mxu0 0.0
    %2881 = vmatprep.subr.mxu0 0.0
    %2882 = vmatpush1.msra.mxu0 0.0
    %2883 = vmatprep.subr.mxu0 0.0
    %2884 = vmatpush1.msra.mxu0 0.0
    %2885 = vmatprep.subr.mxu0 0.0
    %2886 = vmatpush1.msra.mxu0 0.0
    %2887 = vmatprep.subr.mxu0 0.0
    %2888 = vmatpush1.msra.mxu0 0.0
    %2889 = vmatprep.subr.mxu0 0.0
    %2890 = vmatpush1.msra.mxu0 0.0
    %2891 = vmatprep.subr.mxu0 0.0
    %2892 = vmatpush1.msra.mxu0 0.0
    %2893 = vmatprep.subr.mxu0 0.0
    %2894 = vmatpush1.msra.mxu0 0.0
    %2895 = vmatprep.subr.mxu0 0.0
    %2896 = vmatpush1.msra.mxu0 0.0
    %2897 = vmatprep.subr.mxu0 0.0
    %2898 = vmatpush1.msra.mxu0 0.0
    %2899 = vmatprep.subr.mxu0 0.0
    %2900 = vmatpush1.msra.mxu0 0.0
    %2901 = vmatprep.subr.mxu0 0.0
    %2902 = vmatpush1.msra.mxu0 0.0
    %2903 = vmatprep.subr.mxu0 0.0
    %2904 = vmatpush1.msra.mxu0 0.0
    %2905 = vmatprep.subr.mxu0 0.0
    %2906 = vmatpush1.msra.mxu0 0.0
    %2907 = vmatprep.subr.mxu0 0.0
    %2908 = vmatpush1.msra.mxu0 0.0
    %2909 = vmatprep.subr.mxu0 0.0
    %2910 = vmatpush1.msra.mxu0 0.0
    %2911 = vmatprep.subr.mxu0 0.0
    %2912 = vmatpush1.msra.mxu0 0.0
    %2913 = vmatprep.subr.mxu0 0.0
    %2914 = vmatpush1.msra.mxu0 0.0
    %2915 = vmatprep.subr.mxu0 0.0
    %2916 = vmatpush1.msra.mxu0 0.0
    %2917 = vmatprep.subr.mxu0 0.0
    %2918 = vmatpush1.msra.mxu0 0.0
    %2919 = vmatprep.subr.mxu0 0.0
    %2920 = vmatpush1.msra.mxu0 0.0
    %2921 = vmatprep.subr.mxu0 0.0
    %2922 = vmatpush1.msra.mxu0 0.0
    %2923 = vmatprep.subr.mxu0 0.0
    %2924 = vmatpush1.msra.mxu0 0.0
    %2925 = vmatprep.subr.mxu0 0.0
    %2926 = vmatpush1.msra.mxu0 0.0
    %2927 = vmatprep.subr.mxu0 0.0
    %2928 = vmatpush1.msra.mxu0 0.0
    %2929 = vmatprep.subr.mxu0 0.0
    %2930 = vmatpush1.msra.mxu0 0.0
    %2931 = vmatprep.subr.mxu0 0.0
    %2932 = vmatpush1.msra.mxu0 0.0
    %2933 = vmatprep.subr.mxu0 0.0
    %2934 = vmatpush1.msra.mxu0 0.0
    %2935 = vmatprep.mubr.f32.mxu0 0.0
    %2936 = vmatmul.mubr.f32.gmra.mrb[0].mxu0 %v2869
    %v2937 = vpop.f32.mrb[0].mxu0
    %v2938 = vadd.f32 0.0, %v2937
    %v2939 = vpop.f32.mrb[0].mxu0
    %2940 = vdwg.mxu0
    %2943 = vrot.lane.b32.xlu0 %v2862, 16
    %v2944 = vpop.permute.xlu0 %2943
    %2945 = vrot.lane.b32.xlu0 %v2938, 16
    %v2946 = vpop.permute.xlu0 %2945
    %2949 = vst.msk [vmem:[#allocation2] sm:$0xff] %vm1136, %v2944
    %2950 = vst.msk [vmem:[#allocation2 + $0x8] sm:$0xff] %vm1136, %v2946
    %2951 = vrot.lane.b32.xlu0 %v1933, 104
    %v2952 = vpop.permute.xlu0 %2951
    %2953 = vrot.lane.b32.xlu0 %v1933, 72
    %v2954 = vpop.permute.xlu0 %2953
    %v2955 = vsel %vm129, %v2952, 0
    %v2957 = vsel %vm129, %v2954, 0
    %2959 = vmatprep.subr.mxu0 0.0
    %2960 = vmatpush1.xpose.msra.mxu0 %v2957
    %2961 = vmatprep.subr.mxu0 0.0
    %2962 = vmatpush1.xpose.msra.mxu0 0.0
    %2963 = vmatprep.subr.mxu0 0.0
    %2964 = vmatpush1.xpose.msra.mxu0 0.0
    %2965 = vmatprep.subr.mxu0 0.0
    %2966 = vmatpush1.xpose.msra.mxu0 0.0
    %2967 = vmatprep.subr.mxu0 0.0
    %2968 = vmatpush1.xpose.msra.mxu0 0.0
    %2969 = vmatprep.subr.mxu0 0.0
    %2970 = vmatpush1.xpose.msra.mxu0 0.0
    %2971 = vmatprep.subr.mxu0 0.0
    %2972 = vmatpush1.xpose.msra.mxu0 0.0
    %2973 = vmatprep.subr.mxu0 0.0
    %2974 = vmatpush1.xpose.msra.mxu0 0.0
    %2975 = vmatprep.subr.mxu0 0.0
    %2976 = vmatpush1.xpose.msra.mxu0 0.0
    %2977 = vmatprep.subr.mxu0 0.0
    %2978 = vmatpush1.xpose.msra.mxu0 0.0
    %2979 = vmatprep.subr.mxu0 0.0
    %2980 = vmatpush1.xpose.msra.mxu0 0.0
    %2981 = vmatprep.subr.mxu0 0.0
    %2982 = vmatpush1.xpose.msra.mxu0 0.0
    %2983 = vmatprep.subr.mxu0 0.0
    %2984 = vmatpush1.xpose.msra.mxu0 0.0
    %2985 = vmatprep.subr.mxu0 0.0
    %2986 = vmatpush1.xpose.msra.mxu0 0.0
    %2987 = vmatprep.subr.mxu0 0.0
    %2988 = vmatpush1.xpose.msra.mxu0 0.0
    %2989 = vmatprep.subr.mxu0 0.0
    %2990 = vmatpush1.xpose.msra.mxu0 0.0
    %2991 = vmatprep.subr.mxu0 0.0
    %2992 = vmatpush1.xpose.msra.mxu0 0.0
    %2993 = vmatprep.subr.mxu0 0.0
    %2994 = vmatpush1.xpose.msra.mxu0 0.0
    %2995 = vmatprep.subr.mxu0 0.0
    %2996 = vmatpush1.xpose.msra.mxu0 0.0
    %2997 = vmatprep.subr.mxu0 0.0
    %2998 = vmatpush1.xpose.msra.mxu0 0.0
    %2999 = vmatprep.subr.mxu0 0.0
    %3000 = vmatpush1.xpose.msra.mxu0 0.0
    %3001 = vmatprep.subr.mxu0 0.0
    %3002 = vmatpush1.xpose.msra.mxu0 0.0
    %3003 = vmatprep.subr.mxu0 0.0
    %3004 = vmatpush1.xpose.msra.mxu0 0.0
    %3005 = vmatprep.subr.mxu0 0.0
    %3006 = vmatpush1.xpose.msra.mxu0 0.0
    %3007 = vmatprep.subr.mxu0 0.0
    %3008 = vmatpush1.xpose.msra.mxu0 0.0
    %3009 = vmatprep.subr.mxu0 0.0
    %3010 = vmatpush1.xpose.msra.mxu0 0.0
    %3011 = vmatprep.subr.mxu0 0.0
    %3012 = vmatpush1.xpose.msra.mxu0 0.0
    %3013 = vmatprep.subr.mxu0 0.0
    %3014 = vmatpush1.xpose.msra.mxu0 0.0
    %3015 = vmatprep.subr.mxu0 0.0
    %3016 = vmatpush1.xpose.msra.mxu0 0.0
    %3017 = vmatprep.subr.mxu0 0.0
    %3018 = vmatpush1.xpose.msra.mxu0 0.0
    %3019 = vmatprep.subr.mxu0 0.0
    %3020 = vmatpush1.xpose.msra.mxu0 0.0
    %3021 = vmatprep.subr.mxu0 0.0
    %3022 = vmatpush1.xpose.msra.mxu0 0.0
    %3023 = vmatprep.mubr.f32.mxu0 0.0
    %3024 = vmatmul.mubr.f32.gmra.mrb[0].mxu0 %v2955
    %v3025 = vpop.f32.mrb[0].mxu0
    %v3026 = vadd.f32 %v34, %v3025
    %v3027 = vpop.f32.mrb[0].mxu0
    %3028 = vdwg.mxu0
    %3029 = vrot.lane.b32.xlu0 %v1938, 104
    %v3030 = vpop.permute.xlu0 %3029
    %3031 = vrot.lane.b32.xlu0 %v1938, 72
    %v3032 = vpop.permute.xlu0 %3031
    %v3033 = vsel %vm129, %v3030, 0
    %v3035 = vsel %vm129, %v3032, 0
    %3037 = vmatprep.subr.mxu0 0.0
    %3038 = vmatpush1.xpose.msra.mxu0 %v3035
    %3039 = vmatprep.subr.mxu0 0.0
    %3040 = vmatpush1.xpose.msra.mxu0 0.0
    %3041 = vmatprep.subr.mxu0 0.0
    %3042 = vmatpush1.xpose.msra.mxu0 0.0
    %3043 = vmatprep.subr.mxu0 0.0
    %3044 = vmatpush1.xpose.msra.mxu0 0.0
    %3045 = vmatprep.subr.mxu0 0.0
    %3046 = vmatpush1.xpose.msra.mxu0 0.0
    %3047 = vmatprep.subr.mxu0 0.0
    %3048 = vmatpush1.xpose.msra.mxu0 0.0
    %3049 = vmatprep.subr.mxu0 0.0
    %3050 = vmatpush1.xpose.msra.mxu0 0.0
    %3051 = vmatprep.subr.mxu0 0.0
    %3052 = vmatpush1.xpose.msra.mxu0 0.0
    %3053 = vmatprep.subr.mxu0 0.0
    %3054 = vmatpush1.xpose.msra.mxu0 0.0
    %3055 = vmatprep.subr.mxu0 0.0
    %3056 = vmatpush1.xpose.msra.mxu0 0.0
    %3057 = vmatprep.subr.mxu0 0.0
    %3058 = vmatpush1.xpose.msra.mxu0 0.0
    %3059 = vmatprep.subr.mxu0 0.0
    %3060 = vmatpush1.xpose.msra.mxu0 0.0
    %3061 = vmatprep.subr.mxu0 0.0
    %3062 = vmatpush1.xpose.msra.mxu0 0.0
    %3063 = vmatprep.subr.mxu0 0.0
    %3064 = vmatpush1.xpose.msra.mxu0 0.0
    %3065 = vmatprep.subr.mxu0 0.0
    %3066 = vmatpush1.xpose.msra.mxu0 0.0
    %3067 = vmatprep.subr.mxu0 0.0
    %3068 = vmatpush1.xpose.msra.mxu0 0.0
    %3069 = vmatprep.subr.mxu0 0.0
    %3070 = vmatpush1.xpose.msra.mxu0 0.0
    %3071 = vmatprep.subr.mxu0 0.0
    %3072 = vmatpush1.xpose.msra.mxu0 0.0
    %3073 = vmatprep.subr.mxu0 0.0
    %3074 = vmatpush1.xpose.msra.mxu0 0.0
    %3075 = vmatprep.subr.mxu0 0.0
    %3076 = vmatpush1.xpose.msra.mxu0 0.0
    %3077 = vmatprep.subr.mxu0 0.0
    %3078 = vmatpush1.xpose.msra.mxu0 0.0
    %3079 = vmatprep.subr.mxu0 0.0
    %3080 = vmatpush1.xpose.msra.mxu0 0.0
    %3081 = vmatprep.subr.mxu0 0.0
    %3082 = vmatpush1.xpose.msra.mxu0 0.0
    %3083 = vmatprep.subr.mxu0 0.0
    %3084 = vmatpush1.xpose.msra.mxu0 0.0
    %3085 = vmatprep.subr.mxu0 0.0
    %3086 = vmatpush1.xpose.msra.mxu0 0.0
    %3087 = vmatprep.subr.mxu0 0.0
    %3088 = vmatpush1.xpose.msra.mxu0 0.0
    %3089 = vmatprep.subr.mxu0 0.0
    %3090 = vmatpush1.xpose.msra.mxu0 0.0
    %3091 = vmatprep.subr.mxu0 0.0
    %3092 = vmatpush1.xpose.msra.mxu0 0.0
    %3093 = vmatprep.subr.mxu0 0.0
    %3094 = vmatpush1.xpose.msra.mxu0 0.0
    %3095 = vmatprep.subr.mxu0 0.0
    %3096 = vmatpush1.xpose.msra.mxu0 0.0
    %3097 = vmatprep.subr.mxu0 0.0
    %3098 = vmatpush1.xpose.msra.mxu0 0.0
    %3099 = vmatprep.subr.mxu0 0.0
    %3100 = vmatpush1.xpose.msra.mxu0 0.0
    %3101 = vmatprep.mubr.f32.mxu0 0.0
    %3102 = vmatmul.mubr.f32.gmra.mrb[0].mxu0 %v3033
    %v3103 = vpop.f32.mrb[0].mxu0
    %v3104 = vadd.f32 %v34, %v3103
    %v3105 = vpop.f32.mrb[0].mxu0
    %3106 = vdwg.mxu0
    %v3107 = vsel %vm129, %v3026, -inf
    %3108 = vmax.xlane.f32.xlu0 %v3107
    %v3109 = vpop.xlane.xlu0 %3108
    %v3110 = vsel %vm129, %v3104, -inf
    %3111 = vmax.xlane.f32.xlu0 %v3110
    %v3112 = vpop.xlane.xlu0 %3111
    %v3113 = vsub.f32 %v3026, %v3109
    %v3114 = vsub.f32 %v3104, %v3112
    %v3115 = vmul.f32 %v3113, 1.442695
    %v3116 = vpow.pop %v3115
    %v3117 = vmul.f32 %v3114, 1.442695
    %v3118 = vpow.pop %v3117
    %v3119 = vsel %vm129, %v3116, 0.0
    %3120 = vadd.xlane.f32.xlu0 %v3119
    %v3121 = vpop.xlane.xlu0 %3120
    %v3122 = vsel %vm129, %v3118, 0.0
    %3123 = vadd.xlane.f32.xlu0 %v3122
    %v3124 = vpop.xlane.xlu0 %3123
    %v3125 = vrcp.pop %v3121
    %v3126 = vrcp.pop %v3124
    %v3127 = vmul.f32 %v3116, %v3125
    %v3128 = vmul.f32 %v3118, %v3126
    %3129 = vrot.lane.b32.xlu0 %v1933, 40
    %v3130 = vpop.permute.xlu0 %3129
    %v3133 = vsel %vm129, %v3127, 0
    %3135 = vmatprep.subr.mxu0 0.0
    %3136 = vmatpush1.msra.mxu0 %v3130
    %3137 = vmatprep.subr.mxu0 0.0
    %3138 = vmatpush1.msra.mxu0 0.0
    %3139 = vmatprep.subr.mxu0 0.0
    %3140 = vmatpush1.msra.mxu0 0.0
    %3141 = vmatprep.subr.mxu0 0.0
    %3142 = vmatpush1.msra.mxu0 0.0
    %3143 = vmatprep.subr.mxu0 0.0
    %3144 = vmatpush1.msra.mxu0 0.0
    %3145 = vmatprep.subr.mxu0 0.0
    %3146 = vmatpush1.msra.mxu0 0.0
    %3147 = vmatprep.subr.mxu0 0.0
    %3148 = vmatpush1.msra.mxu0 0.0
    %3149 = vmatprep.subr.mxu0 0.0
    %3150 = vmatpush1.msra.mxu0 0.0
    %3151 = vmatprep.subr.mxu0 0.0
    %3152 = vmatpush1.msra.mxu0 0.0
    %3153 = vmatprep.subr.mxu0 0.0
    %3154 = vmatpush1.msra.mxu0 0.0
    %3155 = vmatprep.subr.mxu0 0.0
    %3156 = vmatpush1.msra.mxu0 0.0
    %3157 = vmatprep.subr.mxu0 0.0
    %3158 = vmatpush1.msra.mxu0 0.0
    %3159 = vmatprep.subr.mxu0 0.0
    %3160 = vmatpush1.msra.mxu0 0.0
    %3161 = vmatprep.subr.mxu0 0.0
    %3162 = vmatpush1.msra.mxu0 0.0
    %3163 = vmatprep.subr.mxu0 0.0
    %3164 = vmatpush1.msra.mxu0 0.0
    %3165 = vmatprep.subr.mxu0 0.0
    %3166 = vmatpush1.msra.mxu0 0.0
    %3167 = vmatprep.subr.mxu0 0.0
    %3168 = vmatpush1.msra.mxu0 0.0
    %3169 = vmatprep.subr.mxu0 0.0
    %3170 = vmatpush1.msra.mxu0 0.0
    %3171 = vmatprep.subr.mxu0 0.0
    %3172 = vmatpush1.msra.mxu0 0.0
    %3173 = vmatprep.subr.mxu0 0.0
    %3174 = vmatpush1.msra.mxu0 0.0
    %3175 = vmatprep.subr.mxu0 0.0
    %3176 = vmatpush1.msra.mxu0 0.0
    %3177 = vmatprep.subr.mxu0 0.0
    %3178 = vmatpush1.msra.mxu0 0.0
    %3179 = vmatprep.subr.mxu0 0.0
    %3180 = vmatpush1.msra.mxu0 0.0
    %3181 = vmatprep.subr.mxu0 0.0
    %3182 = vmatpush1.msra.mxu0 0.0
    %3183 = vmatprep.subr.mxu0 0.0
    %3184 = vmatpush1.msra.mxu0 0.0
    %3185 = vmatprep.subr.mxu0 0.0
    %3186 = vmatpush1.msra.mxu0 0.0
    %3187 = vmatprep.subr.mxu0 0.0
    %3188 = vmatpush1.msra.mxu0 0.0
    %3189 = vmatprep.subr.mxu0 0.0
    %3190 = vmatpush1.msra.mxu0 0.0
    %3191 = vmatprep.subr.mxu0 0.0
    %3192 = vmatpush1.msra.mxu0 0.0
    %3193 = vmatprep.subr.mxu0 0.0
    %3194 = vmatpush1.msra.mxu0 0.0
    %3195 = vmatprep.subr.mxu0 0.0
    %3196 = vmatpush1.msra.mxu0 0.0
    %3197 = vmatprep.subr.mxu0 0.0
    %3198 = vmatpush1.msra.mxu0 0.0
    %3199 = vmatprep.mubr.f32.mxu0 0.0
    %3200 = vmatmul.mubr.f32.gmra.mrb[0].mxu0 %v3133
    %v3201 = vpop.f32.mrb[0].mxu0
    %v3202 = vadd.f32 0.0, %v3201
    %v3203 = vpop.f32.mrb[0].mxu0
    %3204 = vdwg.mxu0
    %3205 = vrot.lane.b32.xlu0 %v1938, 40
    %v3206 = vpop.permute.xlu0 %3205
    %v3209 = vsel %vm129, %v3128, 0
    %3211 = vmatprep.subr.mxu0 0.0
    %3212 = vmatpush1.msra.mxu0 %v3206
    %3213 = vmatprep.subr.mxu0 0.0
    %3214 = vmatpush1.msra.mxu0 0.0
    %3215 = vmatprep.subr.mxu0 0.0
    %3216 = vmatpush1.msra.mxu0 0.0
    %3217 = vmatprep.subr.mxu0 0.0
    %3218 = vmatpush1.msra.mxu0 0.0
    %3219 = vmatprep.subr.mxu0 0.0
    %3220 = vmatpush1.msra.mxu0 0.0
    %3221 = vmatprep.subr.mxu0 0.0
    %3222 = vmatpush1.msra.mxu0 0.0
    %3223 = vmatprep.subr.mxu0 0.0
    %3224 = vmatpush1.msra.mxu0 0.0
    %3225 = vmatprep.subr.mxu0 0.0
    %3226 = vmatpush1.msra.mxu0 0.0
    %3227 = vmatprep.subr.mxu0 0.0
    %3228 = vmatpush1.msra.mxu0 0.0
    %3229 = vmatprep.subr.mxu0 0.0
    %3230 = vmatpush1.msra.mxu0 0.0
    %3231 = vmatprep.subr.mxu0 0.0
    %3232 = vmatpush1.msra.mxu0 0.0
    %3233 = vmatprep.subr.mxu0 0.0
    %3234 = vmatpush1.msra.mxu0 0.0
    %3235 = vmatprep.subr.mxu0 0.0
    %3236 = vmatpush1.msra.mxu0 0.0
    %3237 = vmatprep.subr.mxu0 0.0
    %3238 = vmatpush1.msra.mxu0 0.0
    %3239 = vmatprep.subr.mxu0 0.0
    %3240 = vmatpush1.msra.mxu0 0.0
    %3241 = vmatprep.subr.mxu0 0.0
    %3242 = vmatpush1.msra.mxu0 0.0
    %3243 = vmatprep.subr.mxu0 0.0
    %3244 = vmatpush1.msra.mxu0 0.0
    %3245 = vmatprep.subr.mxu0 0.0
    %3246 = vmatpush1.msra.mxu0 0.0
    %3247 = vmatprep.subr.mxu0 0.0
    %3248 = vmatpush1.msra.mxu0 0.0
    %3249 = vmatprep.subr.mxu0 0.0
    %3250 = vmatpush1.msra.mxu0 0.0
    %3251 = vmatprep.subr.mxu0 0.0
    %3252 = vmatpush1.msra.mxu0 0.0
    %3253 = vmatprep.subr.mxu0 0.0
    %3254 = vmatpush1.msra.mxu0 0.0
    %3255 = vmatprep.subr.mxu0 0.0
    %3256 = vmatpush1.msra.mxu0 0.0
    %3257 = vmatprep.subr.mxu0 0.0
    %3258 = vmatpush1.msra.mxu0 0.0
    %3259 = vmatprep.subr.mxu0 0.0
    %3260 = vmatpush1.msra.mxu0 0.0
    %3261 = vmatprep.subr.mxu0 0.0
    %3262 = vmatpush1.msra.mxu0 0.0
    %3263 = vmatprep.subr.mxu0 0.0
    %3264 = vmatpush1.msra.mxu0 0.0
    %3265 = vmatprep.subr.mxu0 0.0
    %3266 = vmatpush1.msra.mxu0 0.0
    %3267 = vmatprep.subr.mxu0 0.0
    %3268 = vmatpush1.msra.mxu0 0.0
    %3269 = vmatprep.subr.mxu0 0.0
    %3270 = vmatpush1.msra.mxu0 0.0
    %3271 = vmatprep.subr.mxu0 0.0
    %3272 = vmatpush1.msra.mxu0 0.0
    %3273 = vmatprep.subr.mxu0 0.0
    %3274 = vmatpush1.msra.mxu0 0.0
    %3275 = vmatprep.mubr.f32.mxu0 0.0
    %3276 = vmatmul.mubr.f32.gmra.mrb[0].mxu0 %v3209
    %v3277 = vpop.f32.mrb[0].mxu0
    %v3278 = vadd.f32 0.0, %v3277
    %v3279 = vpop.f32.mrb[0].mxu0
    %3280 = vdwg.mxu0
    %3283 = vrot.lane.b32.xlu0 %v3202, 24
    %v3284 = vpop.permute.xlu0 %3283
    %3285 = vrot.lane.b32.xlu0 %v3278, 24
    %v3286 = vpop.permute.xlu0 %3285
    %3289 = vst.msk [vmem:[#allocation2] sm:$0xff] %vm1477, %v3284
    %3290 = vst.msk [vmem:[#allocation2 + $0x8] sm:$0xff] %vm1477, %v3286
    %v3291 = vld [vmem:[#allocation2] sm:$0xff]
    %v3292 = vld [vmem:[#allocation2 + $0x8] sm:$0xff]
    %v3293 = vlaneseq
    %v3294 = vshrl.u32 %v3293, 7
    %v3295 = vsub.s32 1, %v3294
    %v3296 = vrot.slane %v1855, %v3295
    %3301 = vrot.lane.b32.xlu0 %v1850, 32
    %v3302 = vpop.permute.xlu0 %3301
    %3303 = vrot.lane.b32.xlu0 %v1851, 32
    %v3304 = vpop.permute.xlu0 %3303
    %3305 = vrot.lane.b32.xlu0 %v1852, 32
    %v3306 = vpop.permute.xlu0 %3305
    %3307 = vrot.lane.b32.xlu0 %v1853, 32
    %v3308 = vpop.permute.xlu0 %3307
    %v3314 = vsel %vm44, %v3291, 0
    %v3317 = vsel %vm44, %v3292, 0
    %3319 = vmatprep.subr.mxu0 0.0
    %3320 = vmatpush1.msra.mxu0 %v3302
    %3321 = vmatprep.subr.mxu0 0.0
    %3322 = vmatpush1.msra.mxu0 %v3304
    %3323 = vmatprep.subr.mxu0 0.0
    %3324 = vmatpush1.msra.mxu0 %v3306
    %3325 = vmatprep.subr.mxu0 0.0
    %3326 = vmatpush1.msra.mxu0 %v3308
    %3327 = vmatprep.subr.mxu0 0.0
    %3328 = vmatpush1.msra.mxu0 0.0
    %3329 = vmatprep.subr.mxu0 0.0
    %3330 = vmatpush1.msra.mxu0 0.0
    %3331 = vmatprep.subr.mxu0 0.0
    %3332 = vmatpush1.msra.mxu0 0.0
    %3333 = vmatprep.subr.mxu0 0.0
    %3334 = vmatpush1.msra.mxu0 0.0
    %3335 = vmatprep.subr.mxu0 0.0
    %3336 = vmatpush1.msra.mxu0 0.0
    %3337 = vmatprep.subr.mxu0 0.0
    %3338 = vmatpush1.msra.mxu0 0.0
    %3339 = vmatprep.subr.mxu0 0.0
    %3340 = vmatpush1.msra.mxu0 0.0
    %3341 = vmatprep.subr.mxu0 0.0
    %3342 = vmatpush1.msra.mxu0 0.0
    %3343 = vmatprep.subr.mxu0 0.0
    %3344 = vmatpush1.msra.mxu0 0.0
    %3345 = vmatprep.subr.mxu0 0.0
    %3346 = vmatpush1.msra.mxu0 0.0
    %3347 = vmatprep.subr.mxu0 0.0
    %3348 = vmatpush1.msra.mxu0 0.0
    %3349 = vmatprep.subr.mxu0 0.0
    %3350 = vmatpush1.msra.mxu0 0.0
    %3351 = vmatprep.subr.mxu0 0.0
    %3352 = vmatpush1.msra.mxu0 0.0
    %3353 = vmatprep.subr.mxu0 0.0
    %3354 = vmatpush1.msra.mxu0 0.0
    %3355 = vmatprep.subr.mxu0 0.0
    %3356 = vmatpush1.msra.mxu0 0.0
    %3357 = vmatprep.subr.mxu0 0.0
    %3358 = vmatpush1.msra.mxu0 0.0
    %3359 = vmatprep.subr.mxu0 0.0
    %3360 = vmatpush1.msra.mxu0 0.0
    %3361 = vmatprep.subr.mxu0 0.0
    %3362 = vmatpush1.msra.mxu0 0.0
    %3363 = vmatprep.subr.mxu0 0.0
    %3364 = vmatpush1.msra.mxu0 0.0
    %3365 = vmatprep.subr.mxu0 0.0
    %3366 = vmatpush1.msra.mxu0 0.0
    %3367 = vmatprep.subr.mxu0 0.0
    %3368 = vmatpush1.msra.mxu0 0.0
    %3369 = vmatprep.subr.mxu0 0.0
    %3370 = vmatpush1.msra.mxu0 0.0
    %3371 = vmatprep.subr.mxu0 0.0
    %3372 = vmatpush1.msra.mxu0 0.0
    %3373 = vmatprep.subr.mxu0 0.0
    %3374 = vmatpush1.msra.mxu0 0.0
    %3375 = vmatprep.subr.mxu0 0.0
    %3376 = vmatpush1.msra.mxu0 0.0
    %3377 = vmatprep.subr.mxu0 0.0
    %3378 = vmatpush1.msra.mxu0 0.0
    %3379 = vmatprep.subr.mxu0 0.0
    %3380 = vmatpush1.msra.mxu0 0.0
    %3381 = vmatprep.subr.mxu0 0.0
    %3382 = vmatpush1.msra.mxu0 0.0
    %3383 = vmatprep.mubr.f32.mxu0 0.0
    %3384 = vmatmul.mubr.f32.gmra.mrb[0].mxu0 %v3314
    %v3385 = vpop.f32.mrb[0].mxu0
    %v3386 = vadd.f32 %v3296, %v3385
    %v3387 = vpop.f32.mrb[0].mxu0
    %3388 = vmatprep.mubr.f32.mxu0 0.0
    %3389 = vmatmul.mubr.f32.gmra.mrb[0].mxu0 %v3317
    %v3390 = vpop.f32.mrb[0].mxu0
    %v3391 = vadd.f32 %v3296, %v3390
    %v3392 = vpop.f32.mrb[0].mxu0
    %3393 = vdwg.mxu0
    %v3394 = vadd.f32 %v1847, %v3386
    %v3395 = vadd.f32 %v1848, %v3391
    %v3396 = vsel %vm44, %v3394, 0.0
    %3397 = vadd.xlane.f32.xlu0 %v3396
    %v3398 = vpop.xlane.xlu0 %3397
    %v3399 = vsel %vm44, %v3395, 0.0
    %3400 = vadd.xlane.f32.xlu0 %v3399
    %v3401 = vpop.xlane.xlu0 %3400
    %v3402 = vmul.f32 %v3398, %v1591
    %v3403 = vmul.f32 %v3401, %v1591
    %v3404 = vsub.f32 %v3394, %v3402
    %v3405 = vsub.f32 %v3395, %v3403
    %v3406 = vmul.f32 %v3404, %v3404
    %v3407 = vmul.f32 %v3405, %v3405
    %v3408 = vsel %vm44, %v3406, 0.0
    %3409 = vadd.xlane.f32.xlu0 %v3408
    %v3410 = vpop.xlane.xlu0 %3409
    %v3411 = vsel %vm44, %v3407, 0.0
    %3412 = vadd.xlane.f32.xlu0 %v3411
    %v3413 = vpop.xlane.xlu0 %3412
    %v3414 = vmul.f32 %v3410, %v1591
    %v3415 = vmul.f32 %v3413, %v1591
    %v3416 = vadd.f32 %v3414, 1e-05
    %v3417 = vadd.f32 %v3415, 1e-05
    %v3418 = vrsqrt.pop %v3416
    %v3419 = vrsqrt.pop %v3417
    %v3420 = vmul.f32 %v3404, %v3418
    %v3421 = vmul.f32 %v3405, %v3419
    %v3422 = vlaneseq
    %v3423 = vshrl.u32 %v3422, 7
    %v3424 = vsub.s32 4, %v3423
    %v3425 = vrot.slane %v1855, %v3424
    %v3426 = vmul.f32 %v3420, %v3425
    %v3427 = vmul.f32 %v3421, %v3425
    %v3428 = vlaneseq
    %v3429 = vshrl.u32 %v3428, 7
    %v3430 = vsub.s32 5, %v3429
    %v3431 = vrot.slane %v1855, %v3430
    %v3432 = vadd.f32 %v3426, %v3431
    %v3433 = vadd.f32 %v3427, %v3431
    %s3434 = scalar_lea.vmem %s2, 32
    %v3435 = vld [vmem:[%s3434] sm:$0xff]
    %v3436 = vld [vmem:[%s3434 + $0x8] sm:$0xff]
    %v3437 = vld [vmem:[%s3434 + $0x10] sm:$0xff]
    %v3438 = vld [vmem:[%s3434 + $0x18] sm:$0xff]
    %v3439 = vlaneseq
    %v3440 = vshrl.u32 %v3439, 7
    %v3441 = vsub.s32 2, %v3440
    %v3442 = vrot.slane %v1855, %v3441
    %v3444 = vsel %vm44, %v3432, 0
    %v3447 = vsel %vm44, %v3433, 0
    %3449 = vmatprep.subr.mxu0 0.0
    %3450 = vmatpush1.msra.mxu0 %v3435
    %3451 = vmatprep.subr.mxu0 0.0
    %3452 = vmatpush1.msra.mxu0 %v3436
    %3453 = vmatprep.subr.mxu0 0.0
    %3454 = vmatpush1.msra.mxu0 %v3437
    %3455 = vmatprep.subr.mxu0 0.0
    %3456 = vmatpush1.msra.mxu0 %v3438
    %3457 = vmatprep.subr.mxu0 0.0
    %3458 = vmatpush1.msra.mxu0 0.0
    %3459 = vmatprep.subr.mxu0 0.0
    %3460 = vmatpush1.msra.mxu0 0.0
    %3461 = vmatprep.subr.mxu0 0.0
    %3462 = vmatpush1.msra.mxu0 0.0
    %3463 = vmatprep.subr.mxu0 0.0
    %3464 = vmatpush1.msra.mxu0 0.0
    %3465 = vmatprep.subr.mxu0 0.0
    %3466 = vmatpush1.msra.mxu0 0.0
    %3467 = vmatprep.subr.mxu0 0.0
    %3468 = vmatpush1.msra.mxu0 0.0
    %3469 = vmatprep.subr.mxu0 0.0
    %3470 = vmatpush1.msra.mxu0 0.0
    %3471 = vmatprep.subr.mxu0 0.0
    %3472 = vmatpush1.msra.mxu0 0.0
    %3473 = vmatprep.subr.mxu0 0.0
    %3474 = vmatpush1.msra.mxu0 0.0
    %3475 = vmatprep.subr.mxu0 0.0
    %3476 = vmatpush1.msra.mxu0 0.0
    %3477 = vmatprep.subr.mxu0 0.0
    %3478 = vmatpush1.msra.mxu0 0.0
    %3479 = vmatprep.subr.mxu0 0.0
    %3480 = vmatpush1.msra.mxu0 0.0
    %3481 = vmatprep.subr.mxu0 0.0
    %3482 = vmatpush1.msra.mxu0 0.0
    %3483 = vmatprep.subr.mxu0 0.0
    %3484 = vmatpush1.msra.mxu0 0.0
    %3485 = vmatprep.subr.mxu0 0.0
    %3486 = vmatpush1.msra.mxu0 0.0
    %3487 = vmatprep.subr.mxu0 0.0
    %3488 = vmatpush1.msra.mxu0 0.0
    %3489 = vmatprep.subr.mxu0 0.0
    %3490 = vmatpush1.msra.mxu0 0.0
    %3491 = vmatprep.subr.mxu0 0.0
    %3492 = vmatpush1.msra.mxu0 0.0
    %3493 = vmatprep.subr.mxu0 0.0
    %3494 = vmatpush1.msra.mxu0 0.0
    %3495 = vmatprep.subr.mxu0 0.0
    %3496 = vmatpush1.msra.mxu0 0.0
    %3497 = vmatprep.subr.mxu0 0.0
    %3498 = vmatpush1.msra.mxu0 0.0
    %3499 = vmatprep.subr.mxu0 0.0
    %3500 = vmatpush1.msra.mxu0 0.0
    %3501 = vmatprep.subr.mxu0 0.0
    %3502 = vmatpush1.msra.mxu0 0.0
    %3503 = vmatprep.subr.mxu0 0.0
    %3504 = vmatpush1.msra.mxu0 0.0
    %3505 = vmatprep.subr.mxu0 0.0
    %3506 = vmatpush1.msra.mxu0 0.0
    %3507 = vmatprep.subr.mxu0 0.0
    %3508 = vmatpush1.msra.mxu0 0.0
    %3509 = vmatprep.subr.mxu0 0.0
    %3510 = vmatpush1.msra.mxu0 0.0
    %3511 = vmatprep.subr.mxu0 0.0
    %3512 = vmatpush1.msra.mxu0 0.0
    %3513 = vmatprep.mubr.f32.mxu0 0.0
    %3514 = vmatmul.mubr.f32.gmra.mrb[0].mxu0 %v3444
    %v3515 = vpop.f32.mrb[0].mxu0
    %v3516 = vadd.f32 %v3442, %v3515
    %v3517 = vpop.f32.mrb[0].mxu0
    %3518 = vmatprep.mubr.f32.mxu0 0.0
    %3519 = vmatmul.mubr.f32.gmra.mrb[0].mxu0 %v3447
    %v3520 = vpop.f32.mrb[0].mxu0
    %v3521 = vadd.f32 %v3442, %v3520
    %v3522 = vpop.f32.mrb[0].mxu0
    %3523 = vdwg.mxu0
    %v3524 = vmax.f32 %v3516, 0.0
    %v3525 = vmax.f32 %v3521, 0.0
    %s3526 = scalar_lea.vmem %s3, 64
    %v3527 = vld [vmem:[%s3526] sm:$0xff]
    %v3528 = vld [vmem:[%s3526 + $0x8] sm:$0xff]
    %v3529 = vld [vmem:[%s3526 + $0x10] sm:$0xff]
    %v3530 = vld [vmem:[%s3526 + $0x18] sm:$0xff]
    %v3531 = vld [vmem:[%s3526 + $0x20] sm:$0xff]
    %v3532 = vld [vmem:[%s3526 + $0x28] sm:$0xff]
    %v3533 = vld [vmem:[%s3526 + $0x30] sm:$0xff]
    %v3534 = vld [vmem:[%s3526 + $0x38] sm:$0xff]
    %v3535 = vlaneseq
    %v3536 = vshrl.u32 %v3535, 7
    %v3537 = vsub.s32 3, %v3536
    %v3538 = vrot.slane %v1855, %v3537
    %v3540 = vsel %vm1727, %v3524, 0
    %v3543 = vsel %vm1727, %v3525, 0
    %3545 = vmatprep.subr.mxu0 0.0
    %3546 = vmatpush1.msra.mxu0 %v3527
    %3547 = vmatprep.subr.mxu0 0.0
    %3548 = vmatpush1.msra.mxu0 %v3528
    %3549 = vmatprep.subr.mxu0 0.0
    %3550 = vmatpush1.msra.mxu0 %v3529
    %3551 = vmatprep.subr.mxu0 0.0
    %3552 = vmatpush1.msra.mxu0 %v3530
    %3553 = vmatprep.subr.mxu0 0.0
    %3554 = vmatpush1.msra.mxu0 %v3531
    %3555 = vmatprep.subr.mxu0 0.0
    %3556 = vmatpush1.msra.mxu0 %v3532
    %3557 = vmatprep.subr.mxu0 0.0
    %3558 = vmatpush1.msra.mxu0 %v3533
    %3559 = vmatprep.subr.mxu0 0.0
    %3560 = vmatpush1.msra.mxu0 %v3534
    %3561 = vmatprep.subr.mxu0 0.0
    %3562 = vmatpush1.msra.mxu0 0.0
    %3563 = vmatprep.subr.mxu0 0.0
    %3564 = vmatpush1.msra.mxu0 0.0
    %3565 = vmatprep.subr.mxu0 0.0
    %3566 = vmatpush1.msra.mxu0 0.0
    %3567 = vmatprep.subr.mxu0 0.0
    %3568 = vmatpush1.msra.mxu0 0.0
    %3569 = vmatprep.subr.mxu0 0.0
    %3570 = vmatpush1.msra.mxu0 0.0
    %3571 = vmatprep.subr.mxu0 0.0
    %3572 = vmatpush1.msra.mxu0 0.0
    %3573 = vmatprep.subr.mxu0 0.0
    %3574 = vmatpush1.msra.mxu0 0.0
    %3575 = vmatprep.subr.mxu0 0.0
    %3576 = vmatpush1.msra.mxu0 0.0
    %3577 = vmatprep.subr.mxu0 0.0
    %3578 = vmatpush1.msra.mxu0 0.0
    %3579 = vmatprep.subr.mxu0 0.0
    %3580 = vmatpush1.msra.mxu0 0.0
    %3581 = vmatprep.subr.mxu0 0.0
    %3582 = vmatpush1.msra.mxu0 0.0
    %3583 = vmatprep.subr.mxu0 0.0
    %3584 = vmatpush1.msra.mxu0 0.0
    %3585 = vmatprep.subr.mxu0 0.0
    %3586 = vmatpush1.msra.mxu0 0.0
    %3587 = vmatprep.subr.mxu0 0.0
    %3588 = vmatpush1.msra.mxu0 0.0
    %3589 = vmatprep.subr.mxu0 0.0
    %3590 = vmatpush1.msra.mxu0 0.0
    %3591 = vmatprep.subr.mxu0 0.0
    %3592 = vmatpush1.msra.mxu0 0.0
    %3593 = vmatprep.subr.mxu0 0.0
    %3594 = vmatpush1.msra.mxu0 0.0
    %3595 = vmatprep.subr.mxu0 0.0
    %3596 = vmatpush1.msra.mxu0 0.0
    %3597 = vmatprep.subr.mxu0 0.0
    %3598 = vmatpush1.msra.mxu0 0.0
    %3599 = vmatprep.subr.mxu0 0.0
    %3600 = vmatpush1.msra.mxu0 0.0
    %3601 = vmatprep.subr.mxu0 0.0
    %3602 = vmatpush1.msra.mxu0 0.0
    %3603 = vmatprep.subr.mxu0 0.0
    %3604 = vmatpush1.msra.mxu0 0.0
    %3605 = vmatprep.subr.mxu0 0.0
    %3606 = vmatpush1.msra.mxu0 0.0
    %3607 = vmatprep.subr.mxu0 0.0
    %3608 = vmatpush1.msra.mxu0 0.0
    %3609 = vmatprep.mubr.f32.mxu0 0.0
    %3610 = vmatmul.mubr.f32.gmra.mrb[0].mxu0 %v3540
    %v3611 = vpop.f32.mrb[0].mxu0
    %v3612 = vadd.f32 %v3538, %v3611
    %v3613 = vpop.f32.mrb[0].mxu0
    %3614 = vmatprep.mubr.f32.mxu0 0.0
    %3615 = vmatmul.mubr.f32.gmra.mrb[0].mxu0 %v3543
    %v3616 = vpop.f32.mrb[0].mxu0
    %v3617 = vadd.f32 %v3538, %v3616
    %v3618 = vpop.f32.mrb[0].mxu0
    %3619 = vdwg.mxu0
    %v3620 = vadd.f32 %v3432, %v3612
    %v3621 = vadd.f32 %v3433, %v3617
    %v3622 = vsel %vm44, %v3620, 0.0
    %3623 = vadd.xlane.f32.xlu0 %v3622
    %v3624 = vpop.xlane.xlu0 %3623
    %v3625 = vsel %vm44, %v3621, 0.0
    %3626 = vadd.xlane.f32.xlu0 %v3625
    %v3627 = vpop.xlane.xlu0 %3626
    %v3628 = vmul.f32 %v3624, %v1591
    %v3629 = vmul.f32 %v3627, %v1591
    %v3630 = vsub.f32 %v3620, %v3628
    %v3631 = vsub.f32 %v3621, %v3629
    %v3632 = vmul.f32 %v3630, %v3630
    %v3633 = vmul.f32 %v3631, %v3631
    %v3634 = vsel %vm44, %v3632, 0.0
    %3635 = vadd.xlane.f32.xlu0 %v3634
    %v3636 = vpop.xlane.xlu0 %3635
    %v3637 = vsel %vm44, %v3633, 0.0
    %3638 = vadd.xlane.f32.xlu0 %v3637
    %v3639 = vpop.xlane.xlu0 %3638
    %v3640 = vmul.f32 %v3636, %v1591
    %v3641 = vmul.f32 %v3639, %v1591
    %v3642 = vadd.f32 %v3640, 1e-05
    %v3643 = vadd.f32 %v3641, 1e-05
    %v3644 = vrsqrt.pop %v3642
    %v3645 = vrsqrt.pop %v3643
    %v3646 = vmul.f32 %v3630, %v3644
    %v3647 = vmul.f32 %v3631, %v3645
    %v3648 = vlaneseq
    %v3649 = vshrl.u32 %v3648, 7
    %v3650 = vsub.s32 6, %v3649
    %v3651 = vrot.slane %v1855, %v3650
    %v3652 = vmul.f32 %v3646, %v3651
    %v3653 = vmul.f32 %v3647, %v3651
    %v3654 = vlaneseq
    %v3655 = vshrl.u32 %v3654, 7
    %v3656 = vsub.s32 7, %v3655
    %v3657 = vrot.slane %v1855, %v3656
    %v3658 = vadd.f32 %v3652, %v3657
    %v3659 = vadd.f32 %v3653, %v3657
    %v3660 = vld [vmem:[%s5] sm:$0xff]
    %v3661 = vld [vmem:[%s5 + $0x8] sm:$0xff]
    %v3662 = vld [vmem:[%s5 + $0x10] sm:$0xff]
    %v3663 = vld [vmem:[%s5 + $0x18] sm:$0xff]
    %v3664 = vld [vmem:[%s6] sm:$0x1]
    %v3666 = vlaneseq
    %v3667 = vshrl.u32 %v3666, 7
    %v3668 = vsub.s32 0, %v3667
    %v3669 = vrot.slane %v3664, %v3668
    %v3672 = vsel %vm44, %v3658, 0
    %v3675 = vsel %vm44, %v3659, 0
    %3677 = vmatprep.subr.mxu0 0.0
    %3678 = vmatpush1.msra.mxu0 %v3660
    %3679 = vmatprep.subr.mxu0 0.0
    %3680 = vmatpush1.msra.mxu0 %v3661
    %3681 = vmatprep.subr.mxu0 0.0
    %3682 = vmatpush1.msra.mxu0 %v3662
    %3683 = vmatprep.subr.mxu0 0.0
    %3684 = vmatpush1.msra.mxu0 %v3663
    %3685 = vmatprep.subr.mxu0 0.0
    %3686 = vmatpush1.msra.mxu0 0.0
    %3687 = vmatprep.subr.mxu0 0.0
    %3688 = vmatpush1.msra.mxu0 0.0
    %3689 = vmatprep.subr.mxu0 0.0
    %3690 = vmatpush1.msra.mxu0 0.0
    %3691 = vmatprep.subr.mxu0 0.0
    %3692 = vmatpush1.msra.mxu0 0.0
    %3693 = vmatprep.subr.mxu0 0.0
    %3694 = vmatpush1.msra.mxu0 0.0
    %3695 = vmatprep.subr.mxu0 0.0
    %3696 = vmatpush1.msra.mxu0 0.0
    %3697 = vmatprep.subr.mxu0 0.0
    %3698 = vmatpush1.msra.mxu0 0.0
    %3699 = vmatprep.subr.mxu0 0.0
    %3700 = vmatpush1.msra.mxu0 0.0
    %3701 = vmatprep.subr.mxu0 0.0
    %3702 = vmatpush1.msra.mxu0 0.0
    %3703 = vmatprep.subr.mxu0 0.0
    %3704 = vmatpush1.msra.mxu0 0.0
    %3705 = vmatprep.subr.mxu0 0.0
    %3706 = vmatpush1.msra.mxu0 0.0
    %3707 = vmatprep.subr.mxu0 0.0
    %3708 = vmatpush1.msra.mxu0 0.0
    %3709 = vmatprep.subr.mxu0 0.0
    %3710 = vmatpush1.msra.mxu0 0.0
    %3711 = vmatprep.subr.mxu0 0.0
    %3712 = vmatpush1.msra.mxu0 0.0
    %3713 = vmatprep.subr.mxu0 0.0
    %3714 = vmatpush1.msra.mxu0 0.0
    %3715 = vmatprep.subr.mxu0 0.0
    %3716 = vmatpush1.msra.mxu0 0.0
    %3717 = vmatprep.subr.mxu0 0.0
    %3718 = vmatpush1.msra.mxu0 0.0
    %3719 = vmatprep.subr.mxu0 0.0
    %3720 = vmatpush1.msra.mxu0 0.0
    %3721 = vmatprep.subr.mxu0 0.0
    %3722 = vmatpush1.msra.mxu0 0.0
    %3723 = vmatprep.subr.mxu0 0.0
    %3724 = vmatpush1.msra.mxu0 0.0
    %3725 = vmatprep.subr.mxu0 0.0
    %3726 = vmatpush1.msra.mxu0 0.0
    %3727 = vmatprep.subr.mxu0 0.0
    %3728 = vmatpush1.msra.mxu0 0.0
    %3729 = vmatprep.subr.mxu0 0.0
    %3730 = vmatpush1.msra.mxu0 0.0
    %3731 = vmatprep.subr.mxu0 0.0
    %3732 = vmatpush1.msra.mxu0 0.0
    %3733 = vmatprep.subr.mxu0 0.0
    %3734 = vmatpush1.msra.mxu0 0.0
    %3735 = vmatprep.subr.mxu0 0.0
    %3736 = vmatpush1.msra.mxu0 0.0
    %3737 = vmatprep.subr.mxu0 0.0
    %3738 = vmatpush1.msra.mxu0 0.0
    %3739 = vmatprep.subr.mxu0 0.0
    %3740 = vmatpush1.msra.mxu0 0.0
    %3741 = vmatprep.mubr.f32.mxu0 0.0
    %3742 = vmatmul.mubr.f32.gmra.mrb[0].mxu0 %v3672
    %v3743 = vpop.f32.mrb[0].mxu0
    %v3744 = vadd.f32 %v3669, %v3743
    %v3745 = vpop.f32.mrb[0].mxu0
    %3746 = vmatprep.mubr.f32.mxu0 0.0
    %3747 = vmatmul.mubr.f32.gmra.mrb[0].mxu0 %v3675
    %v3748 = vpop.f32.mrb[0].mxu0
    %v3749 = vadd.f32 %v3669, %v3748
    %v3750 = vpop.f32.mrb[0].mxu0
    %3751 = vdwg.mxu0
    %3752 = vst [vmem:[#allocation3] sm:$0xff] %v3744
    %3753 = vst [vmem:[#allocation3 + $0x8] sm:$0xff] %v3749
    // Predicated region
    $region30: #{tpu_custom_call.1} parent=1 // pred_check
      _
    $region31: #{tpu_custom_call.1} parent=1 // pred_check_branch
      %3755 = sbr.rel (0) target = $region33
    $region32: #{tpu_custom_call.1} parent=1 // pred_region
      %s3757 = ssub.s32 256, 256
      %3758 = vsyncadd [#allocation4], %s3757
      %s3759 = sshll.u32 [#allocation3], 4
      %s3760 = int_to_ptr.vmem [resolvable:$true] %s3759
      %3765 = dma.vmem_to_hbm [thread:$0]  %s3760, 256, %s7, [#allocation4], 128, 128, 8
    $region33: #{tpu_custom_call.1} parent=1 // pred_fallthru
      _
    // Predicated region
    $region34: #{tpu_custom_call.1} parent=1 // pred_check
      _
    $region35: #{tpu_custom_call.1} parent=1 // pred_check_branch
      %3767 = sbr.rel (0) target = $region37
    $region36: #{tpu_custom_call.1} parent=1 // pred_region
      %3768 = dma.done [#allocation4], 256
    $region37: #{tpu_custom_call.1} parent=1 // pred_fallthru
      _
    %3769 = vsyncpa [#allocation4], 1

</llo_original>
